<compile_context>
chip_gen: v5e
topology: v5e:2x2
jax: 0.10.0
libtpu: 0.0.40
codegen_flags: <defaults>
</compile_context>

<pallas_src>
import math
import functools

import jax
import jax.numpy as jnp
from jax.experimental import pallas as pl
from jax.experimental.pallas import tpu as pltpu

PAD_IDX = 0


# ----------------------------- fused decoder-layer kernel -----------------------------

def _decoder_layer_kernel(x_ref, mem_ref, bias_ref,
                          wqkv_s_ref, bqkv_s_ref, wo_s_ref, bo_s_ref, n1g_ref, n1b_ref,
                          wq_c_ref, bq_c_ref, wkv_c_ref, bkv_c_ref, wo_c_ref, bo_c_ref,
                          n2g_ref, n2b_ref,
                          w1_ref, b1_ref, w2_ref, b2_ref, n3g_ref, n3b_ref,
                          o_ref, *, num_heads):
    """One full post-norm TransformerDecoderLayer for one batch element.

    x_ref: (T, H) f32, mem_ref: (S, H) f32, bias_ref: (1, S) f32 additive key-padding bias.
    Projection weights are bf16 (out-proj stored per-head as (NH, hd, H)); biases / LN f32.
    """
    H = x_ref.shape[-1]
    hd = H // num_heads
    scale = 1.0 / math.sqrt(hd)
    bf16 = jnp.bfloat16

    x = x_ref[...]          # (T, H) f32
    mem = mem_ref[...]      # (S, H) f32
    bias = bias_ref[...]    # (1, S) f32

    def layer_norm(v, g_ref, b_ref):
        # residual already added by caller; LayerNorm eps=1e-5 (nn.TransformerDecoderLayer)
        mu = jnp.mean(v, axis=-1, keepdims=True)
        c = v - mu
        var = jnp.mean(c * c, axis=-1, keepdims=True)
        return c * jax.lax.rsqrt(var + 1e-5) * g_ref[...] + b_ref[...]

    def mha(q, k, v, wo_ref, bo_ref, attn_bias):
        """q: (Tq, H), k/v: (Tk, H). Per-head split on the lane dim; output projection is
        fused via per-head accumulation against wo_ref[h] (hd, H)."""
        acc = jnp.zeros((q.shape[0], H), jnp.float32)
        for h in range(num_heads):          # static unroll over heads
            sl = slice(h * hd, (h + 1) * hd)
            qh = q[:, sl].astype(bf16)
            kh = k[:, sl].astype(bf16)
            vh = v[:, sl].astype(bf16)
            # Q @ K^T via dot_general contracting last dims (no explicit transpose).
            s = jax.lax.dot_general(qh, kh, (((1,), (1,)), ((), ())),
                                    preferred_element_type=jnp.float32) * scale
            if attn_bias is not None:
                s = s + attn_bias
            m = jnp.max(s, axis=-1, keepdims=True)
            e = jnp.exp(s - m)
            p = e * pl.reciprocal(jnp.sum(e, axis=-1, keepdims=True), approx=True)
            oh = jnp.dot(p.astype(bf16), vh, preferred_element_type=jnp.float32)   # (Tq, hd)
            acc = acc + jnp.dot(oh.astype(bf16), wo_ref[h],
                                preferred_element_type=jnp.float32)                # (Tq, H)
        return acc + bo_ref[...]

    # ---- self-attention (eval mode: prev_states == x, tgt_mask=None) ----
    qkv = jnp.dot(x.astype(bf16), wqkv_s_ref[...],
                  preferred_element_type=jnp.float32) + bqkv_s_ref[...]            # (T, 3H)
    sa = mha(qkv[:, 0:H], qkv[:, H:2 * H], qkv[:, 2 * H:3 * H], wo_s_ref, bo_s_ref, None)
    x = layer_norm(x + sa, n1g_ref, n1b_ref)

    # ---- cross-attention over encoder memory (key-padding bias) ----
    qc = jnp.dot(x.astype(bf16), wq_c_ref[...],
                 preferred_element_type=jnp.float32) + bq_c_ref[...]               # (T, H)
    kv = jnp.dot(mem.astype(bf16), wkv_c_ref[...],
                 preferred_element_type=jnp.float32) + bkv_c_ref[...]              # (S, 2H)
    ca = mha(qc, kv[:, 0:H], kv[:, H:2 * H], wo_c_ref, bo_c_ref, bias)
    x = layer_norm(x + ca, n2g_ref, n2b_ref)

    # ---- feed-forward: linear2(relu(linear1(x))) ----
    h1 = jnp.maximum(jnp.dot(x.astype(bf16), w1_ref[...],
                             preferred_element_type=jnp.float32) + b1_ref[...], 0.0)
    ff = jnp.dot(h1.astype(bf16), w2_ref[...],
                 preferred_element_type=jnp.float32) + b2_ref[...]
    x = layer_norm(x + ff, n3g_ref, n3b_ref)

    o_ref[...] = x


def decoder_layer(x, memory, memory_bias, p, num_heads):
    """x: (B, T, H) f32, memory: (B, S, H) f32, memory_bias: (B, 1, S) f32."""
    B, T, H = x.shape
    S = memory.shape[1]
    F = p["w1"].shape[1]
    hd = H // num_heads

    def _w2(shape):
        return pl.BlockSpec(shape, lambda b: (0, 0))

    def _w3(shape):
        return pl.BlockSpec(shape, lambda b: (0, 0, 0))

    in_specs = [
        pl.BlockSpec((None, T, H), lambda b: (b, 0, 0)),    # x (per-batch block)
        pl.BlockSpec((None, S, H), lambda b: (b, 0, 0)),    # encoder memory
        pl.BlockSpec((None, 1, S), lambda b: (b, 0, 0)),    # key-padding bias
        _w2((H, 3 * H)), _w2((1, 3 * H)),                   # self-attn fused QKV
        _w3((num_heads, hd, H)), _w2((1, H)),               # self-attn out-proj (per-head)
        _w2((1, H)), _w2((1, H)),                           # norm1 gamma/beta
        _w2((H, H)), _w2((1, H)),                           # cross-attn Q
        _w2((H, 2 * H)), _w2((1, 2 * H)),                   # cross-attn fused KV
        _w3((num_heads, hd, H)), _w2((1, H)),               # cross-attn out-proj
        _w2((1, H)), _w2((1, H)),                           # norm2
        _w2((H, F)), _w2((1, F)),                           # ffn linear1
        _w2((F, H)), _w2((1, H)),                           # ffn linear2
        _w2((1, H)), _w2((1, H)),                           # norm3
    ]

    return pl.pallas_call(
        functools.partial(_decoder_layer_kernel, num_heads=num_heads),
        out_shape=jax.ShapeDtypeStruct((B, T, H), jnp.float32),
        grid=(B,),
        in_specs=in_specs,
        out_specs=pl.BlockSpec((None, T, H), lambda b: (b, 0, 0)),
        compiler_params=pltpu.CompilerParams(
            dimension_semantics=("parallel",),
            vmem_limit_bytes=32 * 1024 * 1024),
    )(x, memory, memory_bias,
      p["wqkv_s"], p["bqkv_s"], p["wo_s"], p["bo_s"], p["n1g"], p["n1b"],
      p["wq_c"], p["bq_c"], p["wkv_c"], p["bkv_c"], p["wo_c"], p["bo_c"],
      p["n2g"], p["n2b"],
      p["w1"], p["b1"], p["w2"], p["b2"], p["n3g"], p["n3b"])


# ----------------------------- fused vocab projection + log-softmax -----------------------------

def _out_logsoftmax_kernel(x_ref, w_ref, b_ref, o_ref):
    logits = jnp.dot(x_ref[...].astype(jnp.bfloat16), w_ref[...],
                     preferred_element_type=jnp.float32) + b_ref[...]
    m = jnp.max(logits, axis=-1, keepdims=True)
    z = logits - m
    o_ref[...] = z - jnp.log(jnp.sum(jnp.exp(z), axis=-1, keepdims=True))


def _pick_row_tile(m, target=256):
    if m <= target or m % 8 != 0:
        return m
    t = min(target, m)
    t -= t % 8
    while t > 8 and m % t != 0:
        t -= 8
    return t if (t > 0 and m % t == 0) else m


def out_proj_logsoftmax(x2d, w_t, b, *, row_tile=256):
    """x2d: (M, H) f32, w_t: (H, V) bf16, b: (1, V) f32 -> log-softmax scores (M, V) f32.

    Tiled over rows (lane-dense (tm, V) output blocks); the (H, V) weight is loaded once.
    # TODO(synk): for very large vocabularies (e.g. 32k on v7x) also tile over V with a
    # two-pass / online log-sum-exp instead of keeping the whole V in one block.
    """
    M, H = x2d.shape
    V = w_t.shape[1]
    tm = _pick_row_tile(M, row_tile)
    return pl.pallas_call(
        _out_logsoftmax_kernel,
        out_shape=jax.ShapeDtypeStruct((M, V), jnp.float32),
        grid=(M // tm,),
        in_specs=[
            pl.BlockSpec((tm, H), lambda i: (i, 0)),
            pl.BlockSpec((H, V), lambda i: (0, 0)),
            pl.BlockSpec((1, V), lambda i: (0, 0)),
        ],
        out_specs=pl.BlockSpec((tm, V), lambda i: (i, 0)),
        compiler_params=pltpu.CompilerParams(
            dimension_semantics=("parallel",),
            vmem_limit_bytes=32 * 1024 * 1024),
    )(x2d, w_t, b)


# ----------------------------- model glue -----------------------------

def make_positional_encoding(d_model, max_len=128):
    position = jnp.arange(max_len, dtype=jnp.float32)[:, None]
    div_term = jnp.exp(
        jnp.arange(0, d_model, 2, dtype=jnp.float32) * (-math.log(10000.0) / d_model))
    pe = jnp.zeros((max_len, d_model), jnp.float32)
    pe = pe.at[:, 0::2].set(jnp.sin(position * div_term))
    pe = pe.at[:, 1::2].set(jnp.cos(position * div_term))
    return pe


def transformer_decoder_forward(params, input_tokens, encoder_output, xs_len, num_heads=4):
    """input_tokens: (B, T) int32; encoder_output: (B, S, H); xs_len: (B,) int32."""
    B, T = input_tokens.shape
    S = encoder_output.shape[1]
    H = params["pe"].shape[1]
    V = params["w_out"].shape[1]

    # TODO(synk): embedding gather stays in XLA (jnp.take); a Pallas scalar-prefetch gather
    # adds nothing at these sizes.  padding_idx row of the table is zero.
    emb = jnp.take(params["embedding"], input_tokens, axis=0)              # (B, T, H)
    # original code: x += self.embed_positions(x, 0)  =>  x = 2*x + pe[:T]
    x = 2.0 * emb + params["pe"][:T][None, :, :]

    # memory key-padding mask -> finite additive bias (avoids NaN on fully masked rows)
    mem_mask = jnp.arange(S)[None, :] >= xs_len[:, None]                   # (B, S)
    memory_bias = jnp.where(mem_mask, -1e30, 0.0).astype(jnp.float32).reshape(B, 1, S)

    enc = encoder_output.astype(jnp.float32)
    for p in params["layers"]:
        x = decoder_layer(x, enc, memory_bias, p, num_heads)

    scores = out_proj_logsoftmax(x.reshape(B * T, H), params["w_out"], params["b_out"])
    # TODO(synk): per-head attention-weight outputs of the reference dict are not materialized.
    return scores.reshape(B, T, V)                                         # LogSoftmax(dim=2)


def init_params(key, vocab, hidden, num_layers, heads):
    ffn = hidden                      # dim_feedforward == hidden_size in the module ctor
    hd = hidden // heads
    ks = iter(jax.random.split(key, 4 + num_layers * 8))

    def uni(shape, fan_in, dtype=jnp.bfloat16):
        lim = 1.0 / math.sqrt(fan_in)
        return jax.random.uniform(next(ks), shape, jnp.float32, -lim, lim).astype(dtype)

    def zeros2(n):
        return jnp.zeros((1, n), jnp.float32)

    def ones2(n):
        return jnp.ones((1, n), jnp.float32)

    emb = jax.random.normal(next(ks), (vocab, hidden), jnp.float32)
    emb = emb.at[PAD_IDX].set(0.0)    # nn.Embedding(padding_idx=PAD_IDX)

    layers = []
    for _ in range(num_layers):
        layers.append(dict(
            # self-attention: fused [Wq|Wk|Wv] (H, 3H); out-proj stored per-head (NH, hd, H)
            wqkv_s=uni((hidden, 3 * hidden), hidden), bqkv_s=zeros2(3 * hidden),
            wo_s=uni((hidden, hidden), hidden).reshape(heads, hd, hidden), bo_s=zeros2(hidden),
            n1g=ones2(hidden), n1b=zeros2(hidden),
            # cross-attention: Wq separate, fused [Wk|Wv] (H, 2H)
            wq_c=uni((hidden, hidden), hidden), bq_c=zeros2(hidden),
            wkv_c=uni((hidden, 2 * hidden), hidden), bkv_c=zeros2(2 * hidden),
            wo_c=uni((hidden, hidden), hidden).reshape(heads, hd, hidden), bo_c=zeros2(hidden),
            n2g=ones2(hidden), n2b=zeros2(hidden),
            # feed-forward
            w1=uni((hidden, ffn), hidden), b1=zeros2(ffn),
            w2=uni((ffn, hidden), ffn), b2=zeros2(hidden),
            n3g=ones2(hidden), n3b=zeros2(hidden),
        ))

    w_out = uni((hidden, vocab), hidden)
    b_out = zeros2(vocab)
    pe = make_positional_encoding(hidden)
    return dict(embedding=emb, pe=pe, layers=layers, w_out=w_out, b_out=b_out)


if __name__ == "__main__":
    V, H, NUM_LAYERS, NUM_HEADS = 50, 32, 2, 4
    B, T, S = 2, 8, 8

    key = jax.random.PRNGKey(0)
    k_p, k_tok, k_enc = jax.random.split(key, 3)

    params = init_params(k_p, V, H, NUM_LAYERS, NUM_HEADS)
    tokens = jax.random.randint(k_tok, (B, T), 0, V, dtype=jnp.int32)
    encoder_output = jax.random.normal(k_enc, (B, S, H), jnp.float32)
    xs_len = jnp.array([S, 5], dtype=jnp.int32)

    fwd = jax.jit(functools.partial(transformer_decoder_forward, num_heads=NUM_HEADS))
    scores = fwd(params, tokens, encoder_output, xs_len)
    jax.block_until_ready(scores)

    assert scores.shape == (B, T, V)
    assert bool(jnp.all(jnp.isfinite(scores)))
    print("KERNEL_OK")
</pallas_src>

<mosaic_0001>
module attributes {stable_mosaic.version = 11 : i64} {
  func.func @_out_logsoftmax_kernel(%arg0: i32, %arg1: memref<16x32xf32, #tpu.memory_space<vmem>>, %arg2: memref<32x50xbf16, #tpu.memory_space<vmem>>, %arg3: memref<1x50xf32, #tpu.memory_space<vmem>>, %arg4: memref<16x50xf32, #tpu.memory_space<vmem>>) attributes {dimension_semantics = [#tpu.dimension_semantics<parallel>], iteration_bounds = array<i64: 1>, scalar_prefetch = 0 : i64, scratch_operands = 0 : i64, tpu.core_type = #tpu.core_type<tc>, window_params = [{transform_indices = @transform_0, window_bounds = array<i64: 16, 32>}, {pipeline_mode = #tpu.pipeline_mode<synchronous>, transform_indices = @transform_1, window_bounds = array<i64: 32, 50>}, {pipeline_mode = #tpu.pipeline_mode<synchronous>, transform_indices = @transform_2, window_bounds = array<i64: 1, 50>}, {transform_indices = @transform_3, window_bounds = array<i64: 16, 50>}]} {
    %c0 = arith.constant 0 : index
    %c0_0 = arith.constant 0 : index
    %0 = vector.load %arg1[%c0, %c0_0] : memref<16x32xf32, #tpu.memory_space<vmem>>, vector<16x32xf32>
    %1 = arith.truncf %0 : vector<16x32xf32> to vector<16x32xbf16>
    %c0_1 = arith.constant 0 : index
    %c0_2 = arith.constant 0 : index
    %2 = vector.load %arg2[%c0_1, %c0_2] : memref<32x50xbf16, #tpu.memory_space<vmem>>, vector<32x50xbf16>
    %cst = arith.constant dense<0.000000e+00> : vector<16x50xf32>
    %3 = tpu.matmul %1, %2, %cst {dimension_numbers = #tpu.dot_dimension_numbers<[1], [0], [0], [1], [0, 0, 1, 1], [], []>} : vector<16x32xbf16>, vector<32x50xbf16>, vector<16x50xf32> -> vector<16x50xf32>
    %c0_3 = arith.constant 0 : index
    %c0_4 = arith.constant 0 : index
    %4 = vector.load %arg3[%c0_3, %c0_4] : memref<1x50xf32, #tpu.memory_space<vmem>>, vector<1x50xf32>
    %5 = vector.broadcast %4 : vector<1x50xf32> to vector<16x50xf32>
    %6 = arith.addf %3, %5 : vector<16x50xf32>
    %cst_5 = arith.constant dense<0xFF800000> : vector<16xf32>
    %7 = vector.multi_reduction <maximumf>, %6, %cst_5 [1] : vector<16x50xf32> to vector<16xf32>
    %8 = vector.shape_cast %7 : vector<16xf32> to vector<16x1xf32>
    %9 = vector.broadcast %8 : vector<16x1xf32> to vector<16x50xf32>
    %10 = arith.subf %6, %9 : vector<16x50xf32>
    %11 = math.exp %10 : vector<16x50xf32>
    %cst_6 = arith.constant dense<0.000000e+00> : vector<16xf32>
    %12 = vector.multi_reduction <add>, %11, %cst_6 [1] : vector<16x50xf32> to vector<16xf32>
    %13 = vector.shape_cast %12 : vector<16xf32> to vector<16x1xf32>
    %14 = math.log %13 : vector<16x1xf32>
    %15 = vector.broadcast %14 : vector<16x1xf32> to vector<16x50xf32>
    %16 = arith.subf %10, %15 : vector<16x50xf32>
    %c0_7 = arith.constant 0 : index
    %c0_8 = arith.constant 0 : index
    %17 = vector.load %arg4[%c0_7, %c0_8] : memref<16x50xf32, #tpu.memory_space<vmem>>, vector<16x50xf32>
    tpu.vector_store %arg4[%c0_7, %c0_8], %16 {strides = array<i32>} : memref<16x50xf32, #tpu.memory_space<vmem>>, vector<16x50xf32>,
    return
  }
  func.func @transform_0(%arg0: i32) -> (i32, i32) {
    %c0_i32 = arith.constant 0 : i32
    %c0_i32_0 = arith.constant 0 : i32
    return %arg0, %c0_i32 : i32, i32
  }
  func.func @transform_1(%arg0: i32) -> (i32, i32) {
    %c0_i32 = arith.constant 0 : i32
    %c0_i32_0 = arith.constant 0 : i32
    %c0_i32_1 = arith.constant 0 : i32
    return %c0_i32, %c0_i32_0 : i32, i32
  }
  func.func @transform_2(%arg0: i32) -> (i32, i32) {
    %c0_i32 = arith.constant 0 : i32
    %c0_i32_0 = arith.constant 0 : i32
    %c0_i32_1 = arith.constant 0 : i32
    return %c0_i32, %c0_i32_0 : i32, i32
  }
  func.func @transform_3(%arg0: i32) -> (i32, i32) {
    %c0_i32 = arith.constant 0 : i32
    %c0_i32_0 = arith.constant 0 : i32
    return %arg0, %c0_i32 : i32, i32
  }
}

module attributes {stable_mosaic.version = 11 : i64} {
  func.func @_decoder_layer_kernel(%arg0: i32, %arg1: memref<1x8x32xf32, #tpu.memory_space<vmem>>, %arg2: memref<1x8x32xf32, #tpu.memory_space<vmem>>, %arg3: memref<1x1x8xf32, #tpu.memory_space<vmem>>, %arg4: memref<32x96xbf16, #tpu.memory_space<vmem>>, %arg5: memref<1x96xf32, #tpu.memory_space<vmem>>, %arg6: memref<4x8x32xbf16, #tpu.memory_space<vmem>>, %arg7: memref<1x32xf32, #tpu.memory_space<vmem>>, %arg8: memref<1x32xf32, #tpu.memory_space<vmem>>, %arg9: memref<1x32xf32, #tpu.memory_space<vmem>>, %arg10: memref<32x32xbf16, #tpu.memory_space<vmem>>, %arg11: memref<1x32xf32, #tpu.memory_space<vmem>>, %arg12: memref<32x64xbf16, #tpu.memory_space<vmem>>, %arg13: memref<1x64xf32, #tpu.memory_space<vmem>>, %arg14: memref<4x8x32xbf16, #tpu.memory_space<vmem>>, %arg15: memref<1x32xf32, #tpu.memory_space<vmem>>, %arg16: memref<1x32xf32, #tpu.memory_space<vmem>>, %arg17: memref<1x32xf32, #tpu.memory_space<vmem>>, %arg18: memref<32x32xbf16, #tpu.memory_space<vmem>>, %arg19: memref<1x32xf32, #tpu.memory_space<vmem>>, %arg20: memref<32x32xbf16, #tpu.memory_space<vmem>>, %arg21: memref<1x32xf32, #tpu.memory_space<vmem>>, %arg22: memref<1x32xf32, #tpu.memory_space<vmem>>, %arg23: memref<1x32xf32, #tpu.memory_space<vmem>>, %arg24: memref<1x8x32xf32, #tpu.memory_space<vmem>>) attributes {dimension_semantics = [#tpu.dimension_semantics<parallel>], iteration_bounds = array<i64: 2>, scalar_prefetch = 0 : i64, scratch_operands = 0 : i64, tpu.core_type = #tpu.core_type<tc>, window_params = [{transform_indices = @transform_0, window_bounds = array<i64: 1, 8, 32>}, {transform_indices = @transform_1, window_bounds = array<i64: 1, 8, 32>}, {transform_indices = @transform_2, window_bounds = array<i64: 1, 1, 8>}, {pipeline_mode = #tpu.pipeline_mode<synchronous>, transform_indices = @transform_3, window_bounds = array<i64: 32, 96>}, {pipeline_mode = #tpu.pipeline_mode<synchronous>, transform_indices = @transform_4, window_bounds = array<i64: 1, 96>}, {pipeline_mode = #tpu.pipeline_mode<synchronous>, transform_indices = @transform_5, window_bounds = array<i64: 4, 8, 32>}, {pipeline_mode = #tpu.pipeline_mode<synchronous>, transform_indices = @transform_6, window_bounds = array<i64: 1, 32>}, {pipeline_mode = #tpu.pipeline_mode<synchronous>, transform_indices = @transform_7, window_bounds = array<i64: 1, 32>}, {pipeline_mode = #tpu.pipeline_mode<synchronous>, transform_indices = @transform_8, window_bounds = array<i64: 1, 32>}, {pipeline_mode = #tpu.pipeline_mode<synchronous>, transform_indices = @transform_9, window_bounds = array<i64: 32, 32>}, {pipeline_mode = #tpu.pipeline_mode<synchronous>, transform_indices = @transform_10, window_bounds = array<i64: 1, 32>}, {pipeline_mode = #tpu.pipeline_mode<synchronous>, transform_indices = @transform_11, window_bounds = array<i64: 32, 64>}, {pipeline_mode = #tpu.pipeline_mode<synchronous>, transform_indices = @transform_12, window_bounds = array<i64: 1, 64>}, {pipeline_mode = #tpu.pipeline_mode<synchronous>, transform_indices = @transform_13, window_bounds = array<i64: 4, 8, 32>}, {pipeline_mode = #tpu.pipeline_mode<synchronous>, transform_indices = @transform_14, window_bounds = array<i64: 1, 32>}, {pipeline_mode = #tpu.pipeline_mode<synchronous>, transform_indices = @transform_15, window_bounds = array<i64: 1, 32>}, {pipeline_mode = #tpu.pipeline_mode<synchronous>, transform_indices = @transform_16, window_bounds = array<i64: 1, 32>}, {pipeline_mode = #tpu.pipeline_mode<synchronous>, transform_indices = @transform_17, window_bounds = array<i64: 32, 32>}, {pipeline_mode = #tpu.pipeline_mode<synchronous>, transform_indices = @transform_18, window_bounds = array<i64: 1, 32>}, {pipeline_mode = #tpu.pipeline_mode<synchronous>, transform_indices = @transform_19, window_bounds = array<i64: 32, 32>}, {pipeline_mode = #tpu.pipeline_mode<synchronous>, transform_indices = @transform_20, window_bounds = array<i64: 1, 32>}, {pipeline_mode = #tpu.pipeline_mode<synchronous>, transform_indices = @transform_21, window_bounds = array<i64: 1, 32>}, {pipeline_mode = #tpu.pipeline_mode<synchronous>, transform_indices = @transform_22, window_bounds = array<i64: 1, 32>}, {transform_indices = @transform_23, window_bounds = array<i64: 1, 8, 32>}]} {
    %c0 = arith.constant 0 : index
    %c0_0 = arith.constant 0 : index
    %c0_1 = arith.constant 0 : index
    %0 = vector.load %arg1[%c0, %c0_0, %c0_1] : memref<1x8x32xf32, #tpu.memory_space<vmem>>, vector<1x8x32xf32>
    %1 = vector.shape_cast %0 : vector<1x8x32xf32> to vector<8x32xf32>
    %c0_2 = arith.constant 0 : index
    %c0_3 = arith.constant 0 : index
    %c0_4 = arith.constant 0 : index
    %2 = vector.load %arg2[%c0_2, %c0_3, %c0_4] : memref<1x8x32xf32, #tpu.memory_space<vmem>>, vector<1x8x32xf32>
    %3 = vector.shape_cast %2 : vector<1x8x32xf32> to vector<8x32xf32>
    %c0_5 = arith.constant 0 : index
    %c0_6 = arith.constant 0 : index
    %c0_7 = arith.constant 0 : index
    %4 = vector.load %arg3[%c0_5, %c0_6, %c0_7] : memref<1x1x8xf32, #tpu.memory_space<vmem>>, vector<1x1x8xf32>
    %5 = vector.shape_cast %4 : vector<1x1x8xf32> to vector<1x8xf32>
    %6 = arith.truncf %1 : vector<8x32xf32> to vector<8x32xbf16>
    %c0_8 = arith.constant 0 : index
    %c0_9 = arith.constant 0 : index
    %7 = vector.load %arg4[%c0_8, %c0_9] : memref<32x96xbf16, #tpu.memory_space<vmem>>, vector<32x96xbf16>
    %cst = arith.constant dense<0.000000e+00> : vector<8x96xf32>
    %8 = tpu.matmul %6, %7, %cst {dimension_numbers = #tpu.dot_dimension_numbers<[1], [0], [0], [1], [0, 0, 1, 1], [], []>} : vector<8x32xbf16>, vector<32x96xbf16>, vector<8x96xf32> -> vector<8x96xf32>
    %c0_10 = arith.constant 0 : index
    %c0_11 = arith.constant 0 : index
    %9 = vector.load %arg5[%c0_10, %c0_11] : memref<1x96xf32, #tpu.memory_space<vmem>>, vector<1x96xf32>
    %10 = vector.broadcast %9 : vector<1x96xf32> to vector<8x96xf32>
    %11 = arith.addf %8, %10 : vector<8x96xf32>
    %12 = vector.extract_strided_slice %11 {offsets = [0, 0], sizes = [8, 32], strides = [1, 1]} : vector<8x96xf32> to vector<8x32xf32>
    %13 = vector.extract_strided_slice %11 {offsets = [0, 32], sizes = [8, 32], strides = [1, 1]} : vector<8x96xf32> to vector<8x32xf32>
    %14 = vector.extract_strided_slice %11 {offsets = [0, 64], sizes = [8, 32], strides = [1, 1]} : vector<8x96xf32> to vector<8x32xf32>
    %cst_12 = arith.constant 0.000000e+00 : f32
    %15 = vector.broadcast %cst_12 : f32 to vector<8x32xf32>
    %16 = vector.extract_strided_slice %12 {offsets = [0, 0], sizes = [8, 8], strides = [1, 1]} : vector<8x32xf32> to vector<8x8xf32>
    %17 = arith.truncf %16 : vector<8x8xf32> to vector<8x8xbf16>
    %18 = vector.extract_strided_slice %13 {offsets = [0, 0], sizes = [8, 8], strides = [1, 1]} : vector<8x32xf32> to vector<8x8xf32>
    %19 = arith.truncf %18 : vector<8x8xf32> to vector<8x8xbf16>
    %20 = vector.extract_strided_slice %14 {offsets = [0, 0], sizes = [8, 8], strides = [1, 1]} : vector<8x32xf32> to vector<8x8xf32>
    %21 = arith.truncf %20 : vector<8x8xf32> to vector<8x8xbf16>
    %cst_13 = arith.constant dense<0.000000e+00> : vector<8x8xf32>
    %22 = tpu.matmul %17, %19, %cst_13 {dimension_numbers = #tpu.dot_dimension_numbers<[1], [1], [0], [0], [0, 0, 1, 0], [], []>} : vector<8x8xbf16>, vector<8x8xbf16>, vector<8x8xf32> -> vector<8x8xf32>
    %cst_14 = arith.constant 0.353553385 : f32
    %23 = vector.broadcast %cst_14 : f32 to vector<8x8xf32>
    %24 = arith.mulf %22, %23 : vector<8x8xf32>
    %cst_15 = arith.constant dense<0xFF800000> : vector<8xf32>
    %25 = vector.multi_reduction <maximumf>, %24, %cst_15 [1] : vector<8x8xf32> to vector<8xf32>
    %26 = vector.shape_cast %25 : vector<8xf32> to vector<8x1xf32>
    %27 = vector.broadcast %26 : vector<8x1xf32> to vector<8x8xf32>
    %28 = arith.subf %24, %27 : vector<8x8xf32>
    %29 = math.exp %28 : vector<8x8xf32>
    %cst_16 = arith.constant dense<0.000000e+00> : vector<8xf32>
    %30 = vector.multi_reduction <add>, %29, %cst_16 [1] : vector<8x8xf32> to vector<8xf32>
    %31 = vector.shape_cast %30 : vector<8xf32> to vector<8x1xf32>
    %32 = tpu.reciprocal %31 {approx = true} : vector<8x1xf32> -> vector<8x1xf32>
    %33 = vector.broadcast %32 : vector<8x1xf32> to vector<8x8xf32>
    %34 = arith.mulf %29, %33 : vector<8x8xf32>
    %35 = arith.truncf %34 : vector<8x8xf32> to vector<8x8xbf16>
    %cst_17 = arith.constant dense<0.000000e+00> : vector<8x8xf32>
    %36 = tpu.matmul %35, %21, %cst_17 {dimension_numbers = #tpu.dot_dimension_numbers<[1], [0], [0], [1], [0, 0, 1, 1], [], []>} : vector<8x8xbf16>, vector<8x8xbf16>, vector<8x8xf32> -> vector<8x8xf32>
    %37 = arith.truncf %36 : vector<8x8xf32> to vector<8x8xbf16>
    %c0_18 = arith.constant 0 : index
    %c0_19 = arith.constant 0 : index
    %c0_20 = arith.constant 0 : index
    %38 = vector.load %arg6[%c0_18, %c0_19, %c0_20] : memref<4x8x32xbf16, #tpu.memory_space<vmem>>, vector<1x8x32xbf16>
    %39 = vector.shape_cast %38 : vector<1x8x32xbf16> to vector<8x32xbf16>
    %cst_21 = arith.constant dense<0.000000e+00> : vector<8x32xf32>
    %40 = tpu.matmul %37, %39, %cst_21 {dimension_numbers = #tpu.dot_dimension_numbers<[1], [0], [0], [1], [0, 0, 1, 1], [], []>} : vector<8x8xbf16>, vector<8x32xbf16>, vector<8x32xf32> -> vector<8x32xf32>
    %41 = arith.addf %15, %40 : vector<8x32xf32>
    %42 = vector.extract_strided_slice %12 {offsets = [0, 8], sizes = [8, 8], strides = [1, 1]} : vector<8x32xf32> to vector<8x8xf32>
    %43 = arith.truncf %42 : vector<8x8xf32> to vector<8x8xbf16>
    %44 = vector.extract_strided_slice %13 {offsets = [0, 8], sizes = [8, 8], strides = [1, 1]} : vector<8x32xf32> to vector<8x8xf32>
    %45 = arith.truncf %44 : vector<8x8xf32> to vector<8x8xbf16>
    %46 = vector.extract_strided_slice %14 {offsets = [0, 8], sizes = [8, 8], strides = [1, 1]} : vector<8x32xf32> to vector<8x8xf32>
    %47 = arith.truncf %46 : vector<8x8xf32> to vector<8x8xbf16>
    %cst_22 = arith.constant dense<0.000000e+00> : vector<8x8xf32>
    %48 = tpu.matmul %43, %45, %cst_22 {dimension_numbers = #tpu.dot_dimension_numbers<[1], [1], [0], [0], [0, 0, 1, 0], [], []>} : vector<8x8xbf16>, vector<8x8xbf16>, vector<8x8xf32> -> vector<8x8xf32>
    %cst_23 = arith.constant 0.353553385 : f32
    %49 = vector.broadcast %cst_23 : f32 to vector<8x8xf32>
    %50 = arith.mulf %48, %49 : vector<8x8xf32>
    %cst_24 = arith.constant dense<0xFF800000> : vector<8xf32>
    %51 = vector.multi_reduction <maximumf>, %50, %cst_24 [1] : vector<8x8xf32> to vector<8xf32>
    %52 = vector.shape_cast %51 : vector<8xf32> to vector<8x1xf32>
    %53 = vector.broadcast %52 : vector<8x1xf32> to vector<8x8xf32>
    %54 = arith.subf %50, %53 : vector<8x8xf32>
    %55 = math.exp %54 : vector<8x8xf32>
    %cst_25 = arith.constant dense<0.000000e+00> : vector<8xf32>
    %56 = vector.multi_reduction <add>, %55, %cst_25 [1] : vector<8x8xf32> to vector<8xf32>
    %57 = vector.shape_cast %56 : vector<8xf32> to vector<8x1xf32>
    %58 = tpu.reciprocal %57 {approx = true} : vector<8x1xf32> -> vector<8x1xf32>
    %59 = vector.broadcast %58 : vector<8x1xf32> to vector<8x8xf32>
    %60 = arith.mulf %55, %59 : vector<8x8xf32>
    %61 = arith.truncf %60 : vector<8x8xf32> to vector<8x8xbf16>
    %cst_26 = arith.constant dense<0.000000e+00> : vector<8x8xf32>
    %62 = tpu.matmul %61, %47, %cst_26 {dimension_numbers = #tpu.dot_dimension_numbers<[1], [0], [0], [1], [0, 0, 1, 1], [], []>} : vector<8x8xbf16>, vector<8x8xbf16>, vector<8x8xf32> -> vector<8x8xf32>
    %63 = arith.truncf %62 : vector<8x8xf32> to vector<8x8xbf16>
    %c1 = arith.constant 1 : index
    %c0_27 = arith.constant 0 : index
    %c0_28 = arith.constant 0 : index
    %64 = vector.load %arg6[%c1, %c0_27, %c0_28] : memref<4x8x32xbf16, #tpu.memory_space<vmem>>, vector<1x8x32xbf16>
    %65 = vector.shape_cast %64 : vector<1x8x32xbf16> to vector<8x32xbf16>
    %cst_29 = arith.constant dense<0.000000e+00> : vector<8x32xf32>
    %66 = tpu.matmul %63, %65, %cst_29 {dimension_numbers = #tpu.dot_dimension_numbers<[1], [0], [0], [1], [0, 0, 1, 1], [], []>} : vector<8x8xbf16>, vector<8x32xbf16>, vector<8x32xf32> -> vector<8x32xf32>
    %67 = arith.addf %41, %66 : vector<8x32xf32>
    %68 = vector.extract_strided_slice %12 {offsets = [0, 16], sizes = [8, 8], strides = [1, 1]} : vector<8x32xf32> to vector<8x8xf32>
    %69 = arith.truncf %68 : vector<8x8xf32> to vector<8x8xbf16>
    %70 = vector.extract_strided_slice %13 {offsets = [0, 16], sizes = [8, 8], strides = [1, 1]} : vector<8x32xf32> to vector<8x8xf32>
    %71 = arith.truncf %70 : vector<8x8xf32> to vector<8x8xbf16>
    %72 = vector.extract_strided_slice %14 {offsets = [0, 16], sizes = [8, 8], strides = [1, 1]} : vector<8x32xf32> to vector<8x8xf32>
    %73 = arith.truncf %72 : vector<8x8xf32> to vector<8x8xbf16>
    %cst_30 = arith.constant dense<0.000000e+00> : vector<8x8xf32>
    %74 = tpu.matmul %69, %71, %cst_30 {dimension_numbers = #tpu.dot_dimension_numbers<[1], [1], [0], [0], [0, 0, 1, 0], [], []>} : vector<8x8xbf16>, vector<8x8xbf16>, vector<8x8xf32> -> vector<8x8xf32>
    %cst_31 = arith.constant 0.353553385 : f32
    %75 = vector.broadcast %cst_31 : f32 to vector<8x8xf32>
    %76 = arith.mulf %74, %75 : vector<8x8xf32>
    %cst_32 = arith.constant dense<0xFF800000> : vector<8xf32>
    %77 = vector.multi_reduction <maximumf>, %76, %cst_32 [1] : vector<8x8xf32> to vector<8xf32>
    %78 = vector.shape_cast %77 : vector<8xf32> to vector<8x1xf32>
    %79 = vector.broadcast %78 : vector<8x1xf32> to vector<8x8xf32>
    %80 = arith.subf %76, %79 : vector<8x8xf32>
    %81 = math.exp %80 : vector<8x8xf32>
    %cst_33 = arith.constant dense<0.000000e+00> : vector<8xf32>
    %82 = vector.multi_reduction <add>, %81, %cst_33 [1] : vector<8x8xf32> to vector<8xf32>
    %83 = vector.shape_cast %82 : vector<8xf32> to vector<8x1xf32>
    %84 = tpu.reciprocal %83 {approx = true} : vector<8x1xf32> -> vector<8x1xf32>
    %85 = vector.broadcast %84 : vector<8x1xf32> to vector<8x8xf32>
    %86 = arith.mulf %81, %85 : vector<8x8xf32>
    %87 = arith.truncf %86 : vector<8x8xf32> to vector<8x8xbf16>
    %cst_34 = arith.constant dense<0.000000e+00> : vector<8x8xf32>
    %88 = tpu.matmul %87, %73, %cst_34 {dimension_numbers = #tpu.dot_dimension_numbers<[1], [0], [0], [1], [0, 0, 1, 1], [], []>} : vector<8x8xbf16>, vector<8x8xbf16>, vector<8x8xf32> -> vector<8x8xf32>
    %89 = arith.truncf %88 : vector<8x8xf32> to vector<8x8xbf16>
    %c2 = arith.constant 2 : index
    %c0_35 = arith.constant 0 : index
    %c0_36 = arith.constant 0 : index
    %90 = vector.load %arg6[%c2, %c0_35, %c0_36] : memref<4x8x32xbf16, #tpu.memory_space<vmem>>, vector<1x8x32xbf16>
    %91 = vector.shape_cast %90 : vector<1x8x32xbf16> to vector<8x32xbf16>
    %cst_37 = arith.constant dense<0.000000e+00> : vector<8x32xf32>
    %92 = tpu.matmul %89, %91, %cst_37 {dimension_numbers = #tpu.dot_dimension_numbers<[1], [0], [0], [1], [0, 0, 1, 1], [], []>} : vector<8x8xbf16>, vector<8x32xbf16>, vector<8x32xf32> -> vector<8x32xf32>
    %93 = arith.addf %67, %92 : vector<8x32xf32>
    %94 = vector.extract_strided_slice %12 {offsets = [0, 24], sizes = [8, 8], strides = [1, 1]} : vector<8x32xf32> to vector<8x8xf32>
    %95 = arith.truncf %94 : vector<8x8xf32> to vector<8x8xbf16>
    %96 = vector.extract_strided_slice %13 {offsets = [0, 24], sizes = [8, 8], strides = [1, 1]} : vector<8x32xf32> to vector<8x8xf32>
    %97 = arith.truncf %96 : vector<8x8xf32> to vector<8x8xbf16>
    %98 = vector.extract_strided_slice %14 {offsets = [0, 24], sizes = [8, 8], strides = [1, 1]} : vector<8x32xf32> to vector<8x8xf32>
    %99 = arith.truncf %98 : vector<8x8xf32> to vector<8x8xbf16>
    %cst_38 = arith.constant dense<0.000000e+00> : vector<8x8xf32>
    %100 = tpu.matmul %95, %97, %cst_38 {dimension_numbers = #tpu.dot_dimension_numbers<[1], [1], [0], [0], [0, 0, 1, 0], [], []>} : vector<8x8xbf16>, vector<8x8xbf16>, vector<8x8xf32> -> vector<8x8xf32>
    %cst_39 = arith.constant 0.353553385 : f32
    %101 = vector.broadcast %cst_39 : f32 to vector<8x8xf32>
    %102 = arith.mulf %100, %101 : vector<8x8xf32>
    %cst_40 = arith.constant dense<0xFF800000> : vector<8xf32>
    %103 = vector.multi_reduction <maximumf>, %102, %cst_40 [1] : vector<8x8xf32> to vector<8xf32>
    %104 = vector.shape_cast %103 : vector<8xf32> to vector<8x1xf32>
    %105 = vector.broadcast %104 : vector<8x1xf32> to vector<8x8xf32>
    %106 = arith.subf %102, %105 : vector<8x8xf32>
    %107 = math.exp %106 : vector<8x8xf32>
    %cst_41 = arith.constant dense<0.000000e+00> : vector<8xf32>
    %108 = vector.multi_reduction <add>, %107, %cst_41 [1] : vector<8x8xf32> to vector<8xf32>
    %109 = vector.shape_cast %108 : vector<8xf32> to vector<8x1xf32>
    %110 = tpu.reciprocal %109 {approx = true} : vector<8x1xf32> -> vector<8x1xf32>
    %111 = vector.broadcast %110 : vector<8x1xf32> to vector<8x8xf32>
    %112 = arith.mulf %107, %111 : vector<8x8xf32>
    %113 = arith.truncf %112 : vector<8x8xf32> to vector<8x8xbf16>
    %cst_42 = arith.constant dense<0.000000e+00> : vector<8x8xf32>
    %114 = tpu.matmul %113, %99, %cst_42 {dimension_numbers = #tpu.dot_dimension_numbers<[1], [0], [0], [1], [0, 0, 1, 1], [], []>} : vector<8x8xbf16>, vector<8x8xbf16>, vector<8x8xf32> -> vector<8x8xf32>
    %115 = arith.truncf %114 : vector<8x8xf32> to vector<8x8xbf16>
    %c3 = arith.constant 3 : index
    %c0_43 = arith.constant 0 : index
    %c0_44 = arith.constant 0 : index
    %116 = vector.load %arg6[%c3, %c0_43, %c0_44] : memref<4x8x32xbf16, #tpu.memory_space<vmem>>, vector<1x8x32xbf16>
    %117 = vector.shape_cast %116 : vector<1x8x32xbf16> to vector<8x32xbf16>
    %cst_45 = arith.constant dense<0.000000e+00> : vector<8x32xf32>
    %118 = tpu.matmul %115, %117, %cst_45 {dimension_numbers = #tpu.dot_dimension_numbers<[1], [0], [0], [1], [0, 0, 1, 1], [], []>} : vector<8x8xbf16>, vector<8x32xbf16>, vector<8x32xf32> -> vector<8x32xf32>
    %119 = arith.addf %93, %118 : vector<8x32xf32>
    %c0_46 = arith.constant 0 : index
    %c0_47 = arith.constant 0 : index
    %120 = vector.load %arg7[%c0_46, %c0_47] : memref<1x32xf32, #tpu.memory_space<vmem>>, vector<1x32xf32>
    %121 = vector.broadcast %120 : vector<1x32xf32> to vector<8x32xf32>
    %122 = arith.addf %119, %121 : vector<8x32xf32>
    %123 = arith.addf %1, %122 : vector<8x32xf32>
    %cst_48 = arith.constant dense<0.000000e+00> : vector<8xf32>
    %124 = vector.multi_reduction <add>, %123, %cst_48 [1] : vector<8x32xf32> to vector<8xf32>
    %125 = vector.shape_cast %124 : vector<8xf32> to vector<8x1xf32>
    %cst_49 = arith.constant 3.200000e+01 : f32
    %126 = vector.broadcast %cst_49 : f32 to vector<8x1xf32>
    %127 = arith.divf %125, %126 : vector<8x1xf32>
    %128 = vector.broadcast %127 : vector<8x1xf32> to vector<8x32xf32>
    %129 = arith.subf %123, %128 : vector<8x32xf32>
    %130 = arith.mulf %129, %129 : vector<8x32xf32>
    %cst_50 = arith.constant dense<0.000000e+00> : vector<8xf32>
    %131 = vector.multi_reduction <add>, %130, %cst_50 [1] : vector<8x32xf32> to vector<8xf32>
    %132 = vector.shape_cast %131 : vector<8xf32> to vector<8x1xf32>
    %cst_51 = arith.constant 3.200000e+01 : f32
    %133 = vector.broadcast %cst_51 : f32 to vector<8x1xf32>
    %134 = arith.divf %132, %133 : vector<8x1xf32>
    %cst_52 = arith.constant 9.99999974E-6 : f32
    %135 = vector.broadcast %cst_52 : f32 to vector<8x1xf32>
    %136 = arith.addf %134, %135 : vector<8x1xf32>
    %137 = math.rsqrt %136 : vector<8x1xf32>
    %138 = vector.broadcast %137 : vector<8x1xf32> to vector<8x32xf32>
    %139 = arith.mulf %129, %138 : vector<8x32xf32>
    %c0_53 = arith.constant 0 : index
    %c0_54 = arith.constant 0 : index
    %140 = vector.load %arg8[%c0_53, %c0_54] : memref<1x32xf32, #tpu.memory_space<vmem>>, vector<1x32xf32>
    %141 = vector.broadcast %140 : vector<1x32xf32> to vector<8x32xf32>
    %142 = arith.mulf %139, %141 : vector<8x32xf32>
    %c0_55 = arith.constant 0 : index
    %c0_56 = arith.constant 0 : index
    %143 = vector.load %arg9[%c0_55, %c0_56] : memref<1x32xf32, #tpu.memory_space<vmem>>, vector<1x32xf32>
    %144 = vector.broadcast %143 : vector<1x32xf32> to vector<8x32xf32>
    %145 = arith.addf %142, %144 : vector<8x32xf32>
    %146 = arith.truncf %145 : vector<8x32xf32> to vector<8x32xbf16>
    %c0_57 = arith.constant 0 : index
    %c0_58 = arith.constant 0 : index
    %147 = vector.load %arg10[%c0_57, %c0_58] : memref<32x32xbf16, #tpu.memory_space<vmem>>, vector<32x32xbf16>
    %cst_59 = arith.constant dense<0.000000e+00> : vector<8x32xf32>
    %148 = tpu.matmul %146, %147, %cst_59 {dimension_numbers = #tpu.dot_dimension_numbers<[1], [0], [0], [1], [0, 0, 1, 1], [], []>} : vector<8x32xbf16>, vector<32x32xbf16>, vector<8x32xf32> -> vector<8x32xf32>
    %c0_60 = arith.constant 0 : index
    %c0_61 = arith.constant 0 : index
    %149 = vector.load %arg11[%c0_60, %c0_61] : memref<1x32xf32, #tpu.memory_space<vmem>>, vector<1x32xf32>
    %150 = vector.broadcast %149 : vector<1x32xf32> to vector<8x32xf32>
    %151 = arith.addf %148, %150 : vector<8x32xf32>
    %152 = arith.truncf %3 : vector<8x32xf32> to vector<8x32xbf16>
    %c0_62 = arith.constant 0 : index
    %c0_63 = arith.constant 0 : index
    %153 = vector.load %arg12[%c0_62, %c0_63] : memref<32x64xbf16, #tpu.memory_space<vmem>>, vector<32x64xbf16>
    %cst_64 = arith.constant dense<0.000000e+00> : vector<8x64xf32>
    %154 = tpu.matmul %152, %153, %cst_64 {dimension_numbers = #tpu.dot_dimension_numbers<[1], [0], [0], [1], [0, 0, 1, 1], [], []>} : vector<8x32xbf16>, vector<32x64xbf16>, vector<8x64xf32> -> vector<8x64xf32>
    %c0_65 = arith.constant 0 : index
    %c0_66 = arith.constant 0 : index
    %155 = vector.load %arg13[%c0_65, %c0_66] : memref<1x64xf32, #tpu.memory_space<vmem>>, vector<1x64xf32>
    %156 = vector.broadcast %155 : vector<1x64xf32> to vector<8x64xf32>
    %157 = arith.addf %154, %156 : vector<8x64xf32>
    %158 = vector.extract_strided_slice %157 {offsets = [0, 0], sizes = [8, 32], strides = [1, 1]} : vector<8x64xf32> to vector<8x32xf32>
    %159 = vector.extract_strided_slice %157 {offsets = [0, 32], sizes = [8, 32], strides = [1, 1]} : vector<8x64xf32> to vector<8x32xf32>
    %cst_67 = arith.constant 0.000000e+00 : f32
    %160 = vector.broadcast %cst_67 : f32 to vector<8x32xf32>
    %161 = vector.extract_strided_slice %151 {offsets = [0, 0], sizes = [8, 8], strides = [1, 1]} : vector<8x32xf32> to vector<8x8xf32>
    %162 = arith.truncf %161 : vector<8x8xf32> to vector<8x8xbf16>
    %163 = vector.extract_strided_slice %158 {offsets = [0, 0], sizes = [8, 8], strides = [1, 1]} : vector<8x32xf32> to vector<8x8xf32>
    %164 = arith.truncf %163 : vector<8x8xf32> to vector<8x8xbf16>
    %165 = vector.extract_strided_slice %159 {offsets = [0, 0], sizes = [8, 8], strides = [1, 1]} : vector<8x32xf32> to vector<8x8xf32>
    %166 = arith.truncf %165 : vector<8x8xf32> to vector<8x8xbf16>
    %cst_68 = arith.constant dense<0.000000e+00> : vector<8x8xf32>
    %167 = tpu.matmul %162, %164, %cst_68 {dimension_numbers = #tpu.dot_dimension_numbers<[1], [1], [0], [0], [0, 0, 1, 0], [], []>} : vector<8x8xbf16>, vector<8x8xbf16>, vector<8x8xf32> -> vector<8x8xf32>
    %cst_69 = arith.constant 0.353553385 : f32
    %168 = vector.broadcast %cst_69 : f32 to vector<8x8xf32>
    %169 = arith.mulf %167, %168 : vector<8x8xf32>
    %170 = vector.broadcast %5 : vector<1x8xf32> to vector<8x8xf32>
    %171 = arith.addf %169, %170 : vector<8x8xf32>
    %cst_70 = arith.constant dense<0xFF800000> : vector<8xf32>
    %172 = vector.multi_reduction <maximumf>, %171, %cst_70 [1] : vector<8x8xf32> to vector<8xf32>
    %173 = vector.shape_cast %172 : vector<8xf32> to vector<8x1xf32>
    %174 = vector.broadcast %173 : vector<8x1xf32> to vector<8x8xf32>
    %175 = arith.subf %171, %174 : vector<8x8xf32>
    %176 = math.exp %175 : vector<8x8xf32>
    %cst_71 = arith.constant dense<0.000000e+00> : vector<8xf32>
    %177 = vector.multi_reduction <add>, %176, %cst_71 [1] : vector<8x8xf32> to vector<8xf32>
    %178 = vector.shape_cast %177 : vector<8xf32> to vector<8x1xf32>
    %179 = tpu.reciprocal %178 {approx = true} : vector<8x1xf32> -> vector<8x1xf32>
    %180 = vector.broadcast %179 : vector<8x1xf32> to vector<8x8xf32>
    %181 = arith.mulf %176, %180 : vector<8x8xf32>
    %182 = arith.truncf %181 : vector<8x8xf32> to vector<8x8xbf16>
    %cst_72 = arith.constant dense<0.000000e+00> : vector<8x8xf32>
    %183 = tpu.matmul %182, %166, %cst_72 {dimension_numbers = #tpu.dot_dimension_numbers<[1], [0], [0], [1], [0, 0, 1, 1], [], []>} : vector<8x8xbf16>, vector<8x8xbf16>, vector<8x8xf32> -> vector<8x8xf32>
    %184 = arith.truncf %183 : vector<8x8xf32> to vector<8x8xbf16>
    %c0_73 = arith.constant 0 : index
    %c0_74 = arith.constant 0 : index
    %c0_75 = arith.constant 0 : index
    %185 = vector.load %arg14[%c0_73, %c0_74, %c0_75] : memref<4x8x32xbf16, #tpu.memory_space<vmem>>, vector<1x8x32xbf16>
    %186 = vector.shape_cast %185 : vector<1x8x32xbf16> to vector<8x32xbf16>
    %cst_76 = arith.constant dense<0.000000e+00> : vector<8x32xf32>
    %187 = tpu.matmul %184, %186, %cst_76 {dimension_numbers = #tpu.dot_dimension_numbers<[1], [0], [0], [1], [0, 0, 1, 1], [], []>} : vector<8x8xbf16>, vector<8x32xbf16>, vector<8x32xf32> -> vector<8x32xf32>
    %188 = arith.addf %160, %187 : vector<8x32xf32>
    %189 = vector.extract_strided_slice %151 {offsets = [0, 8], sizes = [8, 8], strides = [1, 1]} : vector<8x32xf32> to vector<8x8xf32>
    %190 = arith.truncf %189 : vector<8x8xf32> to vector<8x8xbf16>
    %191 = vector.extract_strided_slice %158 {offsets = [0, 8], sizes = [8, 8], strides = [1, 1]} : vector<8x32xf32> to vector<8x8xf32>
    %192 = arith.truncf %191 : vector<8x8xf32> to vector<8x8xbf16>
    %193 = vector.extract_strided_slice %159 {offsets = [0, 8], sizes = [8, 8], strides = [1, 1]} : vector<8x32xf32> to vector<8x8xf32>
    %194 = arith.truncf %193 : vector<8x8xf32> to vector<8x8xbf16>
    %cst_77 = arith.constant dense<0.000000e+00> : vector<8x8xf32>
    %195 = tpu.matmul %190, %192, %cst_77 {dimension_numbers = #tpu.dot_dimension_numbers<[1], [1], [0], [0], [0, 0, 1, 0], [], []>} : vector<8x8xbf16>, vector<8x8xbf16>, vector<8x8xf32> -> vector<8x8xf32>
    %cst_78 = arith.constant 0.353553385 : f32
    %196 = vector.broadcast %cst_78 : f32 to vector<8x8xf32>
    %197 = arith.mulf %195, %196 : vector<8x8xf32>
    %198 = vector.broadcast %5 : vector<1x8xf32> to vector<8x8xf32>
    %199 = arith.addf %197, %198 : vector<8x8xf32>
    %cst_79 = arith.constant dense<0xFF800000> : vector<8xf32>
    %200 = vector.multi_reduction <maximumf>, %199, %cst_79 [1] : vector<8x8xf32> to vector<8xf32>
    %201 = vector.shape_cast %200 : vector<8xf32> to vector<8x1xf32>
    %202 = vector.broadcast %201 : vector<8x1xf32> to vector<8x8xf32>
    %203 = arith.subf %199, %202 : vector<8x8xf32>
    %204 = math.exp %203 : vector<8x8xf32>
    %cst_80 = arith.constant dense<0.000000e+00> : vector<8xf32>
    %205 = vector.multi_reduction <add>, %204, %cst_80 [1] : vector<8x8xf32> to vector<8xf32>
    %206 = vector.shape_cast %205 : vector<8xf32> to vector<8x1xf32>
    %207 = tpu.reciprocal %206 {approx = true} : vector<8x1xf32> -> vector<8x1xf32>
    %208 = vector.broadcast %207 : vector<8x1xf32> to vector<8x8xf32>
    %209 = arith.mulf %204, %208 : vector<8x8xf32>
    %210 = arith.truncf %209 : vector<8x8xf32> to vector<8x8xbf16>
    %cst_81 = arith.constant dense<0.000000e+00> : vector<8x8xf32>
    %211 = tpu.matmul %210, %194, %cst_81 {dimension_numbers = #tpu.dot_dimension_numbers<[1], [0], [0], [1], [0, 0, 1, 1], [], []>} : vector<8x8xbf16>, vector<8x8xbf16>, vector<8x8xf32> -> vector<8x8xf32>
    %212 = arith.truncf %211 : vector<8x8xf32> to vector<8x8xbf16>
    %c1_82 = arith.constant 1 : index
    %c0_83 = arith.constant 0 : index
    %c0_84 = arith.constant 0 : index
    %213 = vector.load %arg14[%c1_82, %c0_83, %c0_84] : memref<4x8x32xbf16, #tpu.memory_space<vmem>>, vector<1x8x32xbf16>
    %214 = vector.shape_cast %213 : vector<1x8x32xbf16> to vector<8x32xbf16>
    %cst_85 = arith.constant dense<0.000000e+00> : vector<8x32xf32>
    %215 = tpu.matmul %212, %214, %cst_85 {dimension_numbers = #tpu.dot_dimension_numbers<[1], [0], [0], [1], [0, 0, 1, 1], [], []>} : vector<8x8xbf16>, vector<8x32xbf16>, vector<8x32xf32> -> vector<8x32xf32>
    %216 = arith.addf %188, %215 : vector<8x32xf32>
    %217 = vector.extract_strided_slice %151 {offsets = [0, 16], sizes = [8, 8], strides = [1, 1]} : vector<8x32xf32> to vector<8x8xf32>
    %218 = arith.truncf %217 : vector<8x8xf32> to vector<8x8xbf16>
    %219 = vector.extract_strided_slice %158 {offsets = [0, 16], sizes = [8, 8], strides = [1, 1]} : vector<8x32xf32> to vector<8x8xf32>
    %220 = arith.truncf %219 : vector<8x8xf32> to vector<8x8xbf16>
    %221 = vector.extract_strided_slice %159 {offsets = [0, 16], sizes = [8, 8], strides = [1, 1]} : vector<8x32xf32> to vector<8x8xf32>
    %222 = arith.truncf %221 : vector<8x8xf32> to vector<8x8xbf16>
    %cst_86 = arith.constant dense<0.000000e+00> : vector<8x8xf32>
    %223 = tpu.matmul %218, %220, %cst_86 {dimension_numbers = #tpu.dot_dimension_numbers<[1], [1], [0], [0], [0, 0, 1, 0], [], []>} : vector<8x8xbf16>, vector<8x8xbf16>, vector<8x8xf32> -> vector<8x8xf32>
    %cst_87 = arith.constant 0.353553385 : f32
    %224 = vector.broadcast %cst_87 : f32 to vector<8x8xf32>
    %225 = arith.mulf %223, %224 : vector<8x8xf32>
    %226 = vector.broadcast %5 : vector<1x8xf32> to vector<8x8xf32>
    %227 = arith.addf %225, %226 : vector<8x8xf32>
    %cst_88 = arith.constant dense<0xFF800000> : vector<8xf32>
    %228 = vector.multi_reduction <maximumf>, %227, %cst_88 [1] : vector<8x8xf32> to vector<8xf32>
    %229 = vector.shape_cast %228 : vector<8xf32> to vector<8x1xf32>
    %230 = vector.broadcast %229 : vector<8x1xf32> to vector<8x8xf32>
    %231 = arith.subf %227, %230 : vector<8x8xf32>
    %232 = math.exp %231 : vector<8x8xf32>
    %cst_89 = arith.constant dense<0.000000e+00> : vector<8xf32>
    %233 = vector.multi_reduction <add>, %232, %cst_89 [1] : vector<8x8xf32> to vector<8xf32>
    %234 = vector.shape_cast %233 : vector<8xf32> to vector<8x1xf32>
    %235 = tpu.reciprocal %234 {approx = true} : vector<8x1xf32> -> vector<8x1xf32>
    %236 = vector.broadcast %235 : vector<8x1xf32> to vector<8x8xf32>
    %237 = arith.mulf %232, %236 : vector<8x8xf32>
    %238 = arith.truncf %237 : vector<8x8xf32> to vector<8x8xbf16>
    %cst_90 = arith.constant dense<0.000000e+00> : vector<8x8xf32>
    %239 = tpu.matmul %238, %222, %cst_90 {dimension_numbers = #tpu.dot_dimension_numbers<[1], [0], [0], [1], [0, 0, 1, 1], [], []>} : vector<8x8xbf16>, vector<8x8xbf16>, vector<8x8xf32> -> vector<8x8xf32>
    %240 = arith.truncf %239 : vector<8x8xf32> to vector<8x8xbf16>
    %c2_91 = arith.constant 2 : index
    %c0_92 = arith.constant 0 : index
    %c0_93 = arith.constant 0 : index
    %241 = vector.load %arg14[%c2_91, %c0_92, %c0_93] : memref<4x8x32xbf16, #tpu.memory_space<vmem>>, vector<1x8x32xbf16>
    %242 = vector.shape_cast %241 : vector<1x8x32xbf16> to vector<8x32xbf16>
    %cst_94 = arith.constant dense<0.000000e+00> : vector<8x32xf32>
    %243 = tpu.matmul %240, %242, %cst_94 {dimension_numbers = #tpu.dot_dimension_numbers<[1], [0], [0], [1], [0, 0, 1, 1], [], []>} : vector<8x8xbf16>, vector<8x32xbf16>, vector<8x32xf32> -> vector<8x32xf32>
    %244 = arith.addf %216, %243 : vector<8x32xf32>
    %245 = vector.extract_strided_slice %151 {offsets = [0, 24], sizes = [8, 8], strides = [1, 1]} : vector<8x32xf32> to vector<8x8xf32>
    %246 = arith.truncf %245 : vector<8x8xf32> to vector<8x8xbf16>
    %247 = vector.extract_strided_slice %158 {offsets = [0, 24], sizes = [8, 8], strides = [1, 1]} : vector<8x32xf32> to vector<8x8xf32>
    %248 = arith.truncf %247 : vector<8x8xf32> to vector<8x8xbf16>
    %249 = vector.extract_strided_slice %159 {offsets = [0, 24], sizes = [8, 8], strides = [1, 1]} : vector<8x32xf32> to vector<8x8xf32>
    %250 = arith.truncf %249 : vector<8x8xf32> to vector<8x8xbf16>
    %cst_95 = arith.constant dense<0.000000e+00> : vector<8x8xf32>
    %251 = tpu.matmul %246, %248, %cst_95 {dimension_numbers = #tpu.dot_dimension_numbers<[1], [1], [0], [0], [0, 0, 1, 0], [], []>} : vector<8x8xbf16>, vector<8x8xbf16>, vector<8x8xf32> -> vector<8x8xf32>
    %cst_96 = arith.constant 0.353553385 : f32
    %252 = vector.broadcast %cst_96 : f32 to vector<8x8xf32>
    %253 = arith.mulf %251, %252 : vector<8x8xf32>
    %254 = vector.broadcast %5 : vector<1x8xf32> to vector<8x8xf32>
    %255 = arith.addf %253, %254 : vector<8x8xf32>
    %cst_97 = arith.constant dense<0xFF800000> : vector<8xf32>
    %256 = vector.multi_reduction <maximumf>, %255, %cst_97 [1] : vector<8x8xf32> to vector<8xf32>
    %257 = vector.shape_cast %256 : vector<8xf32> to vector<8x1xf32>
    %258 = vector.broadcast %257 : vector<8x1xf32> to vector<8x8xf32>
    %259 = arith.subf %255, %258 : vector<8x8xf32>
    %260 = math.exp %259 : vector<8x8xf32>
    %cst_98 = arith.constant dense<0.000000e+00> : vector<8xf32>
    %261 = vector.multi_reduction <add>, %260, %cst_98 [1] : vector<8x8xf32> to vector<8xf32>
    %262 = vector.shape_cast %261 : vector<8xf32> to vector<8x1xf32>
    %263 = tpu.reciprocal %262 {approx = true} : vector<8x1xf32> -> vector<8x1xf32>
    %264 = vector.broadcast %263 : vector<8x1xf32> to vector<8x8xf32>
    %265 = arith.mulf %260, %264 : vector<8x8xf32>
    %266 = arith.truncf %265 : vector<8x8xf32> to vector<8x8xbf16>
    %cst_99 = arith.constant dense<0.000000e+00> : vector<8x8xf32>
    %267 = tpu.matmul %266, %250, %cst_99 {dimension_numbers = #tpu.dot_dimension_numbers<[1], [0], [0], [1], [0, 0, 1, 1], [], []>} : vector<8x8xbf16>, vector<8x8xbf16>, vector<8x8xf32> -> vector<8x8xf32>
    %268 = arith.truncf %267 : vector<8x8xf32> to vector<8x8xbf16>
    %c3_100 = arith.constant 3 : index
    %c0_101 = arith.constant 0 : index
    %c0_102 = arith.constant 0 : index
    %269 = vector.load %arg14[%c3_100, %c0_101, %c0_102] : memref<4x8x32xbf16, #tpu.memory_space<vmem>>, vector<1x8x32xbf16>
    %270 = vector.shape_cast %269 : vector<1x8x32xbf16> to vector<8x32xbf16>
    %cst_103 = arith.constant dense<0.000000e+00> : vector<8x32xf32>
    %271 = tpu.matmul %268, %270, %cst_103 {dimension_numbers = #tpu.dot_dimension_numbers<[1], [0], [0], [1], [0, 0, 1, 1], [], []>} : vector<8x8xbf16>, vector<8x32xbf16>, vector<8x32xf32> -> vector<8x32xf32>
    %272 = arith.addf %244, %271 : vector<8x32xf32>
    %c0_104 = arith.constant 0 : index
    %c0_105 = arith.constant 0 : index
    %273 = vector.load %arg15[%c0_104, %c0_105] : memref<1x32xf32, #tpu.memory_space<vmem>>, vector<1x32xf32>
    %274 = vector.broadcast %273 : vector<1x32xf32> to vector<8x32xf32>
    %275 = arith.addf %272, %274 : vector<8x32xf32>
    %276 = arith.addf %145, %275 : vector<8x32xf32>
    %cst_106 = arith.constant dense<0.000000e+00> : vector<8xf32>
    %277 = vector.multi_reduction <add>, %276, %cst_106 [1] : vector<8x32xf32> to vector<8xf32>
    %278 = vector.shape_cast %277 : vector<8xf32> to vector<8x1xf32>
    %cst_107 = arith.constant 3.200000e+01 : f32
    %279 = vector.broadcast %cst_107 : f32 to vector<8x1xf32>
    %280 = arith.divf %278, %279 : vector<8x1xf32>
    %281 = vector.broadcast %280 : vector<8x1xf32> to vector<8x32xf32>
    %282 = arith.subf %276, %281 : vector<8x32xf32>
    %283 = arith.mulf %282, %282 : vector<8x32xf32>
    %cst_108 = arith.constant dense<0.000000e+00> : vector<8xf32>
    %284 = vector.multi_reduction <add>, %283, %cst_108 [1] : vector<8x32xf32> to vector<8xf32>
    %285 = vector.shape_cast %284 : vector<8xf32> to vector<8x1xf32>
    %cst_109 = arith.constant 3.200000e+01 : f32
    %286 = vector.broadcast %cst_109 : f32 to vector<8x1xf32>
    %287 = arith.divf %285, %286 : vector<8x1xf32>
    %cst_110 = arith.constant 9.99999974E-6 : f32
    %288 = vector.broadcast %cst_110 : f32 to vector<8x1xf32>
    %289 = arith.addf %287, %288 : vector<8x1xf32>
    %290 = math.rsqrt %289 : vector<8x1xf32>
    %291 = vector.broadcast %290 : vector<8x1xf32> to vector<8x32xf32>
    %292 = arith.mulf %282, %291 : vector<8x32xf32>
    %c0_111 = arith.constant 0 : index
    %c0_112 = arith.constant 0 : index
    %293 = vector.load %arg16[%c0_111, %c0_112] : memref<1x32xf32, #tpu.memory_space<vmem>>, vector<1x32xf32>
    %294 = vector.broadcast %293 : vector<1x32xf32> to vector<8x32xf32>
    %295 = arith.mulf %292, %294 : vector<8x32xf32>
    %c0_113 = arith.constant 0 : index
    %c0_114 = arith.constant 0 : index
    %296 = vector.load %arg17[%c0_113, %c0_114] : memref<1x32xf32, #tpu.memory_space<vmem>>, vector<1x32xf32>
    %297 = vector.broadcast %296 : vector<1x32xf32> to vector<8x32xf32>
    %298 = arith.addf %295, %297 : vector<8x32xf32>
    %299 = arith.truncf %298 : vector<8x32xf32> to vector<8x32xbf16>
    %c0_115 = arith.constant 0 : index
    %c0_116 = arith.constant 0 : index
    %300 = vector.load %arg18[%c0_115, %c0_116] : memref<32x32xbf16, #tpu.memory_space<vmem>>, vector<32x32xbf16>
    %cst_117 = arith.constant dense<0.000000e+00> : vector<8x32xf32>
    %301 = tpu.matmul %299, %300, %cst_117 {dimension_numbers = #tpu.dot_dimension_numbers<[1], [0], [0], [1], [0, 0, 1, 1], [], []>} : vector<8x32xbf16>, vector<32x32xbf16>, vector<8x32xf32> -> vector<8x32xf32>
    %c0_118 = arith.constant 0 : index
    %c0_119 = arith.constant 0 : index
    %302 = vector.load %arg19[%c0_118, %c0_119] : memref<1x32xf32, #tpu.memory_space<vmem>>, vector<1x32xf32>
    %303 = vector.broadcast %302 : vector<1x32xf32> to vector<8x32xf32>
    %304 = arith.addf %301, %303 : vector<8x32xf32>
    %cst_120 = arith.constant 0.000000e+00 : f32
    %305 = vector.broadcast %cst_120 : f32 to vector<8x32xf32>
    %306 = arith.maximumf %304, %305 : vector<8x32xf32>
    %307 = arith.truncf %306 : vector<8x32xf32> to vector<8x32xbf16>
    %c0_121 = arith.constant 0 : index
    %c0_122 = arith.constant 0 : index
    %308 = vector.load %arg20[%c0_121, %c0_122] : memref<32x32xbf16, #tpu.memory_space<vmem>>, vector<32x32xbf16>
    %cst_123 = arith.constant dense<0.000000e+00> : vector<8x32xf32>
    %309 = tpu.matmul %307, %308, %cst_123 {dimension_numbers = #tpu.dot_dimension_numbers<[1], [0], [0], [1], [0, 0, 1, 1], [], []>} : vector<8x32xbf16>, vector<32x32xbf16>, vector<8x32xf32> -> vector<8x32xf32>
    %c0_124 = arith.constant 0 : index
    %c0_125 = arith.constant 0 : index
    %310 = vector.load %arg21[%c0_124, %c0_125] : memref<1x32xf32, #tpu.memory_space<vmem>>, vector<1x32xf32>
    %311 = vector.broadcast %310 : vector<1x32xf32> to vector<8x32xf32>
    %312 = arith.addf %309, %311 : vector<8x32xf32>
    %313 = arith.addf %298, %312 : vector<8x32xf32>
    %cst_126 = arith.constant dense<0.000000e+00> : vector<8xf32>
    %314 = vector.multi_reduction <add>, %313, %cst_126 [1] : vector<8x32xf32> to vector<8xf32>
    %315 = vector.shape_cast %314 : vector<8xf32> to vector<8x1xf32>
    %cst_127 = arith.constant 3.200000e+01 : f32
    %316 = vector.broadcast %cst_127 : f32 to vector<8x1xf32>
    %317 = arith.divf %315, %316 : vector<8x1xf32>
    %318 = vector.broadcast %317 : vector<8x1xf32> to vector<8x32xf32>
    %319 = arith.subf %313, %318 : vector<8x32xf32>
    %320 = arith.mulf %319, %319 : vector<8x32xf32>
    %cst_128 = arith.constant dense<0.000000e+00> : vector<8xf32>
    %321 = vector.multi_reduction <add>, %320, %cst_128 [1] : vector<8x32xf32> to vector<8xf32>
    %322 = vector.shape_cast %321 : vector<8xf32> to vector<8x1xf32>
    %cst_129 = arith.constant 3.200000e+01 : f32
    %323 = vector.broadcast %cst_129 : f32 to vector<8x1xf32>
    %324 = arith.divf %322, %323 : vector<8x1xf32>
    %cst_130 = arith.constant 9.99999974E-6 : f32
    %325 = vector.broadcast %cst_130 : f32 to vector<8x1xf32>
    %326 = arith.addf %324, %325 : vector<8x1xf32>
    %327 = math.rsqrt %326 : vector<8x1xf32>
    %328 = vector.broadcast %327 : vector<8x1xf32> to vector<8x32xf32>
    %329 = arith.mulf %319, %328 : vector<8x32xf32>
    %c0_131 = arith.constant 0 : index
    %c0_132 = arith.constant 0 : index
    %330 = vector.load %arg22[%c0_131, %c0_132] : memref<1x32xf32, #tpu.memory_space<vmem>>, vector<1x32xf32>
    %331 = vector.broadcast %330 : vector<1x32xf32> to vector<8x32xf32>
    %332 = arith.mulf %329, %331 : vector<8x32xf32>
    %c0_133 = arith.constant 0 : index
    %c0_134 = arith.constant 0 : index
    %333 = vector.load %arg23[%c0_133, %c0_134] : memref<1x32xf32, #tpu.memory_space<vmem>>, vector<1x32xf32>
    %334 = vector.broadcast %333 : vector<1x32xf32> to vector<8x32xf32>
    %335 = arith.addf %332, %334 : vector<8x32xf32>
    %c0_135 = arith.constant 0 : index
    %c0_136 = arith.constant 0 : index
    %c0_137 = arith.constant 0 : index
    %336 = vector.load %arg24[%c0_135, %c0_136, %c0_137] : memref<1x8x32xf32, #tpu.memory_space<vmem>>, vector<1x8x32xf32>
    %337 = vector.shape_cast %336 : vector<1x8x32xf32> to vector<8x32xf32>
    %338 = vector.shape_cast %335 : vector<8x32xf32> to vector<1x8x32xf32>
    tpu.vector_store %arg24[%c0_135, %c0_136, %c0_137], %338 {strides = array<i32>} : memref<1x8x32xf32, #tpu.memory_space<vmem>>, vector<1x8x32xf32>,
    return
  }
  func.func @transform_0(%arg0: i32) -> (i32, i32, i32) {
    %c0_i32 = arith.constant 0 : i32
    %c0_i32_0 = arith.constant 0 : i32
    %c0_i32_1 = arith.constant 0 : i32
    return %arg0, %c0_i32, %c0_i32_0 : i32, i32, i32
  }
  func.func @transform_1(%arg0: i32) -> (i32, i32, i32) {
    %c0_i32 = arith.constant 0 : i32
    %c0_i32_0 = arith.constant 0 : i32
    %c0_i32_1 = arith.constant 0 : i32
    return %arg0, %c0_i32, %c0_i32_0 : i32, i32, i32
  }
  func.func @transform_2(%arg0: i32) -> (i32, i32, i32) {
    %c0_i32 = arith.constant 0 : i32
    %c0_i32_0 = arith.constant 0 : i32
    %c0_i32_1 = arith.constant 0 : i32
    return %arg0, %c0_i32, %c0_i32_0 : i32, i32, i32
  }
  func.func @transform_3(%arg0: i32) -> (i32, i32) {
    %c0_i32 = arith.constant 0 : i32
    %c0_i32_0 = arith.constant 0 : i32
    %c0_i32_1 = arith.constant 0 : i32
    return %c0_i32, %c0_i32_0 : i32, i32
  }
  func.func @transform_4(%arg0: i32) -> (i32, i32) {
    %c0_i32 = arith.constant 0 : i32
    %c0_i32_0 = arith.constant 0 : i32
    %c0_i32_1 = arith.constant 0 : i32
    return %c0_i32, %c0_i32_0 : i32, i32
  }
  func.func @transform_5(%arg0: i32) -> (i32, i32, i32) {
    %c0_i32 = arith.constant 0 : i32
    %c0_i32_0 = arith.constant 0 : i32
    %c0_i32_1 = arith.constant 0 : i32
    %c0_i32_2 = arith.constant 0 : i32
    return %c0_i32, %c0_i32_0, %c0_i32_1 : i32, i32, i32
  }
  func.func @transform_6(%arg0: i32) -> (i32, i32) {
    %c0_i32 = arith.constant 0 : i32
    %c0_i32_0 = arith.constant 0 : i32
    %c0_i32_1 = arith.constant 0 : i32
    return %c0_i32, %c0_i32_0 : i32, i32
  }
  func.func @transform_7(%arg0: i32) -> (i32, i32) {
    %c0_i32 = arith.constant 0 : i32
    %c0_i32_0 = arith.constant 0 : i32
    %c0_i32_1 = arith.constant 0 : i32
    return %c0_i32, %c0_i32_0 : i32, i32
  }
  func.func @transform_8(%arg0: i32) -> (i32, i32) {
    %c0_i32 = arith.constant 0 : i32
    %c0_i32_0 = arith.constant 0 : i32
    %c0_i32_1 = arith.constant 0 : i32
    return %c0_i32, %c0_i32_0 : i32, i32
  }
  func.func @transform_9(%arg0: i32) -> (i32, i32) {
    %c0_i32 = arith.constant 0 : i32
    %c0_i32_0 = arith.constant 0 : i32
    %c0_i32_1 = arith.constant 0 : i32
    return %c0_i32, %c0_i32_0 : i32, i32
  }
  func.func @transform_10(%arg0: i32) -> (i32, i32) {
    %c0_i32 = arith.constant 0 : i32
    %c0_i32_0 = arith.constant 0 : i32
    %c0_i32_1 = arith.constant 0 : i32
    return %c0_i32, %c0_i32_0 : i32, i32
  }
  func.func @transform_11(%arg0: i32) -> (i32, i32) {
    %c0_i32 = arith.constant 0 : i32
    %c0_i32_0 = arith.constant 0 : i32
    %c0_i32_1 = arith.constant 0 : i32
    return %c0_i32, %c0_i32_0 : i32, i32
  }
  func.func @transform_12(%arg0: i32) -> (i32, i32) {
    %c0_i32 = arith.constant 0 : i32
    %c0_i32_0 = arith.constant 0 : i32
    %c0_i32_1 = arith.constant 0 : i32
    return %c0_i32, %c0_i32_0 : i32, i32
  }
  func.func @transform_13(%arg0: i32) -> (i32, i32, i32) {
    %c0_i32 = arith.constant 0 : i32
    %c0_i32_0 = arith.constant 0 : i32
    %c0_i32_1 = arith.constant 0 : i32
    %c0_i32_2 = arith.constant 0 : i32
    return %c0_i32, %c0_i32_0, %c0_i32_1 : i32, i32, i32
  }
  func.func @transform_14(%arg0: i32) -> (i32, i32) {
    %c0_i32 = arith.constant 0 : i32
    %c0_i32_0 = arith.constant 0 : i32
    %c0_i32_1 = arith.constant 0 : i32
    return %c0_i32, %c0_i32_0 : i32, i32
  }
  func.func @transform_15(%arg0: i32) -> (i32, i32) {
    %c0_i32 = arith.constant 0 : i32
    %c0_i32_0 = arith.constant 0 : i32
    %c0_i32_1 = arith.constant 0 : i32
    return %c0_i32, %c0_i32_0 : i32, i32
  }
  func.func @transform_16(%arg0: i32) -> (i32, i32) {
    %c0_i32 = arith.constant 0 : i32
    %c0_i32_0 = arith.constant 0 : i32
    %c0_i32_1 = arith.constant 0 : i32
    return %c0_i32, %c0_i32_0 : i32, i32
  }
  func.func @transform_17(%arg0: i32) -> (i32, i32) {
    %c0_i32 = arith.constant 0 : i32
    %c0_i32_0 = arith.constant 0 : i32
    %c0_i32_1 = arith.constant 0 : i32
    return %c0_i32, %c0_i32_0 : i32, i32
  }
  func.func @transform_18(%arg0: i32) -> (i32, i32) {
    %c0_i32 = arith.constant 0 : i32
    %c0_i32_0 = arith.constant 0 : i32
    %c0_i32_1 = arith.constant 0 : i32
    return %c0_i32, %c0_i32_0 : i32, i32
  }
  func.func @transform_19(%arg0: i32) -> (i32, i32) {
    %c0_i32 = arith.constant 0 : i32
    %c0_i32_0 = arith.constant 0 : i32
    %c0_i32_1 = arith.constant 0 : i32
    return %c0_i32, %c0_i32_0 : i32, i32
  }
  func.func @transform_20(%arg0: i32) -> (i32, i32) {
    %c0_i32 = arith.constant 0 : i32
    %c0_i32_0 = arith.constant 0 : i32
    %c0_i32_1 = arith.constant 0 : i32
    return %c0_i32, %c0_i32_0 : i32, i32
  }
  func.func @transform_21(%arg0: i32) -> (i32, i32) {
    %c0_i32 = arith.constant 0 : i32
    %c0_i32_0 = arith.constant 0 : i32
    %c0_i32_1 = arith.constant 0 : i32
    return %c0_i32, %c0_i32_0 : i32, i32
  }
  func.func @transform_22(%arg0: i32) -> (i32, i32) {
    %c0_i32 = arith.constant 0 : i32
    %c0_i32_0 = arith.constant 0 : i32
    %c0_i32_1 = arith.constant 0 : i32
    return %c0_i32, %c0_i32_0 : i32, i32
  }
  func.func @transform_23(%arg0: i32) -> (i32, i32, i32) {
    %c0_i32 = arith.constant 0 : i32
    %c0_i32_0 = arith.constant 0 : i32
    %c0_i32_1 = arith.constant 0 : i32
    return %arg0, %c0_i32, %c0_i32_0 : i32, i32, i32
  }
}

module attributes {stable_mosaic.version = 11 : i64} {
  func.func @_decoder_layer_kernel(%arg0: i32, %arg1: memref<1x8x32xf32, #tpu.memory_space<vmem>>, %arg2: memref<1x8x32xf32, #tpu.memory_space<vmem>>, %arg3: memref<1x1x8xf32, #tpu.memory_space<vmem>>, %arg4: memref<32x96xbf16, #tpu.memory_space<vmem>>, %arg5: memref<1x96xf32, #tpu.memory_space<vmem>>, %arg6: memref<4x8x32xbf16, #tpu.memory_space<vmem>>, %arg7: memref<1x32xf32, #tpu.memory_space<vmem>>, %arg8: memref<1x32xf32, #tpu.memory_space<vmem>>, %arg9: memref<1x32xf32, #tpu.memory_space<vmem>>, %arg10: memref<32x32xbf16, #tpu.memory_space<vmem>>, %arg11: memref<1x32xf32, #tpu.memory_space<vmem>>, %arg12: memref<32x64xbf16, #tpu.memory_space<vmem>>, %arg13: memref<1x64xf32, #tpu.memory_space<vmem>>, %arg14: memref<4x8x32xbf16, #tpu.memory_space<vmem>>, %arg15: memref<1x32xf32, #tpu.memory_space<vmem>>, %arg16: memref<1x32xf32, #tpu.memory_space<vmem>>, %arg17: memref<1x32xf32, #tpu.memory_space<vmem>>, %arg18: memref<32x32xbf16, #tpu.memory_space<vmem>>, %arg19: memref<1x32xf32, #tpu.memory_space<vmem>>, %arg20: memref<32x32xbf16, #tpu.memory_space<vmem>>, %arg21: memref<1x32xf32, #tpu.memory_space<vmem>>, %arg22: memref<1x32xf32, #tpu.memory_space<vmem>>, %arg23: memref<1x32xf32, #tpu.memory_space<vmem>>, %arg24: memref<1x8x32xf32, #tpu.memory_space<vmem>>) attributes {dimension_semantics = [#tpu.dimension_semantics<parallel>], iteration_bounds = array<i64: 2>, scalar_prefetch = 0 : i64, scratch_operands = 0 : i64, tpu.core_type = #tpu.core_type<tc>, window_params = [{transform_indices = @transform_0, window_bounds = array<i64: 1, 8, 32>}, {transform_indices = @transform_1, window_bounds = array<i64: 1, 8, 32>}, {transform_indices = @transform_2, window_bounds = array<i64: 1, 1, 8>}, {pipeline_mode = #tpu.pipeline_mode<synchronous>, transform_indices = @transform_3, window_bounds = array<i64: 32, 96>}, {pipeline_mode = #tpu.pipeline_mode<synchronous>, transform_indices = @transform_4, window_bounds = array<i64: 1, 96>}, {pipeline_mode = #tpu.pipeline_mode<synchronous>, transform_indices = @transform_5, window_bounds = array<i64: 4, 8, 32>}, {pipeline_mode = #tpu.pipeline_mode<synchronous>, transform_indices = @transform_6, window_bounds = array<i64: 1, 32>}, {pipeline_mode = #tpu.pipeline_mode<synchronous>, transform_indices = @transform_7, window_bounds = array<i64: 1, 32>}, {pipeline_mode = #tpu.pipeline_mode<synchronous>, transform_indices = @transform_8, window_bounds = array<i64: 1, 32>}, {pipeline_mode = #tpu.pipeline_mode<synchronous>, transform_indices = @transform_9, window_bounds = array<i64: 32, 32>}, {pipeline_mode = #tpu.pipeline_mode<synchronous>, transform_indices = @transform_10, window_bounds = array<i64: 1, 32>}, {pipeline_mode = #tpu.pipeline_mode<synchronous>, transform_indices = @transform_11, window_bounds = array<i64: 32, 64>}, {pipeline_mode = #tpu.pipeline_mode<synchronous>, transform_indices = @transform_12, window_bounds = array<i64: 1, 64>}, {pipeline_mode = #tpu.pipeline_mode<synchronous>, transform_indices = @transform_13, window_bounds = array<i64: 4, 8, 32>}, {pipeline_mode = #tpu.pipeline_mode<synchronous>, transform_indices = @transform_14, window_bounds = array<i64: 1, 32>}, {pipeline_mode = #tpu.pipeline_mode<synchronous>, transform_indices = @transform_15, window_bounds = array<i64: 1, 32>}, {pipeline_mode = #tpu.pipeline_mode<synchronous>, transform_indices = @transform_16, window_bounds = array<i64: 1, 32>}, {pipeline_mode = #tpu.pipeline_mode<synchronous>, transform_indices = @transform_17, window_bounds = array<i64: 32, 32>}, {pipeline_mode = #tpu.pipeline_mode<synchronous>, transform_indices = @transform_18, window_bounds = array<i64: 1, 32>}, {pipeline_mode = #tpu.pipeline_mode<synchronous>, transform_indices = @transform_19, window_bounds = array<i64: 32, 32>}, {pipeline_mode = #tpu.pipeline_mode<synchronous>, transform_indices = @transform_20, window_bounds = array<i64: 1, 32>}, {pipeline_mode = #tpu.pipeline_mode<synchronous>, transform_indices = @transform_21, window_bounds = array<i64: 1, 32>}, {pipeline_mode = #tpu.pipeline_mode<synchronous>, transform_indices = @transform_22, window_bounds = array<i64: 1, 32>}, {transform_indices = @transform_23, window_bounds = array<i64: 1, 8, 32>}]} {
    %c0 = arith.constant 0 : index
    %c0_0 = arith.constant 0 : index
    %c0_1 = arith.constant 0 : index
    %0 = vector.load %arg1[%c0, %c0_0, %c0_1] : memref<1x8x32xf32, #tpu.memory_space<vmem>>, vector<1x8x32xf32>
    %1 = vector.shape_cast %0 : vector<1x8x32xf32> to vector<8x32xf32>
    %c0_2 = arith.constant 0 : index
    %c0_3 = arith.constant 0 : index
    %c0_4 = arith.constant 0 : index
    %2 = vector.load %arg2[%c0_2, %c0_3, %c0_4] : memref<1x8x32xf32, #tpu.memory_space<vmem>>, vector<1x8x32xf32>
    %3 = vector.shape_cast %2 : vector<1x8x32xf32> to vector<8x32xf32>
    %c0_5 = arith.constant 0 : index
    %c0_6 = arith.constant 0 : index
    %c0_7 = arith.constant 0 : index
    %4 = vector.load %arg3[%c0_5, %c0_6, %c0_7] : memref<1x1x8xf32, #tpu.memory_space<vmem>>, vector<1x1x8xf32>
    %5 = vector.shape_cast %4 : vector<1x1x8xf32> to vector<1x8xf32>
    %6 = arith.truncf %1 : vector<8x32xf32> to vector<8x32xbf16>
    %c0_8 = arith.constant 0 : index
    %c0_9 = arith.constant 0 : index
    %7 = vector.load %arg4[%c0_8, %c0_9] : memref<32x96xbf16, #tpu.memory_space<vmem>>, vector<32x96xbf16>
    %cst = arith.constant dense<0.000000e+00> : vector<8x96xf32>
    %8 = tpu.matmul %6, %7, %cst {dimension_numbers = #tpu.dot_dimension_numbers<[1], [0], [0], [1], [0, 0, 1, 1], [], []>} : vector<8x32xbf16>, vector<32x96xbf16>, vector<8x96xf32> -> vector<8x96xf32>
    %c0_10 = arith.constant 0 : index
    %c0_11 = arith.constant 0 : index
    %9 = vector.load %arg5[%c0_10, %c0_11] : memref<1x96xf32, #tpu.memory_space<vmem>>, vector<1x96xf32>
    %10 = vector.broadcast %9 : vector<1x96xf32> to vector<8x96xf32>
    %11 = arith.addf %8, %10 : vector<8x96xf32>
    %12 = vector.extract_strided_slice %11 {offsets = [0, 0], sizes = [8, 32], strides = [1, 1]} : vector<8x96xf32> to vector<8x32xf32>
    %13 = vector.extract_strided_slice %11 {offsets = [0, 32], sizes = [8, 32], strides = [1, 1]} : vector<8x96xf32> to vector<8x32xf32>
    %14 = vector.extract_strided_slice %11 {offsets = [0, 64], sizes = [8, 32], strides = [1, 1]} : vector<8x96xf32> to vector<8x32xf32>
    %cst_12 = arith.constant 0.000000e+00 : f32
    %15 = vector.broadcast %cst_12 : f32 to vector<8x32xf32>
    %16 = vector.extract_strided_slice %12 {offsets = [0, 0], sizes = [8, 8], strides = [1, 1]} : vector<8x32xf32> to vector<8x8xf32>
    %17 = arith.truncf %16 : vector<8x8xf32> to vector<8x8xbf16>
    %18 = vector.extract_strided_slice %13 {offsets = [0, 0], sizes = [8, 8], strides = [1, 1]} : vector<8x32xf32> to vector<8x8xf32>
    %19 = arith.truncf %18 : vector<8x8xf32> to vector<8x8xbf16>
    %20 = vector.extract_strided_slice %14 {offsets = [0, 0], sizes = [8, 8], strides = [1, 1]} : vector<8x32xf32> to vector<8x8xf32>
    %21 = arith.truncf %20 : vector<8x8xf32> to vector<8x8xbf16>
    %cst_13 = arith.constant dense<0.000000e+00> : vector<8x8xf32>
    %22 = tpu.matmul %17, %19, %cst_13 {dimension_numbers = #tpu.dot_dimension_numbers<[1], [1], [0], [0], [0, 0, 1, 0], [], []>} : vector<8x8xbf16>, vector<8x8xbf16>, vector<8x8xf32> -> vector<8x8xf32>
    %cst_14 = arith.constant 0.353553385 : f32
    %23 = vector.broadcast %cst_14 : f32 to vector<8x8xf32>
    %24 = arith.mulf %22, %23 : vector<8x8xf32>
    %cst_15 = arith.constant dense<0xFF800000> : vector<8xf32>
    %25 = vector.multi_reduction <maximumf>, %24, %cst_15 [1] : vector<8x8xf32> to vector<8xf32>
    %26 = vector.shape_cast %25 : vector<8xf32> to vector<8x1xf32>
    %27 = vector.broadcast %26 : vector<8x1xf32> to vector<8x8xf32>
    %28 = arith.subf %24, %27 : vector<8x8xf32>
    %29 = math.exp %28 : vector<8x8xf32>
    %cst_16 = arith.constant dense<0.000000e+00> : vector<8xf32>
    %30 = vector.multi_reduction <add>, %29, %cst_16 [1] : vector<8x8xf32> to vector<8xf32>
    %31 = vector.shape_cast %30 : vector<8xf32> to vector<8x1xf32>
    %32 = tpu.reciprocal %31 {approx = true} : vector<8x1xf32> -> vector<8x1xf32>
    %33 = vector.broadcast %32 : vector<8x1xf32> to vector<8x8xf32>
    %34 = arith.mulf %29, %33 : vector<8x8xf32>
    %35 = arith.truncf %34 : vector<8x8xf32> to vector<8x8xbf16>
    %cst_17 = arith.constant dense<0.000000e+00> : vector<8x8xf32>
    %36 = tpu.matmul %35, %21, %cst_17 {dimension_numbers = #tpu.dot_dimension_numbers<[1], [0], [0], [1], [0, 0, 1, 1], [], []>} : vector<8x8xbf16>, vector<8x8xbf16>, vector<8x8xf32> -> vector<8x8xf32>
    %37 = arith.truncf %36 : vector<8x8xf32> to vector<8x8xbf16>
    %c0_18 = arith.constant 0 : index
    %c0_19 = arith.constant 0 : index
    %c0_20 = arith.constant 0 : index
    %38 = vector.load %arg6[%c0_18, %c0_19, %c0_20] : memref<4x8x32xbf16, #tpu.memory_space<vmem>>, vector<1x8x32xbf16>
    %39 = vector.shape_cast %38 : vector<1x8x32xbf16> to vector<8x32xbf16>
    %cst_21 = arith.constant dense<0.000000e+00> : vector<8x32xf32>
    %40 = tpu.matmul %37, %39, %cst_21 {dimension_numbers = #tpu.dot_dimension_numbers<[1], [0], [0], [1], [0, 0, 1, 1], [], []>} : vector<8x8xbf16>, vector<8x32xbf16>, vector<8x32xf32> -> vector<8x32xf32>
    %41 = arith.addf %15, %40 : vector<8x32xf32>
    %42 = vector.extract_strided_slice %12 {offsets = [0, 8], sizes = [8, 8], strides = [1, 1]} : vector<8x32xf32> to vector<8x8xf32>
    %43 = arith.truncf %42 : vector<8x8xf32> to vector<8x8xbf16>
    %44 = vector.extract_strided_slice %13 {offsets = [0, 8], sizes = [8, 8], strides = [1, 1]} : vector<8x32xf32> to vector<8x8xf32>
    %45 = arith.truncf %44 : vector<8x8xf32> to vector<8x8xbf16>
    %46 = vector.extract_strided_slice %14 {offsets = [0, 8], sizes = [8, 8], strides = [1, 1]} : vector<8x32xf32> to vector<8x8xf32>
    %47 = arith.truncf %46 : vector<8x8xf32> to vector<8x8xbf16>
    %cst_22 = arith.constant dense<0.000000e+00> : vector<8x8xf32>
    %48 = tpu.matmul %43, %45, %cst_22 {dimension_numbers = #tpu.dot_dimension_numbers<[1], [1], [0], [0], [0, 0, 1, 0], [], []>} : vector<8x8xbf16>, vector<8x8xbf16>, vector<8x8xf32> -> vector<8x8xf32>
    %cst_23 = arith.constant 0.353553385 : f32
    %49 = vector.broadcast %cst_23 : f32 to vector<8x8xf32>
    %50 = arith.mulf %48, %49 : vector<8x8xf32>
    %cst_24 = arith.constant dense<0xFF800000> : vector<8xf32>
    %51 = vector.multi_reduction <maximumf>, %50, %cst_24 [1] : vector<8x8xf32> to vector<8xf32>
    %52 = vector.shape_cast %51 : vector<8xf32> to vector<8x1xf32>
    %53 = vector.broadcast %52 : vector<8x1xf32> to vector<8x8xf32>
    %54 = arith.subf %50, %53 : vector<8x8xf32>
    %55 = math.exp %54 : vector<8x8xf32>
    %cst_25 = arith.constant dense<0.000000e+00> : vector<8xf32>
    %56 = vector.multi_reduction <add>, %55, %cst_25 [1] : vector<8x8xf32> to vector<8xf32>
    %57 = vector.shape_cast %56 : vector<8xf32> to vector<8x1xf32>
    %58 = tpu.reciprocal %57 {approx = true} : vector<8x1xf32> -> vector<8x1xf32>
    %59 = vector.broadcast %58 : vector<8x1xf32> to vector<8x8xf32>
    %60 = arith.mulf %55, %59 : vector<8x8xf32>
    %61 = arith.truncf %60 : vector<8x8xf32> to vector<8x8xbf16>
    %cst_26 = arith.constant dense<0.000000e+00> : vector<8x8xf32>
    %62 = tpu.matmul %61, %47, %cst_26 {dimension_numbers = #tpu.dot_dimension_numbers<[1], [0], [0], [1], [0, 0, 1, 1], [], []>} : vector<8x8xbf16>, vector<8x8xbf16>, vector<8x8xf32> -> vector<8x8xf32>
    %63 = arith.truncf %62 : vector<8x8xf32> to vector<8x8xbf16>
    %c1 = arith.constant 1 : index
    %c0_27 = arith.constant 0 : index
    %c0_28 = arith.constant 0 : index
    %64 = vector.load %arg6[%c1, %c0_27, %c0_28] : memref<4x8x32xbf16, #tpu.memory_space<vmem>>, vector<1x8x32xbf16>
    %65 = vector.shape_cast %64 : vector<1x8x32xbf16> to vector<8x32xbf16>
    %cst_29 = arith.constant dense<0.000000e+00> : vector<8x32xf32>
    %66 = tpu.matmul %63, %65, %cst_29 {dimension_numbers = #tpu.dot_dimension_numbers<[1], [0], [0], [1], [0, 0, 1, 1], [], []>} : vector<8x8xbf16>, vector<8x32xbf16>, vector<8x32xf32> -> vector<8x32xf32>
    %67 = arith.addf %41, %66 : vector<8x32xf32>
    %68 = vector.extract_strided_slice %12 {offsets = [0, 16], sizes = [8, 8], strides = [1, 1]} : vector<8x32xf32> to vector<8x8xf32>
    %69 = arith.truncf %68 : vector<8x8xf32> to vector<8x8xbf16>
    %70 = vector.extract_strided_slice %13 {offsets = [0, 16], sizes = [8, 8], strides = [1, 1]} : vector<8x32xf32> to vector<8x8xf32>
    %71 = arith.truncf %70 : vector<8x8xf32> to vector<8x8xbf16>
    %72 = vector.extract_strided_slice %14 {offsets = [0, 16], sizes = [8, 8], strides = [1, 1]} : vector<8x32xf32> to vector<8x8xf32>
    %73 = arith.truncf %72 : vector<8x8xf32> to vector<8x8xbf16>
    %cst_30 = arith.constant dense<0.000000e+00> : vector<8x8xf32>
    %74 = tpu.matmul %69, %71, %cst_30 {dimension_numbers = #tpu.dot_dimension_numbers<[1], [1], [0], [0], [0, 0, 1, 0], [], []>} : vector<8x8xbf16>, vector<8x8xbf16>, vector<8x8xf32> -> vector<8x8xf32>
    %cst_31 = arith.constant 0.353553385 : f32
    %75 = vector.broadcast %cst_31 : f32 to vector<8x8xf32>
    %76 = arith.mulf %74, %75 : vector<8x8xf32>
    %cst_32 = arith.constant dense<0xFF800000> : vector<8xf32>
    %77 = vector.multi_reduction <maximumf>, %76, %cst_32 [1] : vector<8x8xf32> to vector<8xf32>
    %78 = vector.shape_cast %77 : vector<8xf32> to vector<8x1xf32>
    %79 = vector.broadcast %78 : vector<8x1xf32> to vector<8x8xf32>
    %80 = arith.subf %76, %79 : vector<8x8xf32>
    %81 = math.exp %80 : vector<8x8xf32>
    %cst_33 = arith.constant dense<0.000000e+00> : vector<8xf32>
    %82 = vector.multi_reduction <add>, %81, %cst_33 [1] : vector<8x8xf32> to vector<8xf32>
    %83 = vector.shape_cast %82 : vector<8xf32> to vector<8x1xf32>
    %84 = tpu.reciprocal %83 {approx = true} : vector<8x1xf32> -> vector<8x1xf32>
    %85 = vector.broadcast %84 : vector<8x1xf32> to vector<8x8xf32>
    %86 = arith.mulf %81, %85 : vector<8x8xf32>
    %87 = arith.truncf %86 : vector<8x8xf32> to vector<8x8xbf16>
    %cst_34 = arith.constant dense<0.000000e+00> : vector<8x8xf32>
    %88 = tpu.matmul %87, %73, %cst_34 {dimension_numbers = #tpu.dot_dimension_numbers<[1], [0], [0], [1], [0, 0, 1, 1], [], []>} : vector<8x8xbf16>, vector<8x8xbf16>, vector<8x8xf32> -> vector<8x8xf32>
    %89 = arith.truncf %88 : vector<8x8xf32> to vector<8x8xbf16>
    %c2 = arith.constant 2 : index
    %c0_35 = arith.constant 0 : index
    %c0_36 = arith.constant 0 : index
    %90 = vector.load %arg6[%c2, %c0_35, %c0_36] : memref<4x8x32xbf16, #tpu.memory_space<vmem>>, vector<1x8x32xbf16>
    %91 = vector.shape_cast %90 : vector<1x8x32xbf16> to vector<8x32xbf16>
    %cst_37 = arith.constant dense<0.000000e+00> : vector<8x32xf32>
    %92 = tpu.matmul %89, %91, %cst_37 {dimension_numbers = #tpu.dot_dimension_numbers<[1], [0], [0], [1], [0, 0, 1, 1], [], []>} : vector<8x8xbf16>, vector<8x32xbf16>, vector<8x32xf32> -> vector<8x32xf32>
    %93 = arith.addf %67, %92 : vector<8x32xf32>
    %94 = vector.extract_strided_slice %12 {offsets = [0, 24], sizes = [8, 8], strides = [1, 1]} : vector<8x32xf32> to vector<8x8xf32>
    %95 = arith.truncf %94 : vector<8x8xf32> to vector<8x8xbf16>
    %96 = vector.extract_strided_slice %13 {offsets = [0, 24], sizes = [8, 8], strides = [1, 1]} : vector<8x32xf32> to vector<8x8xf32>
    %97 = arith.truncf %96 : vector<8x8xf32> to vector<8x8xbf16>
    %98 = vector.extract_strided_slice %14 {offsets = [0, 24], sizes = [8, 8], strides = [1, 1]} : vector<8x32xf32> to vector<8x8xf32>
    %99 = arith.truncf %98 : vector<8x8xf32> to vector<8x8xbf16>
    %cst_38 = arith.constant dense<0.000000e+00> : vector<8x8xf32>
    %100 = tpu.matmul %95, %97, %cst_38 {dimension_numbers = #tpu.dot_dimension_numbers<[1], [1], [0], [0], [0, 0, 1, 0], [], []>} : vector<8x8xbf16>, vector<8x8xbf16>, vector<8x8xf32> -> vector<8x8xf32>
    %cst_39 = arith.constant 0.353553385 : f32
    %101 = vector.broadcast %cst_39 : f32 to vector<8x8xf32>
    %102 = arith.mulf %100, %101 : vector<8x8xf32>
    %cst_40 = arith.constant dense<0xFF800000> : vector<8xf32>
    %103 = vector.multi_reduction <maximumf>, %102, %cst_40 [1] : vector<8x8xf32> to vector<8xf32>
    %104 = vector.shape_cast %103 : vector<8xf32> to vector<8x1xf32>
    %105 = vector.broadcast %104 : vector<8x1xf32> to vector<8x8xf32>
    %106 = arith.subf %102, %105 : vector<8x8xf32>
    %107 = math.exp %106 : vector<8x8xf32>
    %cst_41 = arith.constant dense<0.000000e+00> : vector<8xf32>
    %108 = vector.multi_reduction <add>, %107, %cst_41 [1] : vector<8x8xf32> to vector<8xf32>
    %109 = vector.shape_cast %108 : vector<8xf32> to vector<8x1xf32>
    %110 = tpu.reciprocal %109 {approx = true} : vector<8x1xf32> -> vector<8x1xf32>
    %111 = vector.broadcast %110 : vector<8x1xf32> to vector<8x8xf32>
    %112 = arith.mulf %107, %111 : vector<8x8xf32>
    %113 = arith.truncf %112 : vector<8x8xf32> to vector<8x8xbf16>
    %cst_42 = arith.constant dense<0.000000e+00> : vector<8x8xf32>
    %114 = tpu.matmul %113, %99, %cst_42 {dimension_numbers = #tpu.dot_dimension_numbers<[1], [0], [0], [1], [0, 0, 1, 1], [], []>} : vector<8x8xbf16>, vector<8x8xbf16>, vector<8x8xf32> -> vector<8x8xf32>
    %115 = arith.truncf %114 : vector<8x8xf32> to vector<8x8xbf16>
    %c3 = arith.constant 3 : index
    %c0_43 = arith.constant 0 : index
    %c0_44 = arith.constant 0 : index
    %116 = vector.load %arg6[%c3, %c0_43, %c0_44] : memref<4x8x32xbf16, #tpu.memory_space<vmem>>, vector<1x8x32xbf16>
    %117 = vector.shape_cast %116 : vector<1x8x32xbf16> to vector<8x32xbf16>
    %cst_45 = arith.constant dense<0.000000e+00> : vector<8x32xf32>
    %118 = tpu.matmul %115, %117, %cst_45 {dimension_numbers = #tpu.dot_dimension_numbers<[1], [0], [0], [1], [0, 0, 1, 1], [], []>} : vector<8x8xbf16>, vector<8x32xbf16>, vector<8x32xf32> -> vector<8x32xf32>
    %119 = arith.addf %93, %118 : vector<8x32xf32>
    %c0_46 = arith.constant 0 : index
    %c0_47 = arith.constant 0 : index
    %120 = vector.load %arg7[%c0_46, %c0_47] : memref<1x32xf32, #tpu.memory_space<vmem>>, vector<1x32xf32>
    %121 = vector.broadcast %120 : vector<1x32xf32> to vector<8x32xf32>
    %122 = arith.addf %119, %121 : vector<8x32xf32>
    %123 = arith.addf %1, %122 : vector<8x32xf32>
    %cst_48 = arith.constant dense<0.000000e+00> : vector<8xf32>
    %124 = vector.multi_reduction <add>, %123, %cst_48 [1] : vector<8x32xf32> to vector<8xf32>
    %125 = vector.shape_cast %124 : vector<8xf32> to vector<8x1xf32>
    %cst_49 = arith.constant 3.200000e+01 : f32
    %126 = vector.broadcast %cst_49 : f32 to vector<8x1xf32>
    %127 = arith.divf %125, %126 : vector<8x1xf32>
    %128 = vector.broadcast %127 : vector<8x1xf32> to vector<8x32xf32>
    %129 = arith.subf %123, %128 : vector<8x32xf32>
    %130 = arith.mulf %129, %129 : vector<8x32xf32>
    %cst_50 = arith.constant dense<0.000000e+00> : vector<8xf32>
    %131 = vector.multi_reduction <add>, %130, %cst_50 [1] : vector<8x32xf32> to vector<8xf32>
    %132 = vector.shape_cast %131 : vector<8xf32> to vector<8x1xf32>
    %cst_51 = arith.constant 3.200000e+01 : f32
    %133 = vector.broadcast %cst_51 : f32 to vector<8x1xf32>
    %134 = arith.divf %132, %133 : vector<8x1xf32>
    %cst_52 = arith.constant 9.99999974E-6 : f32
    %135 = vector.broadcast %cst_52 : f32 to vector<8x1xf32>
    %136 = arith.addf %134, %135 : vector<8x1xf32>
    %137 = math.rsqrt %136 : vector<8x1xf32>
    %138 = vector.broadcast %137 : vector<8x1xf32> to vector<8x32xf32>
    %139 = arith.mulf %129, %138 : vector<8x32xf32>
    %c0_53 = arith.constant 0 : index
    %c0_54 = arith.constant 0 : index
    %140 = vector.load %arg8[%c0_53, %c0_54] : memref<1x32xf32, #tpu.memory_space<vmem>>, vector<1x32xf32>
    %141 = vector.broadcast %140 : vector<1x32xf32> to vector<8x32xf32>
    %142 = arith.mulf %139, %141 : vector<8x32xf32>
    %c0_55 = arith.constant 0 : index
    %c0_56 = arith.constant 0 : index
    %143 = vector.load %arg9[%c0_55, %c0_56] : memref<1x32xf32, #tpu.memory_space<vmem>>, vector<1x32xf32>
    %144 = vector.broadcast %143 : vector<1x32xf32> to vector<8x32xf32>
    %145 = arith.addf %142, %144 : vector<8x32xf32>
    %146 = arith.truncf %145 : vector<8x32xf32> to vector<8x32xbf16>
    %c0_57 = arith.constant 0 : index
    %c0_58 = arith.constant 0 : index
    %147 = vector.load %arg10[%c0_57, %c0_58] : memref<32x32xbf16, #tpu.memory_space<vmem>>, vector<32x32xbf16>
    %cst_59 = arith.constant dense<0.000000e+00> : vector<8x32xf32>
    %148 = tpu.matmul %146, %147, %cst_59 {dimension_numbers = #tpu.dot_dimension_numbers<[1], [0], [0], [1], [0, 0, 1, 1], [], []>} : vector<8x32xbf16>, vector<32x32xbf16>, vector<8x32xf32> -> vector<8x32xf32>
    %c0_60 = arith.constant 0 : index
    %c0_61 = arith.constant 0 : index
    %149 = vector.load %arg11[%c0_60, %c0_61] : memref<1x32xf32, #tpu.memory_space<vmem>>, vector<1x32xf32>
    %150 = vector.broadcast %149 : vector<1x32xf32> to vector<8x32xf32>
    %151 = arith.addf %148, %150 : vector<8x32xf32>
    %152 = arith.truncf %3 : vector<8x32xf32> to vector<8x32xbf16>
    %c0_62 = arith.constant 0 : index
    %c0_63 = arith.constant 0 : index
    %153 = vector.load %arg12[%c0_62, %c0_63] : memref<32x64xbf16, #tpu.memory_space<vmem>>, vector<32x64xbf16>
    %cst_64 = arith.constant dense<0.000000e+00> : vector<8x64xf32>
    %154 = tpu.matmul %152, %153, %cst_64 {dimension_numbers = #tpu.dot_dimension_numbers<[1], [0], [0], [1], [0, 0, 1, 1], [], []>} : vector<8x32xbf16>, vector<32x64xbf16>, vector<8x64xf32> -> vector<8x64xf32>
    %c0_65 = arith.constant 0 : index
    %c0_66 = arith.constant 0 : index
    %155 = vector.load %arg13[%c0_65, %c0_66] : memref<1x64xf32, #tpu.memory_space<vmem>>, vector<1x64xf32>
    %156 = vector.broadcast %155 : vector<1x64xf32> to vector<8x64xf32>
    %157 = arith.addf %154, %156 : vector<8x64xf32>
    %158 = vector.extract_strided_slice %157 {offsets = [0, 0], sizes = [8, 32], strides = [1, 1]} : vector<8x64xf32> to vector<8x32xf32>
    %159 = vector.extract_strided_slice %157 {offsets = [0, 32], sizes = [8, 32], strides = [1, 1]} : vector<8x64xf32> to vector<8x32xf32>
    %cst_67 = arith.constant 0.000000e+00 : f32
    %160 = vector.broadcast %cst_67 : f32 to vector<8x32xf32>
    %161 = vector.extract_strided_slice %151 {offsets = [0, 0], sizes = [8, 8], strides = [1, 1]} : vector<8x32xf32> to vector<8x8xf32>
    %162 = arith.truncf %161 : vector<8x8xf32> to vector<8x8xbf16>
    %163 = vector.extract_strided_slice %158 {offsets = [0, 0], sizes = [8, 8], strides = [1, 1]} : vector<8x32xf32> to vector<8x8xf32>
    %164 = arith.truncf %163 : vector<8x8xf32> to vector<8x8xbf16>
    %165 = vector.extract_strided_slice %159 {offsets = [0, 0], sizes = [8, 8], strides = [1, 1]} : vector<8x32xf32> to vector<8x8xf32>
    %166 = arith.truncf %165 : vector<8x8xf32> to vector<8x8xbf16>
    %cst_68 = arith.constant dense<0.000000e+00> : vector<8x8xf32>
    %167 = tpu.matmul %162, %164, %cst_68 {dimension_numbers = #tpu.dot_dimension_numbers<[1], [1], [0], [0], [0, 0, 1, 0], [], []>} : vector<8x8xbf16>, vector<8x8xbf16>, vector<8x8xf32> -> vector<8x8xf32>
    %cst_69 = arith.constant 0.353553385 : f32
    %168 = vector.broadcast %cst_69 : f32 to vector<8x8xf32>
    %169 = arith.mulf %167, %168 : vector<8x8xf32>
    %170 = vector.broadcast %5 : vector<1x8xf32> to vector<8x8xf32>
    %171 = arith.addf %169, %170 : vector<8x8xf32>
    %cst_70 = arith.constant dense<0xFF800000> : vector<8xf32>
    %172 = vector.multi_reduction <maximumf>, %171, %cst_70 [1] : vector<8x8xf32> to vector<8xf32>
    %173 = vector.shape_cast %172 : vector<8xf32> to vector<8x1xf32>
    %174 = vector.broadcast %173 : vector<8x1xf32> to vector<8x8xf32>
    %175 = arith.subf %171, %174 : vector<8x8xf32>
    %176 = math.exp %175 : vector<8x8xf32>
    %cst_71 = arith.constant dense<0.000000e+00> : vector<8xf32>
    %177 = vector.multi_reduction <add>, %176, %cst_71 [1] : vector<8x8xf32> to vector<8xf32>
    %178 = vector.shape_cast %177 : vector<8xf32> to vector<8x1xf32>
    %179 = tpu.reciprocal %178 {approx = true} : vector<8x1xf32> -> vector<8x1xf32>
    %180 = vector.broadcast %179 : vector<8x1xf32> to vector<8x8xf32>
    %181 = arith.mulf %176, %180 : vector<8x8xf32>
    %182 = arith.truncf %181 : vector<8x8xf32> to vector<8x8xbf16>
    %cst_72 = arith.constant dense<0.000000e+00> : vector<8x8xf32>
    %183 = tpu.matmul %182, %166, %cst_72 {dimension_numbers = #tpu.dot_dimension_numbers<[1], [0], [0], [1], [0, 0, 1, 1], [], []>} : vector<8x8xbf16>, vector<8x8xbf16>, vector<8x8xf32> -> vector<8x8xf32>
    %184 = arith.truncf %183 : vector<8x8xf32> to vector<8x8xbf16>
    %c0_73 = arith.constant 0 : index
    %c0_74 = arith.constant 0 : index
    %c0_75 = arith.constant 0 : index
    %185 = vector.load %arg14[%c0_73, %c0_74, %c0_75] : memref<4x8x32xbf16, #tpu.memory_space<vmem>>, vector<1x8x32xbf16>
    %186 = vector.shape_cast %185 : vector<1x8x32xbf16> to vector<8x32xbf16>
    %cst_76 = arith.constant dense<0.000000e+00> : vector<8x32xf32>
    %187 = tpu.matmul %184, %186, %cst_76 {dimension_numbers = #tpu.dot_dimension_numbers<[1], [0], [0], [1], [0, 0, 1, 1], [], []>} : vector<8x8xbf16>, vector<8x32xbf16>, vector<8x32xf32> -> vector<8x32xf32>
    %188 = arith.addf %160, %187 : vector<8x32xf32>
    %189 = vector.extract_strided_slice %151 {offsets = [0, 8], sizes = [8, 8], strides = [1, 1]} : vector<8x32xf32> to vector<8x8xf32>
    %190 = arith.truncf %189 : vector<8x8xf32> to vector<8x8xbf16>
    %191 = vector.extract_strided_slice %158 {offsets = [0, 8], sizes = [8, 8], strides = [1, 1]} : vector<8x32xf32> to vector<8x8xf32>
    %192 = arith.truncf %191 : vector<8x8xf32> to vector<8x8xbf16>
    %193 = vector.extract_strided_slice %159 {offsets = [0, 8], sizes = [8, 8], strides = [1, 1]} : vector<8x32xf32> to vector<8x8xf32>
    %194 = arith.truncf %193 : vector<8x8xf32> to vector<8x8xbf16>
    %cst_77 = arith.constant dense<0.000000e+00> : vector<8x8xf32>
    %195 = tpu.matmul %190, %192, %cst_77 {dimension_numbers = #tpu.dot_dimension_numbers<[1], [1], [0], [0], [0, 0, 1, 0], [], []>} : vector<8x8xbf16>, vector<8x8xbf16>, vector<8x8xf32> -> vector<8x8xf32>
    %cst_78 = arith.constant 0.353553385 : f32
    %196 = vector.broadcast %cst_78 : f32 to vector<8x8xf32>
    %197 = arith.mulf %195, %196 : vector<8x8xf32>
    %198 = vector.broadcast %5 : vector<1x8xf32> to vector<8x8xf32>
    %199 = arith.addf %197, %198 : vector<8x8xf32>
    %cst_79 = arith.constant dense<0xFF800000> : vector<8xf32>
    %200 = vector.multi_reduction <maximumf>, %199, %cst_79 [1] : vector<8x8xf32> to vector<8xf32>
    %201 = vector.shape_cast %200 : vector<8xf32> to vector<8x1xf32>
    %202 = vector.broadcast %201 : vector<8x1xf32> to vector<8x8xf32>
    %203 = arith.subf %199, %202 : vector<8x8xf32>
    %204 = math.exp %203 : vector<8x8xf32>
    %cst_80 = arith.constant dense<0.000000e+00> : vector<8xf32>
    %205 = vector.multi_reduction <add>, %204, %cst_80 [1] : vector<8x8xf32> to vector<8xf32>
    %206 = vector.shape_cast %205 : vector<8xf32> to vector<8x1xf32>
    %207 = tpu.reciprocal %206 {approx = true} : vector<8x1xf32> -> vector<8x1xf32>
    %208 = vector.broadcast %207 : vector<8x1xf32> to vector<8x8xf32>
    %209 = arith.mulf %204, %208 : vector<8x8xf32>
    %210 = arith.truncf %209 : vector<8x8xf32> to vector<8x8xbf16>
    %cst_81 = arith.constant dense<0.000000e+00> : vector<8x8xf32>
    %211 = tpu.matmul %210, %194, %cst_81 {dimension_numbers = #tpu.dot_dimension_numbers<[1], [0], [0], [1], [0, 0, 1, 1], [], []>} : vector<8x8xbf16>, vector<8x8xbf16>, vector<8x8xf32> -> vector<8x8xf32>
    %212 = arith.truncf %211 : vector<8x8xf32> to vector<8x8xbf16>
    %c1_82 = arith.constant 1 : index
    %c0_83 = arith.constant 0 : index
    %c0_84 = arith.constant 0 : index
    %213 = vector.load %arg14[%c1_82, %c0_83, %c0_84] : memref<4x8x32xbf16, #tpu.memory_space<vmem>>, vector<1x8x32xbf16>
    %214 = vector.shape_cast %213 : vector<1x8x32xbf16> to vector<8x32xbf16>
    %cst_85 = arith.constant dense<0.000000e+00> : vector<8x32xf32>
    %215 = tpu.matmul %212, %214, %cst_85 {dimension_numbers = #tpu.dot_dimension_numbers<[1], [0], [0], [1], [0, 0, 1, 1], [], []>} : vector<8x8xbf16>, vector<8x32xbf16>, vector<8x32xf32> -> vector<8x32xf32>
    %216 = arith.addf %188, %215 : vector<8x32xf32>
    %217 = vector.extract_strided_slice %151 {offsets = [0, 16], sizes = [8, 8], strides = [1, 1]} : vector<8x32xf32> to vector<8x8xf32>
    %218 = arith.truncf %217 : vector<8x8xf32> to vector<8x8xbf16>
    %219 = vector.extract_strided_slice %158 {offsets = [0, 16], sizes = [8, 8], strides = [1, 1]} : vector<8x32xf32> to vector<8x8xf32>
    %220 = arith.truncf %219 : vector<8x8xf32> to vector<8x8xbf16>
    %221 = vector.extract_strided_slice %159 {offsets = [0, 16], sizes = [8, 8], strides = [1, 1]} : vector<8x32xf32> to vector<8x8xf32>
    %222 = arith.truncf %221 : vector<8x8xf32> to vector<8x8xbf16>
    %cst_86 = arith.constant dense<0.000000e+00> : vector<8x8xf32>
    %223 = tpu.matmul %218, %220, %cst_86 {dimension_numbers = #tpu.dot_dimension_numbers<[1], [1], [0], [0], [0, 0, 1, 0], [], []>} : vector<8x8xbf16>, vector<8x8xbf16>, vector<8x8xf32> -> vector<8x8xf32>
    %cst_87 = arith.constant 0.353553385 : f32
    %224 = vector.broadcast %cst_87 : f32 to vector<8x8xf32>
    %225 = arith.mulf %223, %224 : vector<8x8xf32>
    %226 = vector.broadcast %5 : vector<1x8xf32> to vector<8x8xf32>
    %227 = arith.addf %225, %226 : vector<8x8xf32>
    %cst_88 = arith.constant dense<0xFF800000> : vector<8xf32>
    %228 = vector.multi_reduction <maximumf>, %227, %cst_88 [1] : vector<8x8xf32> to vector<8xf32>
    %229 = vector.shape_cast %228 : vector<8xf32> to vector<8x1xf32>
    %230 = vector.broadcast %229 : vector<8x1xf32> to vector<8x8xf32>
    %231 = arith.subf %227, %230 : vector<8x8xf32>
    %232 = math.exp %231 : vector<8x8xf32>
    %cst_89 = arith.constant dense<0.000000e+00> : vector<8xf32>
    %233 = vector.multi_reduction <add>, %232, %cst_89 [1] : vector<8x8xf32> to vector<8xf32>
    %234 = vector.shape_cast %233 : vector<8xf32> to vector<8x1xf32>
    %235 = tpu.reciprocal %234 {approx = true} : vector<8x1xf32> -> vector<8x1xf32>
    %236 = vector.broadcast %235 : vector<8x1xf32> to vector<8x8xf32>
    %237 = arith.mulf %232, %236 : vector<8x8xf32>
    %238 = arith.truncf %237 : vector<8x8xf32> to vector<8x8xbf16>
    %cst_90 = arith.constant dense<0.000000e+00> : vector<8x8xf32>
    %239 = tpu.matmul %238, %222, %cst_90 {dimension_numbers = #tpu.dot_dimension_numbers<[1], [0], [0], [1], [0, 0, 1, 1], [], []>} : vector<8x8xbf16>, vector<8x8xbf16>, vector<8x8xf32> -> vector<8x8xf32>
    %240 = arith.truncf %239 : vector<8x8xf32> to vector<8x8xbf16>
    %c2_91 = arith.constant 2 : index
    %c0_92 = arith.constant 0 : index
    %c0_93 = arith.constant 0 : index
    %241 = vector.load %arg14[%c2_91, %c0_92, %c0_93] : memref<4x8x32xbf16, #tpu.memory_space<vmem>>, vector<1x8x32xbf16>
    %242 = vector.shape_cast %241 : vector<1x8x32xbf16> to vector<8x32xbf16>
    %cst_94 = arith.constant dense<0.000000e+00> : vector<8x32xf32>
    %243 = tpu.matmul %240, %242, %cst_94 {dimension_numbers = #tpu.dot_dimension_numbers<[1], [0], [0], [1], [0, 0, 1, 1], [], []>} : vector<8x8xbf16>, vector<8x32xbf16>, vector<8x32xf32> -> vector<8x32xf32>
    %244 = arith.addf %216, %243 : vector<8x32xf32>
    %245 = vector.extract_strided_slice %151 {offsets = [0, 24], sizes = [8, 8], strides = [1, 1]} : vector<8x32xf32> to vector<8x8xf32>
    %246 = arith.truncf %245 : vector<8x8xf32> to vector<8x8xbf16>
    %247 = vector.extract_strided_slice %158 {offsets = [0, 24], sizes = [8, 8], strides = [1, 1]} : vector<8x32xf32> to vector<8x8xf32>
    %248 = arith.truncf %247 : vector<8x8xf32> to vector<8x8xbf16>
    %249 = vector.extract_strided_slice %159 {offsets = [0, 24], sizes = [8, 8], strides = [1, 1]} : vector<8x32xf32> to vector<8x8xf32>
    %250 = arith.truncf %249 : vector<8x8xf32> to vector<8x8xbf16>
    %cst_95 = arith.constant dense<0.000000e+00> : vector<8x8xf32>
    %251 = tpu.matmul %246, %248, %cst_95 {dimension_numbers = #tpu.dot_dimension_numbers<[1], [1], [0], [0], [0, 0, 1, 0], [], []>} : vector<8x8xbf16>, vector<8x8xbf16>, vector<8x8xf32> -> vector<8x8xf32>
    %cst_96 = arith.constant 0.353553385 : f32
    %252 = vector.broadcast %cst_96 : f32 to vector<8x8xf32>
    %253 = arith.mulf %251, %252 : vector<8x8xf32>
    %254 = vector.broadcast %5 : vector<1x8xf32> to vector<8x8xf32>
    %255 = arith.addf %253, %254 : vector<8x8xf32>
    %cst_97 = arith.constant dense<0xFF800000> : vector<8xf32>
    %256 = vector.multi_reduction <maximumf>, %255, %cst_97 [1] : vector<8x8xf32> to vector<8xf32>
    %257 = vector.shape_cast %256 : vector<8xf32> to vector<8x1xf32>
    %258 = vector.broadcast %257 : vector<8x1xf32> to vector<8x8xf32>
    %259 = arith.subf %255, %258 : vector<8x8xf32>
    %260 = math.exp %259 : vector<8x8xf32>
    %cst_98 = arith.constant dense<0.000000e+00> : vector<8xf32>
    %261 = vector.multi_reduction <add>, %260, %cst_98 [1] : vector<8x8xf32> to vector<8xf32>
    %262 = vector.shape_cast %261 : vector<8xf32> to vector<8x1xf32>
    %263 = tpu.reciprocal %262 {approx = true} : vector<8x1xf32> -> vector<8x1xf32>
    %264 = vector.broadcast %263 : vector<8x1xf32> to vector<8x8xf32>
    %265 = arith.mulf %260, %264 : vector<8x8xf32>
    %266 = arith.truncf %265 : vector<8x8xf32> to vector<8x8xbf16>
    %cst_99 = arith.constant dense<0.000000e+00> : vector<8x8xf32>
    %267 = tpu.matmul %266, %250, %cst_99 {dimension_numbers = #tpu.dot_dimension_numbers<[1], [0], [0], [1], [0, 0, 1, 1], [], []>} : vector<8x8xbf16>, vector<8x8xbf16>, vector<8x8xf32> -> vector<8x8xf32>
    %268 = arith.truncf %267 : vector<8x8xf32> to vector<8x8xbf16>
    %c3_100 = arith.constant 3 : index
    %c0_101 = arith.constant 0 : index
    %c0_102 = arith.constant 0 : index
    %269 = vector.load %arg14[%c3_100, %c0_101, %c0_102] : memref<4x8x32xbf16, #tpu.memory_space<vmem>>, vector<1x8x32xbf16>
    %270 = vector.shape_cast %269 : vector<1x8x32xbf16> to vector<8x32xbf16>
    %cst_103 = arith.constant dense<0.000000e+00> : vector<8x32xf32>
    %271 = tpu.matmul %268, %270, %cst_103 {dimension_numbers = #tpu.dot_dimension_numbers<[1], [0], [0], [1], [0, 0, 1, 1], [], []>} : vector<8x8xbf16>, vector<8x32xbf16>, vector<8x32xf32> -> vector<8x32xf32>
    %272 = arith.addf %244, %271 : vector<8x32xf32>
    %c0_104 = arith.constant 0 : index
    %c0_105 = arith.constant 0 : index
    %273 = vector.load %arg15[%c0_104, %c0_105] : memref<1x32xf32, #tpu.memory_space<vmem>>, vector<1x32xf32>
    %274 = vector.broadcast %273 : vector<1x32xf32> to vector<8x32xf32>
    %275 = arith.addf %272, %274 : vector<8x32xf32>
    %276 = arith.addf %145, %275 : vector<8x32xf32>
    %cst_106 = arith.constant dense<0.000000e+00> : vector<8xf32>
    %277 = vector.multi_reduction <add>, %276, %cst_106 [1] : vector<8x32xf32> to vector<8xf32>
    %278 = vector.shape_cast %277 : vector<8xf32> to vector<8x1xf32>
    %cst_107 = arith.constant 3.200000e+01 : f32
    %279 = vector.broadcast %cst_107 : f32 to vector<8x1xf32>
    %280 = arith.divf %278, %279 : vector<8x1xf32>
    %281 = vector.broadcast %280 : vector<8x1xf32> to vector<8x32xf32>
    %282 = arith.subf %276, %281 : vector<8x32xf32>
    %283 = arith.mulf %282, %282 : vector<8x32xf32>
    %cst_108 = arith.constant dense<0.000000e+00> : vector<8xf32>
    %284 = vector.multi_reduction <add>, %283, %cst_108 [1] : vector<8x32xf32> to vector<8xf32>
    %285 = vector.shape_cast %284 : vector<8xf32> to vector<8x1xf32>
    %cst_109 = arith.constant 3.200000e+01 : f32
    %286 = vector.broadcast %cst_109 : f32 to vector<8x1xf32>
    %287 = arith.divf %285, %286 : vector<8x1xf32>
    %cst_110 = arith.constant 9.99999974E-6 : f32
    %288 = vector.broadcast %cst_110 : f32 to vector<8x1xf32>
    %289 = arith.addf %287, %288 : vector<8x1xf32>
    %290 = math.rsqrt %289 : vector<8x1xf32>
    %291 = vector.broadcast %290 : vector<8x1xf32> to vector<8x32xf32>
    %292 = arith.mulf %282, %291 : vector<8x32xf32>
    %c0_111 = arith.constant 0 : index
    %c0_112 = arith.constant 0 : index
    %293 = vector.load %arg16[%c0_111, %c0_112] : memref<1x32xf32, #tpu.memory_space<vmem>>, vector<1x32xf32>
    %294 = vector.broadcast %293 : vector<1x32xf32> to vector<8x32xf32>
    %295 = arith.mulf %292, %294 : vector<8x32xf32>
    %c0_113 = arith.constant 0 : index
    %c0_114 = arith.constant 0 : index
    %296 = vector.load %arg17[%c0_113, %c0_114] : memref<1x32xf32, #tpu.memory_space<vmem>>, vector<1x32xf32>
    %297 = vector.broadcast %296 : vector<1x32xf32> to vector<8x32xf32>
    %298 = arith.addf %295, %297 : vector<8x32xf32>
    %299 = arith.truncf %298 : vector<8x32xf32> to vector<8x32xbf16>
    %c0_115 = arith.constant 0 : index
    %c0_116 = arith.constant 0 : index
    %300 = vector.load %arg18[%c0_115, %c0_116] : memref<32x32xbf16, #tpu.memory_space<vmem>>, vector<32x32xbf16>
    %cst_117 = arith.constant dense<0.000000e+00> : vector<8x32xf32>
    %301 = tpu.matmul %299, %300, %cst_117 {dimension_numbers = #tpu.dot_dimension_numbers<[1], [0], [0], [1], [0, 0, 1, 1], [], []>} : vector<8x32xbf16>, vector<32x32xbf16>, vector<8x32xf32> -> vector<8x32xf32>
    %c0_118 = arith.constant 0 : index
    %c0_119 = arith.constant 0 : index
    %302 = vector.load %arg19[%c0_118, %c0_119] : memref<1x32xf32, #tpu.memory_space<vmem>>, vector<1x32xf32>
    %303 = vector.broadcast %302 : vector<1x32xf32> to vector<8x32xf32>
    %304 = arith.addf %301, %303 : vector<8x32xf32>
    %cst_120 = arith.constant 0.000000e+00 : f32
    %305 = vector.broadcast %cst_120 : f32 to vector<8x32xf32>
    %306 = arith.maximumf %304, %305 : vector<8x32xf32>
    %307 = arith.truncf %306 : vector<8x32xf32> to vector<8x32xbf16>
    %c0_121 = arith.constant 0 : index
    %c0_122 = arith.constant 0 : index
    %308 = vector.load %arg20[%c0_121, %c0_122] : memref<32x32xbf16, #tpu.memory_space<vmem>>, vector<32x32xbf16>
    %cst_123 = arith.constant dense<0.000000e+00> : vector<8x32xf32>
    %309 = tpu.matmul %307, %308, %cst_123 {dimension_numbers = #tpu.dot_dimension_numbers<[1], [0], [0], [1], [0, 0, 1, 1], [], []>} : vector<8x32xbf16>, vector<32x32xbf16>, vector<8x32xf32> -> vector<8x32xf32>
    %c0_124 = arith.constant 0 : index
    %c0_125 = arith.constant 0 : index
    %310 = vector.load %arg21[%c0_124, %c0_125] : memref<1x32xf32, #tpu.memory_space<vmem>>, vector<1x32xf32>
    %311 = vector.broadcast %310 : vector<1x32xf32> to vector<8x32xf32>
    %312 = arith.addf %309, %311 : vector<8x32xf32>
    %313 = arith.addf %298, %312 : vector<8x32xf32>
    %cst_126 = arith.constant dense<0.000000e+00> : vector<8xf32>
    %314 = vector.multi_reduction <add>, %313, %cst_126 [1] : vector<8x32xf32> to vector<8xf32>
    %315 = vector.shape_cast %314 : vector<8xf32> to vector<8x1xf32>
    %cst_127 = arith.constant 3.200000e+01 : f32
    %316 = vector.broadcast %cst_127 : f32 to vector<8x1xf32>
    %317 = arith.divf %315, %316 : vector<8x1xf32>
    %318 = vector.broadcast %317 : vector<8x1xf32> to vector<8x32xf32>
    %319 = arith.subf %313, %318 : vector<8x32xf32>
    %320 = arith.mulf %319, %319 : vector<8x32xf32>
    %cst_128 = arith.constant dense<0.000000e+00> : vector<8xf32>
    %321 = vector.multi_reduction <add>, %320, %cst_128 [1] : vector<8x32xf32> to vector<8xf32>
    %322 = vector.shape_cast %321 : vector<8xf32> to vector<8x1xf32>
    %cst_129 = arith.constant 3.200000e+01 : f32
    %323 = vector.broadcast %cst_129 : f32 to vector<8x1xf32>
    %324 = arith.divf %322, %323 : vector<8x1xf32>
    %cst_130 = arith.constant 9.99999974E-6 : f32
    %325 = vector.broadcast %cst_130 : f32 to vector<8x1xf32>
    %326 = arith.addf %324, %325 : vector<8x1xf32>
    %327 = math.rsqrt %326 : vector<8x1xf32>
    %328 = vector.broadcast %327 : vector<8x1xf32> to vector<8x32xf32>
    %329 = arith.mulf %319, %328 : vector<8x32xf32>
    %c0_131 = arith.constant 0 : index
    %c0_132 = arith.constant 0 : index
    %330 = vector.load %arg22[%c0_131, %c0_132] : memref<1x32xf32, #tpu.memory_space<vmem>>, vector<1x32xf32>
    %331 = vector.broadcast %330 : vector<1x32xf32> to vector<8x32xf32>
    %332 = arith.mulf %329, %331 : vector<8x32xf32>
    %c0_133 = arith.constant 0 : index
    %c0_134 = arith.constant 0 : index
    %333 = vector.load %arg23[%c0_133, %c0_134] : memref<1x32xf32, #tpu.memory_space<vmem>>, vector<1x32xf32>
    %334 = vector.broadcast %333 : vector<1x32xf32> to vector<8x32xf32>
    %335 = arith.addf %332, %334 : vector<8x32xf32>
    %c0_135 = arith.constant 0 : index
    %c0_136 = arith.constant 0 : index
    %c0_137 = arith.constant 0 : index
    %336 = vector.load %arg24[%c0_135, %c0_136, %c0_137] : memref<1x8x32xf32, #tpu.memory_space<vmem>>, vector<1x8x32xf32>
    %337 = vector.shape_cast %336 : vector<1x8x32xf32> to vector<8x32xf32>
    %338 = vector.shape_cast %335 : vector<8x32xf32> to vector<1x8x32xf32>
    tpu.vector_store %arg24[%c0_135, %c0_136, %c0_137], %338 {strides = array<i32>} : memref<1x8x32xf32, #tpu.memory_space<vmem>>, vector<1x8x32xf32>,
    return
  }
  func.func @transform_0(%arg0: i32) -> (i32, i32, i32) {
    %c0_i32 = arith.constant 0 : i32
    %c0_i32_0 = arith.constant 0 : i32
    %c0_i32_1 = arith.constant 0 : i32
    return %arg0, %c0_i32, %c0_i32_0 : i32, i32, i32
  }
  func.func @transform_1(%arg0: i32) -> (i32, i32, i32) {
    %c0_i32 = arith.constant 0 : i32
    %c0_i32_0 = arith.constant 0 : i32
    %c0_i32_1 = arith.constant 0 : i32
    return %arg0, %c0_i32, %c0_i32_0 : i32, i32, i32
  }
  func.func @transform_2(%arg0: i32) -> (i32, i32, i32) {
    %c0_i32 = arith.constant 0 : i32
    %c0_i32_0 = arith.constant 0 : i32
    %c0_i32_1 = arith.constant 0 : i32
    return %arg0, %c0_i32, %c0_i32_0 : i32, i32, i32
  }
  func.func @transform_3(%arg0: i32) -> (i32, i32) {
    %c0_i32 = arith.constant 0 : i32
    %c0_i32_0 = arith.constant 0 : i32
    %c0_i32_1 = arith.constant 0 : i32
    return %c0_i32, %c0_i32_0 : i32, i32
  }
  func.func @transform_4(%arg0: i32) -> (i32, i32) {
    %c0_i32 = arith.constant 0 : i32
    %c0_i32_0 = arith.constant 0 : i32
    %c0_i32_1 = arith.constant 0 : i32
    return %c0_i32, %c0_i32_0 : i32, i32
  }
  func.func @transform_5(%arg0: i32) -> (i32, i32, i32) {
    %c0_i32 = arith.constant 0 : i32
    %c0_i32_0 = arith.constant 0 : i32
    %c0_i32_1 = arith.constant 0 : i32
    %c0_i32_2 = arith.constant 0 : i32
    return %c0_i32, %c0_i32_0, %c0_i32_1 : i32, i32, i32
  }
  func.func @transform_6(%arg0: i32) -> (i32, i32) {
    %c0_i32 = arith.constant 0 : i32
    %c0_i32_0 = arith.constant 0 : i32
    %c0_i32_1 = arith.constant 0 : i32
    return %c0_i32, %c0_i32_0 : i32, i32
  }
  func.func @transform_7(%arg0: i32) -> (i32, i32) {
    %c0_i32 = arith.constant 0 : i32
    %c0_i32_0 = arith.constant 0 : i32
    %c0_i32_1 = arith.constant 0 : i32
    return %c0_i32, %c0_i32_0 : i32, i32
  }
  func.func @transform_8(%arg0: i32) -> (i32, i32) {
    %c0_i32 = arith.constant 0 : i32
    %c0_i32_0 = arith.constant 0 : i32
    %c0_i32_1 = arith.constant 0 : i32
    return %c0_i32, %c0_i32_0 : i32, i32
  }
  func.func @transform_9(%arg0: i32) -> (i32, i32) {
    %c0_i32 = arith.constant 0 : i32
    %c0_i32_0 = arith.constant 0 : i32
    %c0_i32_1 = arith.constant 0 : i32
    return %c0_i32, %c0_i32_0 : i32, i32
  }
  func.func @transform_10(%arg0: i32) -> (i32, i32) {
    %c0_i32 = arith.constant 0 : i32
    %c0_i32_0 = arith.constant 0 : i32
    %c0_i32_1 = arith.constant 0 : i32
    return %c0_i32, %c0_i32_0 : i32, i32
  }
  func.func @transform_11(%arg0: i32) -> (i32, i32) {
    %c0_i32 = arith.constant 0 : i32
    %c0_i32_0 = arith.constant 0 : i32
    %c0_i32_1 = arith.constant 0 : i32
    return %c0_i32, %c0_i32_0 : i32, i32
  }
  func.func @transform_12(%arg0: i32) -> (i32, i32) {
    %c0_i32 = arith.constant 0 : i32
    %c0_i32_0 = arith.constant 0 : i32
    %c0_i32_1 = arith.constant 0 : i32
    return %c0_i32, %c0_i32_0 : i32, i32
  }
  func.func @transform_13(%arg0: i32) -> (i32, i32, i32) {
    %c0_i32 = arith.constant 0 : i32
    %c0_i32_0 = arith.constant 0 : i32
    %c0_i32_1 = arith.constant 0 : i32
    %c0_i32_2 = arith.constant 0 : i32
    return %c0_i32, %c0_i32_0, %c0_i32_1 : i32, i32, i32
  }
  func.func @transform_14(%arg0: i32) -> (i32, i32) {
    %c0_i32 = arith.constant 0 : i32
    %c0_i32_0 = arith.constant 0 : i32
    %c0_i32_1 = arith.constant 0 : i32
    return %c0_i32, %c0_i32_0 : i32, i32
  }
  func.func @transform_15(%arg0: i32) -> (i32, i32) {
    %c0_i32 = arith.constant 0 : i32
    %c0_i32_0 = arith.constant 0 : i32
    %c0_i32_1 = arith.constant 0 : i32
    return %c0_i32, %c0_i32_0 : i32, i32
  }
  func.func @transform_16(%arg0: i32) -> (i32, i32) {
    %c0_i32 = arith.constant 0 : i32
    %c0_i32_0 = arith.constant 0 : i32
    %c0_i32_1 = arith.constant 0 : i32
    return %c0_i32, %c0_i32_0 : i32, i32
  }
  func.func @transform_17(%arg0: i32) -> (i32, i32) {
    %c0_i32 = arith.constant 0 : i32
    %c0_i32_0 = arith.constant 0 : i32
    %c0_i32_1 = arith.constant 0 : i32
    return %c0_i32, %c0_i32_0 : i32, i32
  }
  func.func @transform_18(%arg0: i32) -> (i32, i32) {
    %c0_i32 = arith.constant 0 : i32
    %c0_i32_0 = arith.constant 0 : i32
    %c0_i32_1 = arith.constant 0 : i32
    return %c0_i32, %c0_i32_0 : i32, i32
  }
  func.func @transform_19(%arg0: i32) -> (i32, i32) {
    %c0_i32 = arith.constant 0 : i32
    %c0_i32_0 = arith.constant 0 : i32
    %c0_i32_1 = arith.constant 0 : i32
    return %c0_i32, %c0_i32_0 : i32, i32
  }
  func.func @transform_20(%arg0: i32) -> (i32, i32) {
    %c0_i32 = arith.constant 0 : i32
    %c0_i32_0 = arith.constant 0 : i32
    %c0_i32_1 = arith.constant 0 : i32
    return %c0_i32, %c0_i32_0 : i32, i32
  }
  func.func @transform_21(%arg0: i32) -> (i32, i32) {
    %c0_i32 = arith.constant 0 : i32
    %c0_i32_0 = arith.constant 0 : i32
    %c0_i32_1 = arith.constant 0 : i32
    return %c0_i32, %c0_i32_0 : i32, i32
  }
  func.func @transform_22(%arg0: i32) -> (i32, i32) {
    %c0_i32 = arith.constant 0 : i32
    %c0_i32_0 = arith.constant 0 : i32
    %c0_i32_1 = arith.constant 0 : i32
    return %c0_i32, %c0_i32_0 : i32, i32
  }
  func.func @transform_23(%arg0: i32) -> (i32, i32, i32) {
    %c0_i32 = arith.constant 0 : i32
    %c0_i32_0 = arith.constant 0 : i32
    %c0_i32_1 = arith.constant 0 : i32
    return %arg0, %c0_i32, %c0_i32_0 : i32, i32, i32
  }
}

</mosaic_0001>

<llo_original>
// kernel: transformer_decoder_forward.5
$region0: #{transformer_decoder_forward.5}
  #allocation0 [shape = 'u32[]', space=smem, size = 0x4, offset = 0x4, fixed_abs, tag = 'smem constant byte address 0x4 - core index']
  #allocation1 [shape = 'u32[72,128]{1,0:T(1,128)}', space=vmem, size = 0x9000, scoped, tag = 'internal scratch']
  %s0 = inlined_call_operand.vmem [shape: f32[16,32], index: 0, kind: input, shape index: {}]
  %s1 = inlined_call_operand.vmem [shape: bf16[32,50], index: 1, kind: input, shape index: {}]
  %s2 = inlined_call_operand.vmem [shape: f32[1,50], index: 2, kind: input, shape index: {}]
  %s3 = inlined_call_operand.hbm [shape: f32[16,50], index: 3, kind: output, shape index: {}]
  %s4 = sld [smem:[#allocation0]]
  $region22: #{transformer_decoder_forward.5} parent=0
    _
  %s6 = ssub.s32 1, %s4
  %s7 = scalar_select 0, %s6, %s4
  $region1: #{transformer_decoder_forward.5} parent=0
    #allocation2 [shape = 'u8[8192]{0}', space=vmem, size = 0x2000, scoped, tag = 'output window, operand 0, single buffered']
    #allocation3 [shape = 's32[1]{0}', space=sflag, size = 0x4, scoped, tag = 'scoped memory for transformer_decoder_forward.5']
    %8 = vsyncpa [#allocation3], 0
    // Predicated region
    $region2: #{transformer_decoder_forward.5} parent=1 // pred_check
      _
    $region3: #{transformer_decoder_forward.5} parent=1 // pred_check_branch
      %10 = sbr.rel (0) target = $region5
    $region4: #{transformer_decoder_forward.5} parent=1 // pred_region
      _
    $region5: #{transformer_decoder_forward.5} parent=1 // pred_fallthru
      _
    // Predicated region
    $region6: #{transformer_decoder_forward.5} parent=1 // pred_check
      _
    $region7: #{transformer_decoder_forward.5} parent=1 // pred_check_branch
      %12 = sbr.rel (0) target = $region9
    $region8: #{transformer_decoder_forward.5} parent=1 // pred_region
      _
    $region9: #{transformer_decoder_forward.5} parent=1 // pred_fallthru
      _
    // Predicated region
    $region10: #{transformer_decoder_forward.5} parent=1 // pred_check
      _
    $region11: #{transformer_decoder_forward.5} parent=1 // pred_check_branch
      %14 = sbr.rel (0) target = $region13
    $region12: #{transformer_decoder_forward.5} parent=1 // pred_region
      _
    $region13: #{transformer_decoder_forward.5} parent=1 // pred_fallthru
      _
    %v16 = vld [vmem:[%s0] sm:$0xff]
    %v17 = vld [vmem:[%s0 + $0x8] sm:$0xff]
    %v18 = vpack.c.bf16 %v17, %v16
    %v19 = vld [vmem:[%s1] sm:$0xf]
    %v20 = vld [vmem:[%s1 + $0x4] sm:$0xf]
    %v21 = vld [vmem:[%s1 + $0x8] sm:$0xf]
    %v22 = vld [vmem:[%s1 + $0xc] sm:$0xf]
    %v23 = vld [vmem:[%s2] sm:$0x1]
    %v25 = vperm.slane %v23, 0
    %v31 = vunpack.c.l.b16 %v19
    %v32 = vunpack.c.l.b16 %v20
    %v33 = vunpack.c.l.b16 %v21
    %v34 = vunpack.c.l.b16 %v22
    %v35 = vpack.c.b16 %v32, %v31
    %v36 = vpack.c.b16 %v34, %v33
    %vm39 = vcmask 261120
    %v41 = vsel %vm39, %v18, 0
    %43 = vmatpush.bf16.msra.mxu0 0
    %44 = vmatpush.bf16.msra.mxu0 0
    %45 = vmatpush.bf16.msra.mxu0 0
    %46 = vmatpush.bf16.msra.mxu0 0
    %47 = vmatpush.bf16.msra.mxu0 0
    %48 = vmatpush.bf16.msra.mxu0 0
    %49 = vmatpush.bf16.msra.mxu0 %v36
    %50 = vmatpush.bf16.msra.mxu0 %v35
    %51 = vmatmul.bf16.gmra.mxu0 %v41
    %v52 = vpop.f32.mrf.mxu0
    %v53 = vadd.f32 %v25, %v52
    %v54 = vpop.f32.mrf.mxu0
    %v55 = vadd.f32 %v25, %v54
    %56 = vdwg.mxu0
    %vm57 = vcmask 408576
    %v58 = vsel %vm57, %v53, -inf
    %59 = vmax.xlane.f32.xlu0 %v58
    %v60 = vpop.xlane.xlu0 %59
    %v61 = vsel %vm57, %v55, -inf
    %62 = vmax.xlane.f32.xlu0 %v61
    %v63 = vpop.xlane.xlu0 %62
    %v64 = vsub.f32 %v53, %v60
    %v65 = vsub.f32 %v55, %v63
    %v66 = vmul.f32 %v64, 1.442695
    %v67 = vpow.pop %v66
    %v68 = vmul.f32 %v65, 1.442695
    %v69 = vpow.pop %v68
    %v70 = vsel %vm57, %v67, 0.0
    %71 = vadd.xlane.f32.xlu0 %v70
    %v72 = vpop.xlane.xlu0 %71
    %v73 = vsel %vm57, %v69, 0.0
    %74 = vadd.xlane.f32.xlu0 %v73
    %v75 = vpop.xlane.xlu0 %74
    %v76 = vlog2.pop %v72
    %v77 = vmul.f32 %v76, 0.6931472
    %v78 = vlog2.pop %v75
    %v79 = vmul.f32 %v78, 0.6931472
    %v80 = vsub.f32 %v64, %v77
    %v81 = vsub.f32 %v65, %v79
    %82 = vst.msk [vmem:[#allocation2] sm:$0xff] %vm57, %v80
    %83 = vst.msk [vmem:[#allocation2 + $0x8] sm:$0xff] %vm57, %v81
    // Predicated region
    $region14: #{transformer_decoder_forward.5} parent=1 // pred_check
      _
    $region15: #{transformer_decoder_forward.5} parent=1 // pred_check_branch
      %85 = sbr.rel (0) target = $region17
    $region16: #{transformer_decoder_forward.5} parent=1 // pred_region
      %87 = vsyncadd [#allocation3], 0
      %s88 = sshll.u32 [#allocation2], 4
      %s89 = int_to_ptr.vmem [resolvable:$true] %s88
      %s90 = sshll.u32 %s3, 4
      %s91 = int_to_ptr.hbm [resolvable:$true] %s90
      %96 = dma.vmem_to_hbm [thread:$0]  %s89, 256, %s91, [#allocation3], 128, 128, 8
    $region17: #{transformer_decoder_forward.5} parent=1 // pred_fallthru
      _
    // Predicated region
    $region18: #{transformer_decoder_forward.5} parent=1 // pred_check
      _
    $region19: #{transformer_decoder_forward.5} parent=1 // pred_check_branch
      %98 = sbr.rel (0) target = $region21
    $region20: #{transformer_decoder_forward.5} parent=1 // pred_region
      %100 = dma.done [#allocation3], 256
    $region21: #{transformer_decoder_forward.5} parent=1 // pred_fallthru
      _
    %101 = vsyncpa [#allocation3], 1

// kernel: transformer_decoder_forward.3
$region0: #{transformer_decoder_forward.3}
  #allocation0 [shape = 'u32[]', space=smem, size = 0x4, offset = 0x4, fixed_abs, tag = 'smem constant byte address 0x4 - core index']
  #allocation1 [shape = 'u32[72,128]{1,0:T(1,128)}', space=vmem, size = 0x9000, scoped, tag = 'internal scratch']
  %s0 = inlined_call_operand.vmem [shape: f32[2,8,32], index: 0, kind: input, shape index: {}]
  %s1 = inlined_call_operand.vmem [shape: f32[2,8,32], index: 1, kind: input, shape index: {}]
  %s2 = inlined_call_operand.vmem [shape: f32[2,1,8], index: 2, kind: input, shape index: {}]
  %s3 = inlined_call_operand.vmem [shape: bf16[32,96], index: 3, kind: input, shape index: {}]
  %s4 = inlined_call_operand.vmem [shape: f32[1,96], index: 4, kind: input, shape index: {}]
  %s5 = inlined_call_operand.vmem [shape: bf16[4,8,32], index: 5, kind: input, shape index: {}]
  %s6 = inlined_call_operand.vmem [shape: f32[1,32], index: 6, kind: input, shape index: {}]
  %s7 = inlined_call_operand.vmem [shape: f32[1,32], index: 7, kind: input, shape index: {}]
  %s8 = inlined_call_operand.vmem [shape: f32[1,32], index: 8, kind: input, shape index: {}]
  %s9 = inlined_call_operand.vmem [shape: bf16[32,32], index: 9, kind: input, shape index: {}]
  %s10 = inlined_call_operand.vmem [shape: f32[1,32], index: 10, kind: input, shape index: {}]
  %s11 = inlined_call_operand.vmem [shape: bf16[32,64], index: 11, kind: input, shape index: {}]
  %s12 = inlined_call_operand.vmem [shape: f32[1,64], index: 12, kind: input, shape index: {}]
  %s13 = inlined_call_operand.vmem [shape: bf16[4,8,32], index: 13, kind: input, shape index: {}]
  %s14 = inlined_call_operand.vmem [shape: f32[1,32], index: 14, kind: input, shape index: {}]
  %s15 = inlined_call_operand.vmem [shape: f32[1,32], index: 15, kind: input, shape index: {}]
  %s16 = inlined_call_operand.vmem [shape: f32[1,32], index: 16, kind: input, shape index: {}]
  %s17 = inlined_call_operand.vmem [shape: bf16[32,32], index: 17, kind: input, shape index: {}]
  %s18 = inlined_call_operand.vmem [shape: f32[1,32], index: 18, kind: input, shape index: {}]
  %s19 = inlined_call_operand.vmem [shape: bf16[32,32], index: 19, kind: input, shape index: {}]
  %s20 = inlined_call_operand.vmem [shape: f32[1,32], index: 20, kind: input, shape index: {}]
  %s21 = inlined_call_operand.vmem [shape: f32[1,32], index: 21, kind: input, shape index: {}]
  %s22 = inlined_call_operand.vmem [shape: f32[1,32], index: 22, kind: input, shape index: {}]
  %s23 = inlined_call_operand.vmem [shape: f32[2,8,32], index: 23, kind: output, shape index: {}]
  %s24 = sld [smem:[#allocation0]]
  $region125: #{transformer_decoder_forward.3} parent=0
    _
  %s26 = ssub.s32 1, %s24
  %s27 = scalar_select 0, %s26, %s24
  loop: start=0, step=1, limit=4
  $region2: #{transformer_decoder_forward.3} parent=0 // loop_pre_header
    _
  $region3: #{transformer_decoder_forward.3} parent=0 // loop_header
    %s29 = sphi 0, %s33
    %p30 = scmp.ge.s32.totalorder %s29, 4
    %s39 = sphi 0, %s41
    %s42 = sphi 0, %s39
    %s43 = sphi 0, %s42
    %s59 = sphi 0, %s43
    %s65 = sphi 0, %s67
    %s68 = sphi 0, %s65
    %s69 = sphi 0, %s68
    %s85 = sphi 0, %s69
    %s91 = sphi 0, %s93
    %s94 = sphi 0, %s91
    %s95 = sphi 0, %s94
    %s111 = sphi 0, %s95
    %s115 = sphi 0, %s115
    %s117 = sphi 0, %s115
    %s118 = sphi 0, %s117
    %s132 = sphi 0, %s118
    %s136 = sphi 0, %s136
    %s138 = sphi 0, %s136
    %s139 = sphi 0, %s138
    %s153 = sphi 0, %s139
    %s157 = sphi 0, %s157
    %s159 = sphi 0, %s157
    %s160 = sphi 0, %s159
    %s174 = sphi 0, %s160
    %s178 = sphi 0, %s178
    %s180 = sphi 0, %s178
    %s181 = sphi 0, %s180
    %s195 = sphi 0, %s181
    %s199 = sphi 0, %s199
    %s201 = sphi 0, %s199
    %s202 = sphi 0, %s201
    %s216 = sphi 0, %s202
    %s220 = sphi 0, %s220
    %s222 = sphi 0, %s220
    %s223 = sphi 0, %s222
    %s237 = sphi 0, %s223
    %s241 = sphi 0, %s241
    %s243 = sphi 0, %s241
    %s244 = sphi 0, %s243
    %s258 = sphi 0, %s244
    %s262 = sphi 0, %s262
    %s264 = sphi 0, %s262
    %s265 = sphi 0, %s264
    %s279 = sphi 0, %s265
    %s283 = sphi 0, %s283
    %s285 = sphi 0, %s283
    %s286 = sphi 0, %s285
    %s300 = sphi 0, %s286
    %s304 = sphi 0, %s304
    %s306 = sphi 0, %s304
    %s307 = sphi 0, %s306
    %s321 = sphi 0, %s307
    %s325 = sphi 0, %s325
    %s327 = sphi 0, %s325
    %s328 = sphi 0, %s327
    %s342 = sphi 0, %s328
    %s346 = sphi 0, %s346
    %s348 = sphi 0, %s346
    %s349 = sphi 0, %s348
    %s363 = sphi 0, %s349
    %s367 = sphi 0, %s367
    %s369 = sphi 0, %s367
    %s370 = sphi 0, %s369
    %s384 = sphi 0, %s370
    %s388 = sphi 0, %s388
    %s390 = sphi 0, %s388
    %s391 = sphi 0, %s390
    %s405 = sphi 0, %s391
    %s409 = sphi 0, %s409
    %s411 = sphi 0, %s409
    %s412 = sphi 0, %s411
    %s426 = sphi 0, %s412
    %s430 = sphi 0, %s430
    %s432 = sphi 0, %s430
    %s433 = sphi 0, %s432
    %s447 = sphi 0, %s433
    %s451 = sphi 0, %s451
    %s453 = sphi 0, %s451
    %s454 = sphi 0, %s453
    %s468 = sphi 0, %s454
    %s472 = sphi 0, %s472
    %s474 = sphi 0, %s472
    %s475 = sphi 0, %s474
    %s489 = sphi 0, %s475
    %s493 = sphi 0, %s493
    %s495 = sphi 0, %s493
    %s496 = sphi 0, %s495
    %s510 = sphi 0, %s496
    %s514 = sphi 0, %s514
    %s516 = sphi 0, %s514
    %s517 = sphi 0, %s516
    %s531 = sphi 0, %s517
    %s537 = sphi 0, %s539
    %s540 = sphi 0, %s537
    %s541 = sphi 0, %s540
    %s557 = sphi 0, %s541
  $region4: #{transformer_decoder_forward.3} parent=0 // loop_header_branch
    %32 = sbr.rel (%p30) target = $region8
  $region5: #{transformer_decoder_forward.3} parent=0 // loop_body
    %s34 = ssub.s32 %s29, 1
    %s35 = ssub.s32 %s29, 2
    %s36 = sadd.s32 %s29, 1
    %s37 = ssub.s32 %s29, %s36
    %p38 = scmp.eq.s32.totalorder %s37, 0
    %s40 = sadd.s32 %s39, 1
    %s41 = scalar_select %p38, %s39, %s40
    %p44 = pneg %p38
    %p45 = scmp.eq.s32.totalorder %s29, 1
    %p46 = por %p44, %p45
    %p47 = scmp.ne.s32.totalorder %s39, %s42
    %p48 = scmp.eq.s32.totalorder %s29, 0
    %p49 = por %p47, %p48
    %p50 = scmp.ne.s32.totalorder %s39, %s42
    %p51 = scmp.eq.s32.totalorder %s34, 1
    %p52 = por %p50, %p51
    %p53 = scmp.ne.s32.totalorder %s42, %s43
    %p54 = scmp.eq.s32.totalorder %s34, 0
    %p55 = por %p53, %p54
    %p56 = scmp.ne.s32.totalorder %s42, %s43
    %p57 = scmp.eq.s32.totalorder %s35, 1
    %p58 = por %p56, %p57
    %p60 = scmp.ne.s32.totalorder %s43, %s59
    %p61 = scmp.eq.s32.totalorder %s35, 0
    %p62 = por %p60, %p61
    %s63 = ssub.s32 %s29, %s36
    %p64 = scmp.eq.s32.totalorder %s63, 0
    %s66 = sadd.s32 %s65, 1
    %s67 = scalar_select %p64, %s65, %s66
    %p70 = pneg %p64
    %p71 = scmp.eq.s32.totalorder %s29, 1
    %p72 = por %p70, %p71
    %p73 = scmp.ne.s32.totalorder %s65, %s68
    %p74 = scmp.eq.s32.totalorder %s29, 0
    %p75 = por %p73, %p74
    %p76 = scmp.ne.s32.totalorder %s65, %s68
    %p77 = scmp.eq.s32.totalorder %s34, 1
    %p78 = por %p76, %p77
    %p79 = scmp.ne.s32.totalorder %s68, %s69
    %p80 = scmp.eq.s32.totalorder %s34, 0
    %p81 = por %p79, %p80
    %p82 = scmp.ne.s32.totalorder %s68, %s69
    %p83 = scmp.eq.s32.totalorder %s35, 1
    %p84 = por %p82, %p83
    %p86 = scmp.ne.s32.totalorder %s69, %s85
    %p87 = scmp.eq.s32.totalorder %s35, 0
    %p88 = por %p86, %p87
    %s89 = ssub.s32 %s29, %s36
    %p90 = scmp.eq.s32.totalorder %s89, 0
    %s92 = sadd.s32 %s91, 1
    %s93 = scalar_select %p90, %s91, %s92
    %p96 = pneg %p90
    %p97 = scmp.eq.s32.totalorder %s29, 1
    %p98 = por %p96, %p97
    %p99 = scmp.ne.s32.totalorder %s91, %s94
    %p100 = scmp.eq.s32.totalorder %s29, 0
    %p101 = por %p99, %p100
    %p102 = scmp.ne.s32.totalorder %s91, %s94
    %p103 = scmp.eq.s32.totalorder %s34, 1
    %p104 = por %p102, %p103
    %p105 = scmp.ne.s32.totalorder %s94, %s95
    %p106 = scmp.eq.s32.totalorder %s34, 0
    %p107 = por %p105, %p106
    %p108 = scmp.ne.s32.totalorder %s94, %s95
    %p109 = scmp.eq.s32.totalorder %s35, 1
    %p110 = por %p108, %p109
    %p112 = scmp.ne.s32.totalorder %s95, %s111
    %p113 = scmp.eq.s32.totalorder %s35, 0
    %p114 = por %p112, %p113
    %s116 = sadd.s32 %s115, 1
    %p119 = scmp.eq.s32.totalorder %s29, 1
    %p120 = scmp.ne.s32.totalorder %s115, %s117
    %p121 = scmp.eq.s32.totalorder %s29, 0
    %p122 = por %p120, %p121
    %p123 = scmp.ne.s32.totalorder %s115, %s117
    %p124 = scmp.eq.s32.totalorder %s34, 1
    %p125 = por %p123, %p124
    %p126 = scmp.ne.s32.totalorder %s117, %s118
    %p127 = scmp.eq.s32.totalorder %s34, 0
    %p128 = por %p126, %p127
    %p129 = scmp.ne.s32.totalorder %s117, %s118
    %p130 = scmp.eq.s32.totalorder %s35, 1
    %p131 = por %p129, %p130
    %p133 = scmp.ne.s32.totalorder %s118, %s132
    %p134 = scmp.eq.s32.totalorder %s35, 0
    %p135 = por %p133, %p134
    %s137 = sadd.s32 %s136, 1
    %p140 = scmp.eq.s32.totalorder %s29, 1
    %p141 = scmp.ne.s32.totalorder %s136, %s138
    %p142 = scmp.eq.s32.totalorder %s29, 0
    %p143 = por %p141, %p142
    %p144 = scmp.ne.s32.totalorder %s136, %s138
    %p145 = scmp.eq.s32.totalorder %s34, 1
    %p146 = por %p144, %p145
    %p147 = scmp.ne.s32.totalorder %s138, %s139
    %p148 = scmp.eq.s32.totalorder %s34, 0
    %p149 = por %p147, %p148
    %p150 = scmp.ne.s32.totalorder %s138, %s139
    %p151 = scmp.eq.s32.totalorder %s35, 1
    %p152 = por %p150, %p151
    %p154 = scmp.ne.s32.totalorder %s139, %s153
    %p155 = scmp.eq.s32.totalorder %s35, 0
    %p156 = por %p154, %p155
    %s158 = sadd.s32 %s157, 1
    %p161 = scmp.eq.s32.totalorder %s29, 1
    %p162 = scmp.ne.s32.totalorder %s157, %s159
    %p163 = scmp.eq.s32.totalorder %s29, 0
    %p164 = por %p162, %p163
    %p165 = scmp.ne.s32.totalorder %s157, %s159
    %p166 = scmp.eq.s32.totalorder %s34, 1
    %p167 = por %p165, %p166
    %p168 = scmp.ne.s32.totalorder %s159, %s160
    %p169 = scmp.eq.s32.totalorder %s34, 0
    %p170 = por %p168, %p169
    %p171 = scmp.ne.s32.totalorder %s159, %s160
    %p172 = scmp.eq.s32.totalorder %s35, 1
    %p173 = por %p171, %p172
    %p175 = scmp.ne.s32.totalorder %s160, %s174
    %p176 = scmp.eq.s32.totalorder %s35, 0
    %p177 = por %p175, %p176
    %s179 = sadd.s32 %s178, 1
    %p182 = scmp.eq.s32.totalorder %s29, 1
    %p183 = scmp.ne.s32.totalorder %s178, %s180
    %p184 = scmp.eq.s32.totalorder %s29, 0
    %p185 = por %p183, %p184
    %p186 = scmp.ne.s32.totalorder %s178, %s180
    %p187 = scmp.eq.s32.totalorder %s34, 1
    %p188 = por %p186, %p187
    %p189 = scmp.ne.s32.totalorder %s180, %s181
    %p190 = scmp.eq.s32.totalorder %s34, 0
    %p191 = por %p189, %p190
    %p192 = scmp.ne.s32.totalorder %s180, %s181
    %p193 = scmp.eq.s32.totalorder %s35, 1
    %p194 = por %p192, %p193
    %p196 = scmp.ne.s32.totalorder %s181, %s195
    %p197 = scmp.eq.s32.totalorder %s35, 0
    %p198 = por %p196, %p197
    %s200 = sadd.s32 %s199, 1
    %p203 = scmp.eq.s32.totalorder %s29, 1
    %p204 = scmp.ne.s32.totalorder %s199, %s201
    %p205 = scmp.eq.s32.totalorder %s29, 0
    %p206 = por %p204, %p205
    %p207 = scmp.ne.s32.totalorder %s199, %s201
    %p208 = scmp.eq.s32.totalorder %s34, 1
    %p209 = por %p207, %p208
    %p210 = scmp.ne.s32.totalorder %s201, %s202
    %p211 = scmp.eq.s32.totalorder %s34, 0
    %p212 = por %p210, %p211
    %p213 = scmp.ne.s32.totalorder %s201, %s202
    %p214 = scmp.eq.s32.totalorder %s35, 1
    %p215 = por %p213, %p214
    %p217 = scmp.ne.s32.totalorder %s202, %s216
    %p218 = scmp.eq.s32.totalorder %s35, 0
    %p219 = por %p217, %p218
    %s221 = sadd.s32 %s220, 1
    %p224 = scmp.eq.s32.totalorder %s29, 1
    %p225 = scmp.ne.s32.totalorder %s220, %s222
    %p226 = scmp.eq.s32.totalorder %s29, 0
    %p227 = por %p225, %p226
    %p228 = scmp.ne.s32.totalorder %s220, %s222
    %p229 = scmp.eq.s32.totalorder %s34, 1
    %p230 = por %p228, %p229
    %p231 = scmp.ne.s32.totalorder %s222, %s223
    %p232 = scmp.eq.s32.totalorder %s34, 0
    %p233 = por %p231, %p232
    %p234 = scmp.ne.s32.totalorder %s222, %s223
    %p235 = scmp.eq.s32.totalorder %s35, 1
    %p236 = por %p234, %p235
    %p238 = scmp.ne.s32.totalorder %s223, %s237
    %p239 = scmp.eq.s32.totalorder %s35, 0
    %p240 = por %p238, %p239
    %s242 = sadd.s32 %s241, 1
    %p245 = scmp.eq.s32.totalorder %s29, 1
    %p246 = scmp.ne.s32.totalorder %s241, %s243
    %p247 = scmp.eq.s32.totalorder %s29, 0
    %p248 = por %p246, %p247
    %p249 = scmp.ne.s32.totalorder %s241, %s243
    %p250 = scmp.eq.s32.totalorder %s34, 1
    %p251 = por %p249, %p250
    %p252 = scmp.ne.s32.totalorder %s243, %s244
    %p253 = scmp.eq.s32.totalorder %s34, 0
    %p254 = por %p252, %p253
    %p255 = scmp.ne.s32.totalorder %s243, %s244
    %p256 = scmp.eq.s32.totalorder %s35, 1
    %p257 = por %p255, %p256
    %p259 = scmp.ne.s32.totalorder %s244, %s258
    %p260 = scmp.eq.s32.totalorder %s35, 0
    %p261 = por %p259, %p260
    %s263 = sadd.s32 %s262, 1
    %p266 = scmp.eq.s32.totalorder %s29, 1
    %p267 = scmp.ne.s32.totalorder %s262, %s264
    %p268 = scmp.eq.s32.totalorder %s29, 0
    %p269 = por %p267, %p268
    %p270 = scmp.ne.s32.totalorder %s262, %s264
    %p271 = scmp.eq.s32.totalorder %s34, 1
    %p272 = por %p270, %p271
    %p273 = scmp.ne.s32.totalorder %s264, %s265
    %p274 = scmp.eq.s32.totalorder %s34, 0
    %p275 = por %p273, %p274
    %p276 = scmp.ne.s32.totalorder %s264, %s265
    %p277 = scmp.eq.s32.totalorder %s35, 1
    %p278 = por %p276, %p277
    %p280 = scmp.ne.s32.totalorder %s265, %s279
    %p281 = scmp.eq.s32.totalorder %s35, 0
    %p282 = por %p280, %p281
    %s284 = sadd.s32 %s283, 1
    %p287 = scmp.eq.s32.totalorder %s29, 1
    %p288 = scmp.ne.s32.totalorder %s283, %s285
    %p289 = scmp.eq.s32.totalorder %s29, 0
    %p290 = por %p288, %p289
    %p291 = scmp.ne.s32.totalorder %s283, %s285
    %p292 = scmp.eq.s32.totalorder %s34, 1
    %p293 = por %p291, %p292
    %p294 = scmp.ne.s32.totalorder %s285, %s286
    %p295 = scmp.eq.s32.totalorder %s34, 0
    %p296 = por %p294, %p295
    %p297 = scmp.ne.s32.totalorder %s285, %s286
    %p298 = scmp.eq.s32.totalorder %s35, 1
    %p299 = por %p297, %p298
    %p301 = scmp.ne.s32.totalorder %s286, %s300
    %p302 = scmp.eq.s32.totalorder %s35, 0
    %p303 = por %p301, %p302
    %s305 = sadd.s32 %s304, 1
    %p308 = scmp.eq.s32.totalorder %s29, 1
    %p309 = scmp.ne.s32.totalorder %s304, %s306
    %p310 = scmp.eq.s32.totalorder %s29, 0
    %p311 = por %p309, %p310
    %p312 = scmp.ne.s32.totalorder %s304, %s306
    %p313 = scmp.eq.s32.totalorder %s34, 1
    %p314 = por %p312, %p313
    %p315 = scmp.ne.s32.totalorder %s306, %s307
    %p316 = scmp.eq.s32.totalorder %s34, 0
    %p317 = por %p315, %p316
    %p318 = scmp.ne.s32.totalorder %s306, %s307
    %p319 = scmp.eq.s32.totalorder %s35, 1
    %p320 = por %p318, %p319
    %p322 = scmp.ne.s32.totalorder %s307, %s321
    %p323 = scmp.eq.s32.totalorder %s35, 0
    %p324 = por %p322, %p323
    %s326 = sadd.s32 %s325, 1
    %p329 = scmp.eq.s32.totalorder %s29, 1
    %p330 = scmp.ne.s32.totalorder %s325, %s327
    %p331 = scmp.eq.s32.totalorder %s29, 0
    %p332 = por %p330, %p331
    %p333 = scmp.ne.s32.totalorder %s325, %s327
    %p334 = scmp.eq.s32.totalorder %s34, 1
    %p335 = por %p333, %p334
    %p336 = scmp.ne.s32.totalorder %s327, %s328
    %p337 = scmp.eq.s32.totalorder %s34, 0
    %p338 = por %p336, %p337
    %p339 = scmp.ne.s32.totalorder %s327, %s328
    %p340 = scmp.eq.s32.totalorder %s35, 1
    %p341 = por %p339, %p340
    %p343 = scmp.ne.s32.totalorder %s328, %s342
    %p344 = scmp.eq.s32.totalorder %s35, 0
    %p345 = por %p343, %p344
    %s347 = sadd.s32 %s346, 1
    %p350 = scmp.eq.s32.totalorder %s29, 1
    %p351 = scmp.ne.s32.totalorder %s346, %s348
    %p352 = scmp.eq.s32.totalorder %s29, 0
    %p353 = por %p351, %p352
    %p354 = scmp.ne.s32.totalorder %s346, %s348
    %p355 = scmp.eq.s32.totalorder %s34, 1
    %p356 = por %p354, %p355
    %p357 = scmp.ne.s32.totalorder %s348, %s349
    %p358 = scmp.eq.s32.totalorder %s34, 0
    %p359 = por %p357, %p358
    %p360 = scmp.ne.s32.totalorder %s348, %s349
    %p361 = scmp.eq.s32.totalorder %s35, 1
    %p362 = por %p360, %p361
    %p364 = scmp.ne.s32.totalorder %s349, %s363
    %p365 = scmp.eq.s32.totalorder %s35, 0
    %p366 = por %p364, %p365
    %s368 = sadd.s32 %s367, 1
    %p371 = scmp.eq.s32.totalorder %s29, 1
    %p372 = scmp.ne.s32.totalorder %s367, %s369
    %p373 = scmp.eq.s32.totalorder %s29, 0
    %p374 = por %p372, %p373
    %p375 = scmp.ne.s32.totalorder %s367, %s369
    %p376 = scmp.eq.s32.totalorder %s34, 1
    %p377 = por %p375, %p376
    %p378 = scmp.ne.s32.totalorder %s369, %s370
    %p379 = scmp.eq.s32.totalorder %s34, 0
    %p380 = por %p378, %p379
    %p381 = scmp.ne.s32.totalorder %s369, %s370
    %p382 = scmp.eq.s32.totalorder %s35, 1
    %p383 = por %p381, %p382
    %p385 = scmp.ne.s32.totalorder %s370, %s384
    %p386 = scmp.eq.s32.totalorder %s35, 0
    %p387 = por %p385, %p386
    %s389 = sadd.s32 %s388, 1
    %p392 = scmp.eq.s32.totalorder %s29, 1
    %p393 = scmp.ne.s32.totalorder %s388, %s390
    %p394 = scmp.eq.s32.totalorder %s29, 0
    %p395 = por %p393, %p394
    %p396 = scmp.ne.s32.totalorder %s388, %s390
    %p397 = scmp.eq.s32.totalorder %s34, 1
    %p398 = por %p396, %p397
    %p399 = scmp.ne.s32.totalorder %s390, %s391
    %p400 = scmp.eq.s32.totalorder %s34, 0
    %p401 = por %p399, %p400
    %p402 = scmp.ne.s32.totalorder %s390, %s391
    %p403 = scmp.eq.s32.totalorder %s35, 1
    %p404 = por %p402, %p403
    %p406 = scmp.ne.s32.totalorder %s391, %s405
    %p407 = scmp.eq.s32.totalorder %s35, 0
    %p408 = por %p406, %p407
    %s410 = sadd.s32 %s409, 1
    %p413 = scmp.eq.s32.totalorder %s29, 1
    %p414 = scmp.ne.s32.totalorder %s409, %s411
    %p415 = scmp.eq.s32.totalorder %s29, 0
    %p416 = por %p414, %p415
    %p417 = scmp.ne.s32.totalorder %s409, %s411
    %p418 = scmp.eq.s32.totalorder %s34, 1
    %p419 = por %p417, %p418
    %p420 = scmp.ne.s32.totalorder %s411, %s412
    %p421 = scmp.eq.s32.totalorder %s34, 0
    %p422 = por %p420, %p421
    %p423 = scmp.ne.s32.totalorder %s411, %s412
    %p424 = scmp.eq.s32.totalorder %s35, 1
    %p425 = por %p423, %p424
    %p427 = scmp.ne.s32.totalorder %s412, %s426
    %p428 = scmp.eq.s32.totalorder %s35, 0
    %p429 = por %p427, %p428
    %s431 = sadd.s32 %s430, 1
    %p434 = scmp.eq.s32.totalorder %s29, 1
    %p435 = scmp.ne.s32.totalorder %s430, %s432
    %p436 = scmp.eq.s32.totalorder %s29, 0
    %p437 = por %p435, %p436
    %p438 = scmp.ne.s32.totalorder %s430, %s432
    %p439 = scmp.eq.s32.totalorder %s34, 1
    %p440 = por %p438, %p439
    %p441 = scmp.ne.s32.totalorder %s432, %s433
    %p442 = scmp.eq.s32.totalorder %s34, 0
    %p443 = por %p441, %p442
    %p444 = scmp.ne.s32.totalorder %s432, %s433
    %p445 = scmp.eq.s32.totalorder %s35, 1
    %p446 = por %p444, %p445
    %p448 = scmp.ne.s32.totalorder %s433, %s447
    %p449 = scmp.eq.s32.totalorder %s35, 0
    %p450 = por %p448, %p449
    %s452 = sadd.s32 %s451, 1
    %p455 = scmp.eq.s32.totalorder %s29, 1
    %p456 = scmp.ne.s32.totalorder %s451, %s453
    %p457 = scmp.eq.s32.totalorder %s29, 0
    %p458 = por %p456, %p457
    %p459 = scmp.ne.s32.totalorder %s451, %s453
    %p460 = scmp.eq.s32.totalorder %s34, 1
    %p461 = por %p459, %p460
    %p462 = scmp.ne.s32.totalorder %s453, %s454
    %p463 = scmp.eq.s32.totalorder %s34, 0
    %p464 = por %p462, %p463
    %p465 = scmp.ne.s32.totalorder %s453, %s454
    %p466 = scmp.eq.s32.totalorder %s35, 1
    %p467 = por %p465, %p466
    %p469 = scmp.ne.s32.totalorder %s454, %s468
    %p470 = scmp.eq.s32.totalorder %s35, 0
    %p471 = por %p469, %p470
    %s473 = sadd.s32 %s472, 1
    %p476 = scmp.eq.s32.totalorder %s29, 1
    %p477 = scmp.ne.s32.totalorder %s472, %s474
    %p478 = scmp.eq.s32.totalorder %s29, 0
    %p479 = por %p477, %p478
    %p480 = scmp.ne.s32.totalorder %s472, %s474
    %p481 = scmp.eq.s32.totalorder %s34, 1
    %p482 = por %p480, %p481
    %p483 = scmp.ne.s32.totalorder %s474, %s475
    %p484 = scmp.eq.s32.totalorder %s34, 0
    %p485 = por %p483, %p484
    %p486 = scmp.ne.s32.totalorder %s474, %s475
    %p487 = scmp.eq.s32.totalorder %s35, 1
    %p488 = por %p486, %p487
    %p490 = scmp.ne.s32.totalorder %s475, %s489
    %p491 = scmp.eq.s32.totalorder %s35, 0
    %p492 = por %p490, %p491
    %s494 = sadd.s32 %s493, 1
    %p497 = scmp.eq.s32.totalorder %s29, 1
    %p498 = scmp.ne.s32.totalorder %s493, %s495
    %p499 = scmp.eq.s32.totalorder %s29, 0
    %p500 = por %p498, %p499
    %p501 = scmp.ne.s32.totalorder %s493, %s495
    %p502 = scmp.eq.s32.totalorder %s34, 1
    %p503 = por %p501, %p502
    %p504 = scmp.ne.s32.totalorder %s495, %s496
    %p505 = scmp.eq.s32.totalorder %s34, 0
    %p506 = por %p504, %p505
    %p507 = scmp.ne.s32.totalorder %s495, %s496
    %p508 = scmp.eq.s32.totalorder %s35, 1
    %p509 = por %p507, %p508
    %p511 = scmp.ne.s32.totalorder %s496, %s510
    %p512 = scmp.eq.s32.totalorder %s35, 0
    %p513 = por %p511, %p512
    %s515 = sadd.s32 %s514, 1
    %p518 = scmp.eq.s32.totalorder %s29, 1
    %p519 = scmp.ne.s32.totalorder %s514, %s516
    %p520 = scmp.eq.s32.totalorder %s29, 0
    %p521 = por %p519, %p520
    %p522 = scmp.ne.s32.totalorder %s514, %s516
    %p523 = scmp.eq.s32.totalorder %s34, 1
    %p524 = por %p522, %p523
    %p525 = scmp.ne.s32.totalorder %s516, %s517
    %p526 = scmp.eq.s32.totalorder %s34, 0
    %p527 = por %p525, %p526
    %p528 = scmp.ne.s32.totalorder %s516, %s517
    %p529 = scmp.eq.s32.totalorder %s35, 1
    %p530 = por %p528, %p529
    %p532 = scmp.ne.s32.totalorder %s517, %s531
    %p533 = scmp.eq.s32.totalorder %s35, 0
    %p534 = por %p532, %p533
    %s535 = ssub.s32 %s29, %s36
    %p536 = scmp.eq.s32.totalorder %s535, 0
    %s538 = sadd.s32 %s537, 1
    %s539 = scalar_select %p536, %s537, %s538
    %p542 = pneg %p536
    %p543 = scmp.eq.s32.totalorder %s29, 1
    %p544 = por %p542, %p543
    %p545 = scmp.ne.s32.totalorder %s537, %s540
    %p546 = scmp.eq.s32.totalorder %s29, 0
    %p547 = por %p545, %p546
    %p548 = scmp.ne.s32.totalorder %s537, %s540
    %p549 = scmp.eq.s32.totalorder %s34, 1
    %p550 = por %p548, %p549
    %p551 = scmp.ne.s32.totalorder %s540, %s541
    %p552 = scmp.eq.s32.totalorder %s34, 0
    %p553 = por %p551, %p552
    %p554 = scmp.ne.s32.totalorder %s540, %s541
    %p555 = scmp.eq.s32.totalorder %s35, 1
    %p556 = por %p554, %p555
    %p558 = scmp.ne.s32.totalorder %s541, %s557
    %p559 = scmp.eq.s32.totalorder %s35, 0
    %p560 = por %p558, %p559
    %p561 = scmp.le.s32.totalorder 1, %s29
    %p562 = scmp.lt.s32.totalorder %s29, 3
    %p563 = pnand %p561, %p562
    %p564 = pneg %p563
    // Predicated region
    $region9: #{transformer_decoder_forward.3} parent=5 // pred_check
      _
    $region10: #{transformer_decoder_forward.3} parent=5 // pred_check_branch
      %566 = sbr.rel (%p563) target = $region12
    $region11: #{transformer_decoder_forward.3} parent=5 // pred_region
      %s567 = ssub.s32 %s29, 1
      // Predicated region
      $region13: #{transformer_decoder_forward.3} parent=11 // pred_check
        %p568 = pneg %p128
      $region14: #{transformer_decoder_forward.3} parent=11 // pred_check_branch
        %570 = sbr.rel (%p568) target = $region16
      $region15: #{transformer_decoder_forward.3} parent=11 // pred_region
        _
      $region16: #{transformer_decoder_forward.3} parent=11 // pred_fallthru
        _
      // Predicated region
      $region17: #{transformer_decoder_forward.3} parent=11 // pred_check
        %p571 = pneg %p149
      $region18: #{transformer_decoder_forward.3} parent=11 // pred_check_branch
        %573 = sbr.rel (%p571) target = $region20
      $region19: #{transformer_decoder_forward.3} parent=11 // pred_region
        _
      $region20: #{transformer_decoder_forward.3} parent=11 // pred_fallthru
        _
      // Predicated region
      $region21: #{transformer_decoder_forward.3} parent=11 // pred_check
        %p574 = pneg %p170
      $region22: #{transformer_decoder_forward.3} parent=11 // pred_check_branch
        %576 = sbr.rel (%p574) target = $region24
      $region23: #{transformer_decoder_forward.3} parent=11 // pred_region
        _
      $region24: #{transformer_decoder_forward.3} parent=11 // pred_fallthru
        _
      // Predicated region
      $region25: #{transformer_decoder_forward.3} parent=11 // pred_check
        %p577 = pneg %p191
      $region26: #{transformer_decoder_forward.3} parent=11 // pred_check_branch
        %579 = sbr.rel (%p577) target = $region28
      $region27: #{transformer_decoder_forward.3} parent=11 // pred_region
        _
      $region28: #{transformer_decoder_forward.3} parent=11 // pred_fallthru
        _
      // Predicated region
      $region29: #{transformer_decoder_forward.3} parent=11 // pred_check
        %p580 = pneg %p212
      $region30: #{transformer_decoder_forward.3} parent=11 // pred_check_branch
        %582 = sbr.rel (%p580) target = $region32
      $region31: #{transformer_decoder_forward.3} parent=11 // pred_region
        _
      $region32: #{transformer_decoder_forward.3} parent=11 // pred_fallthru
        _
      // Predicated region
      $region33: #{transformer_decoder_forward.3} parent=11 // pred_check
        %p583 = pneg %p233
      $region34: #{transformer_decoder_forward.3} parent=11 // pred_check_branch
        %585 = sbr.rel (%p583) target = $region36
      $region35: #{transformer_decoder_forward.3} parent=11 // pred_region
        _
      $region36: #{transformer_decoder_forward.3} parent=11 // pred_fallthru
        _
      // Predicated region
      $region37: #{transformer_decoder_forward.3} parent=11 // pred_check
        %p586 = pneg %p254
      $region38: #{transformer_decoder_forward.3} parent=11 // pred_check_branch
        %588 = sbr.rel (%p586) target = $region40
      $region39: #{transformer_decoder_forward.3} parent=11 // pred_region
        _
      $region40: #{transformer_decoder_forward.3} parent=11 // pred_fallthru
        _
      // Predicated region
      $region41: #{transformer_decoder_forward.3} parent=11 // pred_check
        %p589 = pneg %p275
      $region42: #{transformer_decoder_forward.3} parent=11 // pred_check_branch
        %591 = sbr.rel (%p589) target = $region44
      $region43: #{transformer_decoder_forward.3} parent=11 // pred_region
        _
      $region44: #{transformer_decoder_forward.3} parent=11 // pred_fallthru
        _
      // Predicated region
      $region45: #{transformer_decoder_forward.3} parent=11 // pred_check
        %p592 = pneg %p296
      $region46: #{transformer_decoder_forward.3} parent=11 // pred_check_branch
        %594 = sbr.rel (%p592) target = $region48
      $region47: #{transformer_decoder_forward.3} parent=11 // pred_region
        _
      $region48: #{transformer_decoder_forward.3} parent=11 // pred_fallthru
        _
      // Predicated region
      $region49: #{transformer_decoder_forward.3} parent=11 // pred_check
        %p595 = pneg %p317
      $region50: #{transformer_decoder_forward.3} parent=11 // pred_check_branch
        %597 = sbr.rel (%p595) target = $region52
      $region51: #{transformer_decoder_forward.3} parent=11 // pred_region
        _
      $region52: #{transformer_decoder_forward.3} parent=11 // pred_fallthru
        _
      // Predicated region
      $region53: #{transformer_decoder_forward.3} parent=11 // pred_check
        %p598 = pneg %p338
      $region54: #{transformer_decoder_forward.3} parent=11 // pred_check_branch
        %600 = sbr.rel (%p598) target = $region56
      $region55: #{transformer_decoder_forward.3} parent=11 // pred_region
        _
      $region56: #{transformer_decoder_forward.3} parent=11 // pred_fallthru
        _
      // Predicated region
      $region57: #{transformer_decoder_forward.3} parent=11 // pred_check
        %p601 = pneg %p359
      $region58: #{transformer_decoder_forward.3} parent=11 // pred_check_branch
        %603 = sbr.rel (%p601) target = $region60
      $region59: #{transformer_decoder_forward.3} parent=11 // pred_region
        _
      $region60: #{transformer_decoder_forward.3} parent=11 // pred_fallthru
        _
      // Predicated region
      $region61: #{transformer_decoder_forward.3} parent=11 // pred_check
        %p604 = pneg %p380
      $region62: #{transformer_decoder_forward.3} parent=11 // pred_check_branch
        %606 = sbr.rel (%p604) target = $region64
      $region63: #{transformer_decoder_forward.3} parent=11 // pred_region
        _
      $region64: #{transformer_decoder_forward.3} parent=11 // pred_fallthru
        _
      // Predicated region
      $region65: #{transformer_decoder_forward.3} parent=11 // pred_check
        %p607 = pneg %p401
      $region66: #{transformer_decoder_forward.3} parent=11 // pred_check_branch
        %609 = sbr.rel (%p607) target = $region68
      $region67: #{transformer_decoder_forward.3} parent=11 // pred_region
        _
      $region68: #{transformer_decoder_forward.3} parent=11 // pred_fallthru
        _
      // Predicated region
      $region69: #{transformer_decoder_forward.3} parent=11 // pred_check
        %p610 = pneg %p422
      $region70: #{transformer_decoder_forward.3} parent=11 // pred_check_branch
        %612 = sbr.rel (%p610) target = $region72
      $region71: #{transformer_decoder_forward.3} parent=11 // pred_region
        _
      $region72: #{transformer_decoder_forward.3} parent=11 // pred_fallthru
        _
      // Predicated region
      $region73: #{transformer_decoder_forward.3} parent=11 // pred_check
        %p613 = pneg %p443
      $region74: #{transformer_decoder_forward.3} parent=11 // pred_check_branch
        %615 = sbr.rel (%p613) target = $region76
      $region75: #{transformer_decoder_forward.3} parent=11 // pred_region
        _
      $region76: #{transformer_decoder_forward.3} parent=11 // pred_fallthru
        _
      // Predicated region
      $region77: #{transformer_decoder_forward.3} parent=11 // pred_check
        %p616 = pneg %p464
      $region78: #{transformer_decoder_forward.3} parent=11 // pred_check_branch
        %618 = sbr.rel (%p616) target = $region80
      $region79: #{transformer_decoder_forward.3} parent=11 // pred_region
        _
      $region80: #{transformer_decoder_forward.3} parent=11 // pred_fallthru
        _
      // Predicated region
      $region81: #{transformer_decoder_forward.3} parent=11 // pred_check
        %p619 = pneg %p485
      $region82: #{transformer_decoder_forward.3} parent=11 // pred_check_branch
        %621 = sbr.rel (%p619) target = $region84
      $region83: #{transformer_decoder_forward.3} parent=11 // pred_region
        _
      $region84: #{transformer_decoder_forward.3} parent=11 // pred_fallthru
        _
      // Predicated region
      $region85: #{transformer_decoder_forward.3} parent=11 // pred_check
        %p622 = pneg %p506
      $region86: #{transformer_decoder_forward.3} parent=11 // pred_check_branch
        %624 = sbr.rel (%p622) target = $region88
      $region87: #{transformer_decoder_forward.3} parent=11 // pred_region
        _
      $region88: #{transformer_decoder_forward.3} parent=11 // pred_fallthru
        _
      // Predicated region
      $region89: #{transformer_decoder_forward.3} parent=11 // pred_check
        %p625 = pneg %p527
      $region90: #{transformer_decoder_forward.3} parent=11 // pred_check_branch
        %627 = sbr.rel (%p625) target = $region92
      $region91: #{transformer_decoder_forward.3} parent=11 // pred_region
        _
      $region92: #{transformer_decoder_forward.3} parent=11 // pred_fallthru
        _
    $region12: #{transformer_decoder_forward.3} parent=5 // pred_fallthru
      _
    %p628 = scmp.lt.s32.totalorder %s29, 2
    // Predicated region
    $region93: #{transformer_decoder_forward.3} parent=5 // pred_check
      %p629 = pneg %p628
    $region94: #{transformer_decoder_forward.3} parent=5 // pred_check_branch
      %631 = sbr.rel (%p629) target = $region96
    $region95: #{transformer_decoder_forward.3} parent=5 // pred_region
      // Predicated region
      $region97: #{transformer_decoder_forward.3} parent=95 // pred_check
        %p632 = pneg %p49
      $region98: #{transformer_decoder_forward.3} parent=95 // pred_check_branch
        %634 = sbr.rel (%p632) target = $region100
      $region99: #{transformer_decoder_forward.3} parent=95 // pred_region
        %p635 = scmp.lt.s32.totalorder %s29, 1
        %s636 = scalar_select %p635, %s29, 1
        %s637 = smul.addr %s636, 8
        %s638 = scalar_lea.vmem %s0, %s637
      $region100: #{transformer_decoder_forward.3} parent=95 // pred_fallthru
        _
      // Predicated region
      $region101: #{transformer_decoder_forward.3} parent=95 // pred_check
        %p639 = pneg %p75
      $region102: #{transformer_decoder_forward.3} parent=95 // pred_check_branch
        %641 = sbr.rel (%p639) target = $region104
      $region103: #{transformer_decoder_forward.3} parent=95 // pred_region
        %p642 = scmp.lt.s32.totalorder %s29, 1
        %s643 = scalar_select %p642, %s29, 1
        %s644 = smul.addr %s643, 8
        %s645 = scalar_lea.vmem %s1, %s644
      $region104: #{transformer_decoder_forward.3} parent=95 // pred_fallthru
        _
      // Predicated region
      $region105: #{transformer_decoder_forward.3} parent=95 // pred_check
        %p646 = pneg %p101
      $region106: #{transformer_decoder_forward.3} parent=95 // pred_check_branch
        %648 = sbr.rel (%p646) target = $region108
      $region107: #{transformer_decoder_forward.3} parent=95 // pred_region
        %p649 = scmp.lt.s32.totalorder %s29, 1
        %s650 = scalar_select %p649, %s29, 1
        %s651 = scalar_lea.vmem %s2, %s650
      $region108: #{transformer_decoder_forward.3} parent=95 // pred_fallthru
        _
    $region96: #{transformer_decoder_forward.3} parent=5 // pred_fallthru
      _
    %p652 = scmp.le.s32.totalorder 1, %s29
    %p653 = scmp.lt.s32.totalorder %s29, 3
    %p654 = pnand %p652, %p653
    %p655 = pneg %p654
    // Predicated region
    $region109: #{transformer_decoder_forward.3} parent=5 // pred_check
      _
    $region110: #{transformer_decoder_forward.3} parent=5 // pred_check_branch
      %657 = sbr.rel (%p654) target = $region112
    $region111: #{transformer_decoder_forward.3} parent=5 // pred_region
      %s658 = ssub.s32 %s29, 1
      %p659 = scmp.lt.s32.totalorder %s34, 1
      %s660 = scalar_select %p659, %s34, 1
      %s661 = smul.addr %s660, 8
      %s662 = scalar_lea.vmem %s0, %s661
      %p663 = pneg %p55
      %p664 = pneg %p52
      %p665 = scmp.lt.s32.totalorder %s34, 1
      %s666 = scalar_select %p665, %s34, 1
      %s667 = smul.addr %s666, 8
      %s668 = scalar_lea.vmem %s1, %s667
      %p669 = pneg %p81
      %p670 = pneg %p78
      %p671 = scmp.lt.s32.totalorder %s34, 1
      %s672 = scalar_select %p671, %s34, 1
      %s673 = scalar_lea.vmem %s2, %s672
      %p674 = pneg %p107
      %p675 = pneg %p104
      %p676 = pneg %p128
      %p677 = pneg %p125
      %p678 = pneg %p149
      %p679 = pneg %p146
      %p680 = pneg %p170
      %p681 = pneg %p167
      %p682 = pneg %p191
      %p683 = pneg %p188
      %p684 = pneg %p212
      %p685 = pneg %p209
      %p686 = pneg %p233
      %p687 = pneg %p230
      %p688 = pneg %p254
      %p689 = pneg %p251
      %p690 = pneg %p275
      %p691 = pneg %p272
      %p692 = pneg %p296
      %p693 = pneg %p293
      %p694 = pneg %p317
      %p695 = pneg %p314
      %p696 = pneg %p338
      %p697 = pneg %p335
      %p698 = pneg %p359
      %p699 = pneg %p356
      %p700 = pneg %p380
      %p701 = pneg %p377
      %p702 = pneg %p401
      %p703 = pneg %p398
      %p704 = pneg %p422
      %p705 = pneg %p419
      %p706 = pneg %p443
      %p707 = pneg %p440
      %p708 = pneg %p464
      %p709 = pneg %p461
      %p710 = pneg %p485
      %p711 = pneg %p482
      %p712 = pneg %p506
      %p713 = pneg %p503
      %p714 = pneg %p527
      %p715 = pneg %p524
      %p716 = pneg %p553
      %p717 = pneg %p550
      %p718 = scmp.lt.s32.totalorder %s34, 1
      %s719 = scalar_select %p718, %s34, 1
      %s720 = smul.addr %s719, 8
      %s721 = scalar_lea.vmem %s23, %s720
      %p722 = scmp.lt.s32.totalorder %s34, 1
      %s723 = scalar_select %p722, %s34, 1
      %s724 = smul.addr %s723, 8
      %s725 = scalar_lea.vmem %s0, %s724
      %p726 = scmp.lt.s32.totalorder %s34, 1
      %s727 = scalar_select %p726, %s34, 1
      %s728 = smul.addr %s727, 8
      %s729 = scalar_lea.vmem %s1, %s728
      %p730 = scmp.lt.s32.totalorder %s34, 1
      %s731 = scalar_select %p730, %s34, 1
      %s732 = scalar_lea.vmem %s2, %s731
      %p733 = scmp.lt.s32.totalorder %s34, 1
      %s734 = scalar_select %p733, %s34, 1
      %s735 = smul.addr %s734, 8
      %s736 = scalar_lea.vmem %s23, %s735
      %v738 = vld [vmem:[%s725] sm:$0xff]
      %v739 = vld [vmem:[%s729] sm:$0xff]
      %v740 = vld [vmem:[%s732] sm:$0x1]
      %v741 = vpack.c.bf16 %v738, %v738
      %v742 = vld [vmem:[%s3] sm:$0xf]
      %v743 = vld [vmem:[%s3 + $0x4] sm:$0xf]
      %v744 = vld [vmem:[%s3 + $0x8] sm:$0xf]
      %v745 = vld [vmem:[%s3 + $0xc] sm:$0xf]
      %v746 = vld [vmem:[%s4] sm:$0x1]
      %v748 = vperm.slane %v746, 0
      %v754 = vunpack.c.l.b16 %v742
      %v755 = vunpack.c.l.b16 %v743
      %v756 = vunpack.c.l.b16 %v744
      %v757 = vunpack.c.l.b16 %v745
      %v758 = vpack.c.b16 %v755, %v754
      %v759 = vpack.c.b16 %v757, %v756
      %vm762 = vcmask 261120
      %v764 = vsel %vm762, %v741, 0
      %766 = vmatpush.bf16.msra.mxu0 0
      %767 = vmatpush.bf16.msra.mxu0 0
      %768 = vmatpush.bf16.msra.mxu0 0
      %769 = vmatpush.bf16.msra.mxu0 0
      %770 = vmatpush.bf16.msra.mxu0 0
      %771 = vmatpush.bf16.msra.mxu0 0
      %772 = vmatpush.bf16.msra.mxu0 %v759
      %773 = vmatpush.bf16.msra.mxu0 %v758
      %774 = vmatmul.bf16.gmra.mxu0 %v764
      %v775 = vpop.f32.mrf.mxu0
      %v776 = vadd.f32 %v748, %v775
      %v777 = vpop.f32.mrf.mxu0
      %778 = vdwg.mxu0
      %v779 = vpack.c.bf16 %v776, %v776
      %781 = vrot.lane.b32.xlu0 %v779, 96
      %v782 = vpop.permute.xlu0 %781
      %vm783 = vcmask 64512
      %v785 = vsel %vm783, %v779, 0
      %v788 = vsel %vm783, %v782, 0
      %790 = vmatpush.bf16.xpose.msra.mxu0 0
      %791 = vmatpush.bf16.xpose.msra.mxu0 0
      %792 = vmatpush.bf16.xpose.msra.mxu0 0
      %793 = vmatpush.bf16.xpose.msra.mxu0 0
      %794 = vmatpush.bf16.xpose.msra.mxu0 0
      %795 = vmatpush.bf16.xpose.msra.mxu0 0
      %796 = vmatpush.bf16.xpose.msra.mxu0 0
      %797 = vmatpush.bf16.xpose.msra.mxu0 %v788
      %798 = vmatmul.bf16.gmra.mxu0 %v785
      %v799 = vpop.f32.mrf.mxu0
      %v800 = vadd.f32 0.0, %v799
      %v801 = vpop.f32.mrf.mxu0
      %802 = vdwg.mxu0
      %v803 = vmul.f32 %v800, 0.35355338
      %v804 = vsel %vm783, %v803, -inf
      %805 = vmax.xlane.f32.xlu0 %v804
      %v806 = vpop.xlane.xlu0 %805
      %v807 = vsub.f32 %v803, %v806
      %v808 = vmul.f32 %v807, 1.442695
      %v809 = vpow.pop %v808
      %v810 = vsel %vm783, %v809, 0.0
      %811 = vadd.xlane.f32.xlu0 %v810
      %v812 = vpop.xlane.xlu0 %811
      %v813 = vrcp.pop %v812
      %v814 = vmul.f32 %v809, %v813
      %v815 = vpack.c.bf16 %v814, %v814
      %816 = vrot.lane.b32.xlu0 %v779, 64
      %v817 = vpop.permute.xlu0 %816
      %v819 = vsel %vm783, %v815, 0
      %vm821 = vcmask 1043456
      %v823 = vsel %vm821, %v817, 0
      %825 = vmatpush.bf16.msra.mxu0 0
      %826 = vmatpush.bf16.msra.mxu0 0
      %827 = vmatpush.bf16.msra.mxu0 0
      %828 = vmatpush.bf16.msra.mxu0 0
      %829 = vmatpush.bf16.msra.mxu0 0
      %830 = vmatpush.bf16.msra.mxu0 0
      %831 = vmatpush.bf16.msra.mxu0 0
      %832 = vmatpush.bf16.msra.mxu0 %v823
      %833 = vmatmul.bf16.gmra.mxu0 %v819
      %v834 = vpop.f32.mrf.mxu0
      %v835 = vadd.f32 0.0, %v834
      %v836 = vpop.f32.mrf.mxu0
      %837 = vdwg.mxu0
      %v838 = vpack.c.bf16 %v835, %v835
      %v839 = vld [vmem:[%s5] sm:$0xf]
      %840 = vrot.lane.b32.xlu0 %v779, 120
      %v841 = vpop.permute.xlu0 %840
      %842 = vrot.lane.b32.xlu0 %v779, 88
      %v843 = vpop.permute.xlu0 %842
      %v845 = vsel %vm783, %v841, 0
      %v848 = vsel %vm783, %v843, 0
      %850 = vmatpush.bf16.xpose.msra.mxu0 0
      %851 = vmatpush.bf16.xpose.msra.mxu0 0
      %852 = vmatpush.bf16.xpose.msra.mxu0 0
      %853 = vmatpush.bf16.xpose.msra.mxu0 0
      %854 = vmatpush.bf16.xpose.msra.mxu0 0
      %855 = vmatpush.bf16.xpose.msra.mxu0 0
      %856 = vmatpush.bf16.xpose.msra.mxu0 0
      %857 = vmatpush.bf16.xpose.msra.mxu0 %v848
      %858 = vmatmul.bf16.gmra.mxu0 %v845
      %v859 = vpop.f32.mrf.mxu0
      %v860 = vadd.f32 0.0, %v859
      %v861 = vpop.f32.mrf.mxu0
      %862 = vdwg.mxu0
      %v863 = vmul.f32 %v860, 0.35355338
      %v864 = vsel %vm783, %v863, -inf
      %865 = vmax.xlane.f32.xlu0 %v864
      %v866 = vpop.xlane.xlu0 %865
      %v867 = vsub.f32 %v863, %v866
      %v868 = vmul.f32 %v867, 1.442695
      %v869 = vpow.pop %v868
      %v870 = vsel %vm783, %v869, 0.0
      %871 = vadd.xlane.f32.xlu0 %v870
      %v872 = vpop.xlane.xlu0 %871
      %v873 = vrcp.pop %v872
      %v874 = vmul.f32 %v869, %v873
      %v875 = vpack.c.bf16 %v874, %v874
      %876 = vrot.lane.b32.xlu0 %v779, 56
      %v877 = vpop.permute.xlu0 %876
      %v879 = vsel %vm783, %v875, 0
      %v882 = vsel %vm821, %v877, 0
      %884 = vmatpush.bf16.msra.mxu0 0
      %885 = vmatpush.bf16.msra.mxu0 0
      %886 = vmatpush.bf16.msra.mxu0 0
      %887 = vmatpush.bf16.msra.mxu0 0
      %888 = vmatpush.bf16.msra.mxu0 0
      %889 = vmatpush.bf16.msra.mxu0 0
      %890 = vmatpush.bf16.msra.mxu0 0
      %891 = vmatpush.bf16.msra.mxu0 %v882
      %892 = vmatmul.bf16.gmra.mxu0 %v879
      %v893 = vpop.f32.mrf.mxu0
      %v894 = vadd.f32 0.0, %v893
      %v895 = vpop.f32.mrf.mxu0
      %896 = vdwg.mxu0
      %v897 = vpack.c.bf16 %v894, %v894
      %s898 = scalar_lea.vmem %s5, 4
      %v899 = vld [vmem:[%s898] sm:$0xf]
      %v901 = vsel %vm783, %v897, 0
      %v904 = vsel %vm821, %v899, 0
      %906 = vmatpush.bf16.msra.mxu0 0
      %907 = vmatpush.bf16.msra.mxu0 0
      %908 = vmatpush.bf16.msra.mxu0 0
      %909 = vmatpush.bf16.msra.mxu0 0
      %910 = vmatpush.bf16.msra.mxu0 0
      %911 = vmatpush.bf16.msra.mxu0 0
      %912 = vmatpush.bf16.msra.mxu0 0
      %913 = vmatpush.bf16.msra.mxu0 %v904
      %914 = vmatmul.bf16.gmra.mxu0 %v901
      %v915 = vpop.f32.mrf.mxu0
      %v916 = vadd.f32 0.0, %v915
      %v917 = vpop.f32.mrf.mxu0
      %918 = vdwg.mxu0
      %v920 = vsel %vm783, %v838, 0
      %v923 = vsel %vm821, %v839, 0
      %925 = vmatpush.bf16.msra.mxu0 0
      %926 = vmatpush.bf16.msra.mxu0 0
      %927 = vmatpush.bf16.msra.mxu0 0
      %928 = vmatpush.bf16.msra.mxu0 0
      %929 = vmatpush.bf16.msra.mxu0 0
      %930 = vmatpush.bf16.msra.mxu0 0
      %931 = vmatpush.bf16.msra.mxu0 0
      %932 = vmatpush.bf16.msra.mxu0 %v923
      %933 = vmatmul.bf16.gmra.mxu0 %v920
      %v934 = vpop.f32.mrf.mxu0
      %v935 = vadd.f32 %v916, %v934
      %v936 = vpop.f32.mrf.mxu0
      %937 = vdwg.mxu0
      %938 = vrot.lane.b32.xlu0 %v779, 112
      %v939 = vpop.permute.xlu0 %938
      %940 = vrot.lane.b32.xlu0 %v779, 80
      %v941 = vpop.permute.xlu0 %940
      %v943 = vsel %vm783, %v939, 0
      %v946 = vsel %vm783, %v941, 0
      %948 = vmatpush.bf16.xpose.msra.mxu0 0
      %949 = vmatpush.bf16.xpose.msra.mxu0 0
      %950 = vmatpush.bf16.xpose.msra.mxu0 0
      %951 = vmatpush.bf16.xpose.msra.mxu0 0
      %952 = vmatpush.bf16.xpose.msra.mxu0 0
      %953 = vmatpush.bf16.xpose.msra.mxu0 0
      %954 = vmatpush.bf16.xpose.msra.mxu0 0
      %955 = vmatpush.bf16.xpose.msra.mxu0 %v946
      %956 = vmatmul.bf16.gmra.mxu0 %v943
      %v957 = vpop.f32.mrf.mxu0
      %v958 = vadd.f32 0.0, %v957
      %v959 = vpop.f32.mrf.mxu0
      %960 = vdwg.mxu0
      %v961 = vmul.f32 %v958, 0.35355338
      %v962 = vsel %vm783, %v961, -inf
      %963 = vmax.xlane.f32.xlu0 %v962
      %v964 = vpop.xlane.xlu0 %963
      %v965 = vsub.f32 %v961, %v964
      %v966 = vmul.f32 %v965, 1.442695
      %v967 = vpow.pop %v966
      %v968 = vsel %vm783, %v967, 0.0
      %969 = vadd.xlane.f32.xlu0 %v968
      %v970 = vpop.xlane.xlu0 %969
      %v971 = vrcp.pop %v970
      %v972 = vmul.f32 %v967, %v971
      %v973 = vpack.c.bf16 %v972, %v972
      %974 = vrot.lane.b32.xlu0 %v779, 48
      %v975 = vpop.permute.xlu0 %974
      %v977 = vsel %vm783, %v973, 0
      %v980 = vsel %vm821, %v975, 0
      %982 = vmatpush.bf16.msra.mxu0 0
      %983 = vmatpush.bf16.msra.mxu0 0
      %984 = vmatpush.bf16.msra.mxu0 0
      %985 = vmatpush.bf16.msra.mxu0 0
      %986 = vmatpush.bf16.msra.mxu0 0
      %987 = vmatpush.bf16.msra.mxu0 0
      %988 = vmatpush.bf16.msra.mxu0 0
      %989 = vmatpush.bf16.msra.mxu0 %v980
      %990 = vmatmul.bf16.gmra.mxu0 %v977
      %v991 = vpop.f32.mrf.mxu0
      %v992 = vadd.f32 0.0, %v991
      %v993 = vpop.f32.mrf.mxu0
      %994 = vdwg.mxu0
      %v995 = vpack.c.bf16 %v992, %v992
      %s996 = scalar_lea.vmem %s5, 8
      %v997 = vld [vmem:[%s996] sm:$0xf]
      %v999 = vsel %vm783, %v995, 0
      %v1002 = vsel %vm821, %v997, 0
      %1004 = vmatpush.bf16.msra.mxu0 0
      %1005 = vmatpush.bf16.msra.mxu0 0
      %1006 = vmatpush.bf16.msra.mxu0 0
      %1007 = vmatpush.bf16.msra.mxu0 0
      %1008 = vmatpush.bf16.msra.mxu0 0
      %1009 = vmatpush.bf16.msra.mxu0 0
      %1010 = vmatpush.bf16.msra.mxu0 0
      %1011 = vmatpush.bf16.msra.mxu0 %v1002
      %1012 = vmatmul.bf16.gmra.mxu0 %v999
      %v1013 = vpop.f32.mrf.mxu0
      %v1014 = vadd.f32 0.0, %v1013
      %v1015 = vpop.f32.mrf.mxu0
      %1016 = vdwg.mxu0
      %v1017 = vadd.f32 %v935, %v1014
      %1018 = vrot.lane.b32.xlu0 %v779, 104
      %v1019 = vpop.permute.xlu0 %1018
      %1020 = vrot.lane.b32.xlu0 %v779, 72
      %v1021 = vpop.permute.xlu0 %1020
      %v1023 = vsel %vm783, %v1019, 0
      %v1026 = vsel %vm783, %v1021, 0
      %1028 = vmatpush.bf16.xpose.msra.mxu0 0
      %1029 = vmatpush.bf16.xpose.msra.mxu0 0
      %1030 = vmatpush.bf16.xpose.msra.mxu0 0
      %1031 = vmatpush.bf16.xpose.msra.mxu0 0
      %1032 = vmatpush.bf16.xpose.msra.mxu0 0
      %1033 = vmatpush.bf16.xpose.msra.mxu0 0
      %1034 = vmatpush.bf16.xpose.msra.mxu0 0
      %1035 = vmatpush.bf16.xpose.msra.mxu0 %v1026
      %1036 = vmatmul.bf16.gmra.mxu0 %v1023
      %v1037 = vpop.f32.mrf.mxu0
      %v1038 = vadd.f32 0.0, %v1037
      %v1039 = vpop.f32.mrf.mxu0
      %1040 = vdwg.mxu0
      %v1041 = vmul.f32 %v1038, 0.35355338
      %v1042 = vsel %vm783, %v1041, -inf
      %1043 = vmax.xlane.f32.xlu0 %v1042
      %v1044 = vpop.xlane.xlu0 %1043
      %v1045 = vsub.f32 %v1041, %v1044
      %v1046 = vmul.f32 %v1045, 1.442695
      %v1047 = vpow.pop %v1046
      %v1048 = vsel %vm783, %v1047, 0.0
      %1049 = vadd.xlane.f32.xlu0 %v1048
      %v1050 = vpop.xlane.xlu0 %1049
      %v1051 = vrcp.pop %v1050
      %v1052 = vmul.f32 %v1047, %v1051
      %v1053 = vpack.c.bf16 %v1052, %v1052
      %1054 = vrot.lane.b32.xlu0 %v779, 40
      %v1055 = vpop.permute.xlu0 %1054
      %v1057 = vsel %vm783, %v1053, 0
      %v1060 = vsel %vm821, %v1055, 0
      %1062 = vmatpush.bf16.msra.mxu0 0
      %1063 = vmatpush.bf16.msra.mxu0 0
      %1064 = vmatpush.bf16.msra.mxu0 0
      %1065 = vmatpush.bf16.msra.mxu0 0
      %1066 = vmatpush.bf16.msra.mxu0 0
      %1067 = vmatpush.bf16.msra.mxu0 0
      %1068 = vmatpush.bf16.msra.mxu0 0
      %1069 = vmatpush.bf16.msra.mxu0 %v1060
      %1070 = vmatmul.bf16.gmra.mxu0 %v1057
      %v1071 = vpop.f32.mrf.mxu0
      %v1072 = vadd.f32 0.0, %v1071
      %v1073 = vpop.f32.mrf.mxu0
      %1074 = vdwg.mxu0
      %v1075 = vpack.c.bf16 %v1072, %v1072
      %s1076 = scalar_lea.vmem %s5, 12
      %v1077 = vld [vmem:[%s1076] sm:$0xf]
      %v1079 = vsel %vm783, %v1075, 0
      %v1082 = vsel %vm821, %v1077, 0
      %1084 = vmatpush.bf16.msra.mxu0 0
      %1085 = vmatpush.bf16.msra.mxu0 0
      %1086 = vmatpush.bf16.msra.mxu0 0
      %1087 = vmatpush.bf16.msra.mxu0 0
      %1088 = vmatpush.bf16.msra.mxu0 0
      %1089 = vmatpush.bf16.msra.mxu0 0
      %1090 = vmatpush.bf16.msra.mxu0 0
      %1091 = vmatpush.bf16.msra.mxu0 %v1082
      %1092 = vmatmul.bf16.gmra.mxu0 %v1079
      %v1093 = vpop.f32.mrf.mxu0
      %v1094 = vadd.f32 0.0, %v1093
      %v1095 = vpop.f32.mrf.mxu0
      %1096 = vdwg.mxu0
      %v1097 = vadd.f32 %v1017, %v1094
      %v1098 = vld [vmem:[%s6] sm:$0x1]
      %v1100 = vperm.slane %v1098, 0
      %v1102 = vadd.f32 %v1097, %v1100
      %v1103 = vadd.f32 %v738, %v1102
      %v1104 = vsel %vm762, %v1103, 0.0
      %1105 = vadd.xlane.f32.xlu0 %v1104
      %v1106 = vpop.xlane.xlu0 %1105
      %v1107 = vrcp.pop 32.0
      %v1108 = vmul.f32 32.0, %v1107
      %v1109 = vsub.f32 1.0, %v1108
      %v1110 = vmul.f32 %v1107, %v1109
      %v1111 = vadd.f32 %v1107, %v1110
      %vm1112 = vweird.f32 %v1107
      %v1113 = vsel %vm1112, %v1107, %v1111
      %v1114 = vmul.f32 %v1106, %v1113
      %v1115 = vsub.f32 %v1103, %v1114
      %v1116 = vmul.f32 %v1115, %v1115
      %v1117 = vsel %vm762, %v1116, 0.0
      %1118 = vadd.xlane.f32.xlu0 %v1117
      %v1119 = vpop.xlane.xlu0 %1118
      %v1120 = vmul.f32 %v1119, %v1113
      %v1121 = vadd.f32 %v1120, 1e-05
      %v1122 = vrsqrt.pop %v1121
      %v1123 = vmul.f32 %v1122, %v1121
      %v1124 = vmul.f32 %v1123, %v1122
      %v1125 = vmul.f32 0.5, %v1124
      %v1126 = vsub.f32 1.5, %v1125
      %v1127 = vmul.f32 %v1122, %v1126
      %vm1128 = vweird.f32 %v1121
      %vm1129 = vweird.f32 %v1122
      %vm1130 = vmor %vm1128, %vm1129
      %v1131 = vsel %vm1130, %v1122, %v1127
      %v1132 = vmul.f32 %v1115, %v1131
      %v1133 = vld [vmem:[%s7] sm:$0x1]
      %v1135 = vperm.slane %v1133, 0
      %v1137 = vmul.f32 %v1132, %v1135
      %v1138 = vld [vmem:[%s8] sm:$0x1]
      %v1140 = vperm.slane %v1138, 0
      %v1142 = vadd.f32 %v1137, %v1140
      %v1143 = vpack.c.bf16 %v1142, %v1142
      %v1144 = vld [vmem:[%s9] sm:$0xf]
      %v1145 = vld [vmem:[%s9 + $0x4] sm:$0xf]
      %v1146 = vld [vmem:[%s9 + $0x8] sm:$0xf]
      %v1147 = vld [vmem:[%s9 + $0xc] sm:$0xf]
      %v1148 = vld [vmem:[%s10] sm:$0x1]
      %v1150 = vperm.slane %v1148, 0
      %v1156 = vunpack.c.l.b16 %v1144
      %v1157 = vunpack.c.l.b16 %v1145
      %v1158 = vunpack.c.l.b16 %v1146
      %v1159 = vunpack.c.l.b16 %v1147
      %v1160 = vpack.c.b16 %v1157, %v1156
      %v1161 = vpack.c.b16 %v1159, %v1158
      %v1165 = vsel %vm762, %v1143, 0
      %1167 = vmatpush.bf16.msra.mxu0 0
      %1168 = vmatpush.bf16.msra.mxu0 0
      %1169 = vmatpush.bf16.msra.mxu0 0
      %1170 = vmatpush.bf16.msra.mxu0 0
      %1171 = vmatpush.bf16.msra.mxu0 0
      %1172 = vmatpush.bf16.msra.mxu0 0
      %1173 = vmatpush.bf16.msra.mxu0 %v1161
      %1174 = vmatpush.bf16.msra.mxu0 %v1160
      %1175 = vmatmul.bf16.gmra.mxu0 %v1165
      %v1176 = vpop.f32.mrf.mxu0
      %v1177 = vadd.f32 %v1150, %v1176
      %v1178 = vpop.f32.mrf.mxu0
      %1179 = vdwg.mxu0
      %v1180 = vpack.c.bf16 %v739, %v739
      %v1181 = vld [vmem:[%s11] sm:$0xf]
      %v1182 = vld [vmem:[%s11 + $0x4] sm:$0xf]
      %v1183 = vld [vmem:[%s11 + $0x8] sm:$0xf]
      %v1184 = vld [vmem:[%s11 + $0xc] sm:$0xf]
      %v1185 = vld [vmem:[%s12] sm:$0x1]
      %v1187 = vperm.slane %v1185, 0
      %v1193 = vunpack.c.l.b16 %v1181
      %v1194 = vunpack.c.l.b16 %v1182
      %v1195 = vunpack.c.l.b16 %v1183
      %v1196 = vunpack.c.l.b16 %v1184
      %v1197 = vpack.c.b16 %v1194, %v1193
      %v1198 = vpack.c.b16 %v1196, %v1195
      %v1202 = vsel %vm762, %v1180, 0
      %1204 = vmatpush.bf16.msra.mxu0 0
      %1205 = vmatpush.bf16.msra.mxu0 0
      %1206 = vmatpush.bf16.msra.mxu0 0
      %1207 = vmatpush.bf16.msra.mxu0 0
      %1208 = vmatpush.bf16.msra.mxu0 0
      %1209 = vmatpush.bf16.msra.mxu0 0
      %1210 = vmatpush.bf16.msra.mxu0 %v1198
      %1211 = vmatpush.bf16.msra.mxu0 %v1197
      %1212 = vmatmul.bf16.gmra.mxu0 %v1202
      %v1213 = vpop.f32.mrf.mxu0
      %v1214 = vadd.f32 %v1187, %v1213
      %v1215 = vpop.f32.mrf.mxu0
      %1216 = vdwg.mxu0
      %v1217 = vpack.c.bf16 %v1177, %v1177
      %v1218 = vpack.c.bf16 %v1214, %v1214
      %v1220 = vsel %vm783, %v1217, 0
      %v1223 = vsel %vm783, %v1218, 0
      %1225 = vmatpush.bf16.xpose.msra.mxu0 0
      %1226 = vmatpush.bf16.xpose.msra.mxu0 0
      %1227 = vmatpush.bf16.xpose.msra.mxu0 0
      %1228 = vmatpush.bf16.xpose.msra.mxu0 0
      %1229 = vmatpush.bf16.xpose.msra.mxu0 0
      %1230 = vmatpush.bf16.xpose.msra.mxu0 0
      %1231 = vmatpush.bf16.xpose.msra.mxu0 0
      %1232 = vmatpush.bf16.xpose.msra.mxu0 %v1223
      %1233 = vmatmul.bf16.gmra.mxu0 %v1220
      %v1234 = vpop.f32.mrf.mxu0
      %v1235 = vadd.f32 0.0, %v1234
      %v1236 = vpop.f32.mrf.mxu0
      %1237 = vdwg.mxu0
      %v1238 = vmul.f32 %v1235, 0.35355338
      %v1240 = vperm.slane %v740, 0
      %v1242 = vadd.f32 %v1238, %v1240
      %v1243 = vsel %vm783, %v1242, -inf
      %1244 = vmax.xlane.f32.xlu0 %v1243
      %v1245 = vpop.xlane.xlu0 %1244
      %v1246 = vsub.f32 %v1242, %v1245
      %v1247 = vmul.f32 %v1246, 1.442695
      %v1248 = vpow.pop %v1247
      %v1249 = vsel %vm783, %v1248, 0.0
      %1250 = vadd.xlane.f32.xlu0 %v1249
      %v1251 = vpop.xlane.xlu0 %1250
      %v1252 = vrcp.pop %v1251
      %v1253 = vmul.f32 %v1248, %v1252
      %v1254 = vpack.c.bf16 %v1253, %v1253
      %1256 = vrot.lane.b32.xlu0 %v1218, 96
      %v1257 = vpop.permute.xlu0 %1256
      %v1259 = vsel %vm783, %v1254, 0
      %v1262 = vsel %vm821, %v1257, 0
      %1264 = vmatpush.bf16.msra.mxu0 0
      %1265 = vmatpush.bf16.msra.mxu0 0
      %1266 = vmatpush.bf16.msra.mxu0 0
      %1267 = vmatpush.bf16.msra.mxu0 0
      %1268 = vmatpush.bf16.msra.mxu0 0
      %1269 = vmatpush.bf16.msra.mxu0 0
      %1270 = vmatpush.bf16.msra.mxu0 0
      %1271 = vmatpush.bf16.msra.mxu0 %v1262
      %1272 = vmatmul.bf16.gmra.mxu0 %v1259
      %v1273 = vpop.f32.mrf.mxu0
      %v1274 = vadd.f32 0.0, %v1273
      %v1275 = vpop.f32.mrf.mxu0
      %1276 = vdwg.mxu0
      %v1277 = vpack.c.bf16 %v1274, %v1274
      %v1278 = vld [vmem:[%s13] sm:$0xf]
      %1280 = vrot.lane.b32.xlu0 %v1217, 120
      %v1281 = vpop.permute.xlu0 %1280
      %1282 = vrot.lane.b32.xlu0 %v1218, 120
      %v1283 = vpop.permute.xlu0 %1282
      %v1285 = vsel %vm783, %v1281, 0
      %v1288 = vsel %vm783, %v1283, 0
      %1290 = vmatpush.bf16.xpose.msra.mxu0 0
      %1291 = vmatpush.bf16.xpose.msra.mxu0 0
      %1292 = vmatpush.bf16.xpose.msra.mxu0 0
      %1293 = vmatpush.bf16.xpose.msra.mxu0 0
      %1294 = vmatpush.bf16.xpose.msra.mxu0 0
      %1295 = vmatpush.bf16.xpose.msra.mxu0 0
      %1296 = vmatpush.bf16.xpose.msra.mxu0 0
      %1297 = vmatpush.bf16.xpose.msra.mxu0 %v1288
      %1298 = vmatmul.bf16.gmra.mxu0 %v1285
      %v1299 = vpop.f32.mrf.mxu0
      %v1300 = vadd.f32 0.0, %v1299
      %v1301 = vpop.f32.mrf.mxu0
      %1302 = vdwg.mxu0
      %v1303 = vmul.f32 %v1300, 0.35355338
      %v1304 = vadd.f32 %v1303, %v1240
      %v1305 = vsel %vm783, %v1304, -inf
      %1306 = vmax.xlane.f32.xlu0 %v1305
      %v1307 = vpop.xlane.xlu0 %1306
      %v1308 = vsub.f32 %v1304, %v1307
      %v1309 = vmul.f32 %v1308, 1.442695
      %v1310 = vpow.pop %v1309
      %v1311 = vsel %vm783, %v1310, 0.0
      %1312 = vadd.xlane.f32.xlu0 %v1311
      %v1313 = vpop.xlane.xlu0 %1312
      %v1314 = vrcp.pop %v1313
      %v1315 = vmul.f32 %v1310, %v1314
      %v1316 = vpack.c.bf16 %v1315, %v1315
      %1317 = vrot.lane.b32.xlu0 %v1218, 88
      %v1318 = vpop.permute.xlu0 %1317
      %v1320 = vsel %vm783, %v1316, 0
      %v1323 = vsel %vm821, %v1318, 0
      %1325 = vmatpush.bf16.msra.mxu0 0
      %1326 = vmatpush.bf16.msra.mxu0 0
      %1327 = vmatpush.bf16.msra.mxu0 0
      %1328 = vmatpush.bf16.msra.mxu0 0
      %1329 = vmatpush.bf16.msra.mxu0 0
      %1330 = vmatpush.bf16.msra.mxu0 0
      %1331 = vmatpush.bf16.msra.mxu0 0
      %1332 = vmatpush.bf16.msra.mxu0 %v1323
      %1333 = vmatmul.bf16.gmra.mxu0 %v1320
      %v1334 = vpop.f32.mrf.mxu0
      %v1335 = vadd.f32 0.0, %v1334
      %v1336 = vpop.f32.mrf.mxu0
      %1337 = vdwg.mxu0
      %v1338 = vpack.c.bf16 %v1335, %v1335
      %s1339 = scalar_lea.vmem %s13, 4
      %v1340 = vld [vmem:[%s1339] sm:$0xf]
      %v1342 = vsel %vm783, %v1338, 0
      %v1345 = vsel %vm821, %v1340, 0
      %1347 = vmatpush.bf16.msra.mxu0 0
      %1348 = vmatpush.bf16.msra.mxu0 0
      %1349 = vmatpush.bf16.msra.mxu0 0
      %1350 = vmatpush.bf16.msra.mxu0 0
      %1351 = vmatpush.bf16.msra.mxu0 0
      %1352 = vmatpush.bf16.msra.mxu0 0
      %1353 = vmatpush.bf16.msra.mxu0 0
      %1354 = vmatpush.bf16.msra.mxu0 %v1345
      %1355 = vmatmul.bf16.gmra.mxu0 %v1342
      %v1356 = vpop.f32.mrf.mxu0
      %v1357 = vadd.f32 0.0, %v1356
      %v1358 = vpop.f32.mrf.mxu0
      %1359 = vdwg.mxu0
      %v1361 = vsel %vm783, %v1277, 0
      %v1364 = vsel %vm821, %v1278, 0
      %1366 = vmatpush.bf16.msra.mxu0 0
      %1367 = vmatpush.bf16.msra.mxu0 0
      %1368 = vmatpush.bf16.msra.mxu0 0
      %1369 = vmatpush.bf16.msra.mxu0 0
      %1370 = vmatpush.bf16.msra.mxu0 0
      %1371 = vmatpush.bf16.msra.mxu0 0
      %1372 = vmatpush.bf16.msra.mxu0 0
      %1373 = vmatpush.bf16.msra.mxu0 %v1364
      %1374 = vmatmul.bf16.gmra.mxu0 %v1361
      %v1375 = vpop.f32.mrf.mxu0
      %v1376 = vadd.f32 %v1357, %v1375
      %v1377 = vpop.f32.mrf.mxu0
      %1378 = vdwg.mxu0
      %1379 = vrot.lane.b32.xlu0 %v1217, 112
      %v1380 = vpop.permute.xlu0 %1379
      %1381 = vrot.lane.b32.xlu0 %v1218, 112
      %v1382 = vpop.permute.xlu0 %1381
      %v1384 = vsel %vm783, %v1380, 0
      %v1387 = vsel %vm783, %v1382, 0
      %1389 = vmatpush.bf16.xpose.msra.mxu0 0
      %1390 = vmatpush.bf16.xpose.msra.mxu0 0
      %1391 = vmatpush.bf16.xpose.msra.mxu0 0
      %1392 = vmatpush.bf16.xpose.msra.mxu0 0
      %1393 = vmatpush.bf16.xpose.msra.mxu0 0
      %1394 = vmatpush.bf16.xpose.msra.mxu0 0
      %1395 = vmatpush.bf16.xpose.msra.mxu0 0
      %1396 = vmatpush.bf16.xpose.msra.mxu0 %v1387
      %1397 = vmatmul.bf16.gmra.mxu0 %v1384
      %v1398 = vpop.f32.mrf.mxu0
      %v1399 = vadd.f32 0.0, %v1398
      %v1400 = vpop.f32.mrf.mxu0
      %1401 = vdwg.mxu0
      %v1402 = vmul.f32 %v1399, 0.35355338
      %v1403 = vadd.f32 %v1402, %v1240
      %v1404 = vsel %vm783, %v1403, -inf
      %1405 = vmax.xlane.f32.xlu0 %v1404
      %v1406 = vpop.xlane.xlu0 %1405
      %v1407 = vsub.f32 %v1403, %v1406
      %v1408 = vmul.f32 %v1407, 1.442695
      %v1409 = vpow.pop %v1408
      %v1410 = vsel %vm783, %v1409, 0.0
      %1411 = vadd.xlane.f32.xlu0 %v1410
      %v1412 = vpop.xlane.xlu0 %1411
      %v1413 = vrcp.pop %v1412
      %v1414 = vmul.f32 %v1409, %v1413
      %v1415 = vpack.c.bf16 %v1414, %v1414
      %1416 = vrot.lane.b32.xlu0 %v1218, 80
      %v1417 = vpop.permute.xlu0 %1416
      %v1419 = vsel %vm783, %v1415, 0
      %v1422 = vsel %vm821, %v1417, 0
      %1424 = vmatpush.bf16.msra.mxu0 0
      %1425 = vmatpush.bf16.msra.mxu0 0
      %1426 = vmatpush.bf16.msra.mxu0 0
      %1427 = vmatpush.bf16.msra.mxu0 0
      %1428 = vmatpush.bf16.msra.mxu0 0
      %1429 = vmatpush.bf16.msra.mxu0 0
      %1430 = vmatpush.bf16.msra.mxu0 0
      %1431 = vmatpush.bf16.msra.mxu0 %v1422
      %1432 = vmatmul.bf16.gmra.mxu0 %v1419
      %v1433 = vpop.f32.mrf.mxu0
      %v1434 = vadd.f32 0.0, %v1433
      %v1435 = vpop.f32.mrf.mxu0
      %1436 = vdwg.mxu0
      %v1437 = vpack.c.bf16 %v1434, %v1434
      %s1438 = scalar_lea.vmem %s13, 8
      %v1439 = vld [vmem:[%s1438] sm:$0xf]
      %v1441 = vsel %vm783, %v1437, 0
      %v1444 = vsel %vm821, %v1439, 0
      %1446 = vmatpush.bf16.msra.mxu0 0
      %1447 = vmatpush.bf16.msra.mxu0 0
      %1448 = vmatpush.bf16.msra.mxu0 0
      %1449 = vmatpush.bf16.msra.mxu0 0
      %1450 = vmatpush.bf16.msra.mxu0 0
      %1451 = vmatpush.bf16.msra.mxu0 0
      %1452 = vmatpush.bf16.msra.mxu0 0
      %1453 = vmatpush.bf16.msra.mxu0 %v1444
      %1454 = vmatmul.bf16.gmra.mxu0 %v1441
      %v1455 = vpop.f32.mrf.mxu0
      %v1456 = vadd.f32 0.0, %v1455
      %v1457 = vpop.f32.mrf.mxu0
      %1458 = vdwg.mxu0
      %v1459 = vadd.f32 %v1376, %v1456
      %1460 = vrot.lane.b32.xlu0 %v1217, 104
      %v1461 = vpop.permute.xlu0 %1460
      %1462 = vrot.lane.b32.xlu0 %v1218, 104
      %v1463 = vpop.permute.xlu0 %1462
      %v1465 = vsel %vm783, %v1461, 0
      %v1468 = vsel %vm783, %v1463, 0
      %1470 = vmatpush.bf16.xpose.msra.mxu0 0
      %1471 = vmatpush.bf16.xpose.msra.mxu0 0
      %1472 = vmatpush.bf16.xpose.msra.mxu0 0
      %1473 = vmatpush.bf16.xpose.msra.mxu0 0
      %1474 = vmatpush.bf16.xpose.msra.mxu0 0
      %1475 = vmatpush.bf16.xpose.msra.mxu0 0
      %1476 = vmatpush.bf16.xpose.msra.mxu0 0
      %1477 = vmatpush.bf16.xpose.msra.mxu0 %v1468
      %1478 = vmatmul.bf16.gmra.mxu0 %v1465
      %v1479 = vpop.f32.mrf.mxu0
      %v1480 = vadd.f32 0.0, %v1479
      %v1481 = vpop.f32.mrf.mxu0
      %1482 = vdwg.mxu0
      %v1483 = vmul.f32 %v1480, 0.35355338
      %v1484 = vadd.f32 %v1483, %v1240
      %v1485 = vsel %vm783, %v1484, -inf
      %1486 = vmax.xlane.f32.xlu0 %v1485
      %v1487 = vpop.xlane.xlu0 %1486
      %v1488 = vsub.f32 %v1484, %v1487
      %v1489 = vmul.f32 %v1488, 1.442695
      %v1490 = vpow.pop %v1489
      %v1491 = vsel %vm783, %v1490, 0.0
      %1492 = vadd.xlane.f32.xlu0 %v1491
      %v1493 = vpop.xlane.xlu0 %1492
      %v1494 = vrcp.pop %v1493
      %v1495 = vmul.f32 %v1490, %v1494
      %v1496 = vpack.c.bf16 %v1495, %v1495
      %1497 = vrot.lane.b32.xlu0 %v1218, 72
      %v1498 = vpop.permute.xlu0 %1497
      %v1500 = vsel %vm783, %v1496, 0
      %v1503 = vsel %vm821, %v1498, 0
      %1505 = vmatpush.bf16.msra.mxu0 0
      %1506 = vmatpush.bf16.msra.mxu0 0
      %1507 = vmatpush.bf16.msra.mxu0 0
      %1508 = vmatpush.bf16.msra.mxu0 0
      %1509 = vmatpush.bf16.msra.mxu0 0
      %1510 = vmatpush.bf16.msra.mxu0 0
      %1511 = vmatpush.bf16.msra.mxu0 0
      %1512 = vmatpush.bf16.msra.mxu0 %v1503
      %1513 = vmatmul.bf16.gmra.mxu0 %v1500
      %v1514 = vpop.f32.mrf.mxu0
      %v1515 = vadd.f32 0.0, %v1514
      %v1516 = vpop.f32.mrf.mxu0
      %1517 = vdwg.mxu0
      %v1518 = vpack.c.bf16 %v1515, %v1515
      %s1519 = scalar_lea.vmem %s13, 12
      %v1520 = vld [vmem:[%s1519] sm:$0xf]
      %v1522 = vsel %vm783, %v1518, 0
      %v1525 = vsel %vm821, %v1520, 0
      %1527 = vmatpush.bf16.msra.mxu0 0
      %1528 = vmatpush.bf16.msra.mxu0 0
      %1529 = vmatpush.bf16.msra.mxu0 0
      %1530 = vmatpush.bf16.msra.mxu0 0
      %1531 = vmatpush.bf16.msra.mxu0 0
      %1532 = vmatpush.bf16.msra.mxu0 0
      %1533 = vmatpush.bf16.msra.mxu0 0
      %1534 = vmatpush.bf16.msra.mxu0 %v1525
      %1535 = vmatmul.bf16.gmra.mxu0 %v1522
      %v1536 = vpop.f32.mrf.mxu0
      %v1537 = vadd.f32 0.0, %v1536
      %v1538 = vpop.f32.mrf.mxu0
      %1539 = vdwg.mxu0
      %v1540 = vadd.f32 %v1459, %v1537
      %v1541 = vld [vmem:[%s14] sm:$0x1]
      %v1543 = vperm.slane %v1541, 0
      %v1545 = vadd.f32 %v1540, %v1543
      %v1546 = vadd.f32 %v1142, %v1545
      %v1547 = vsel %vm762, %v1546, 0.0
      %1548 = vadd.xlane.f32.xlu0 %v1547
      %v1549 = vpop.xlane.xlu0 %1548
      %v1550 = vmul.f32 %v1549, %v1113
      %v1551 = vsub.f32 %v1546, %v1550
      %v1552 = vmul.f32 %v1551, %v1551
      %v1553 = vsel %vm762, %v1552, 0.0
      %1554 = vadd.xlane.f32.xlu0 %v1553
      %v1555 = vpop.xlane.xlu0 %1554
      %v1556 = vmul.f32 %v1555, %v1113
      %v1557 = vadd.f32 %v1556, 1e-05
      %v1558 = vrsqrt.pop %v1557
      %v1559 = vmul.f32 %v1558, %v1557
      %v1560 = vmul.f32 %v1559, %v1558
      %v1561 = vmul.f32 0.5, %v1560
      %v1562 = vsub.f32 1.5, %v1561
      %v1563 = vmul.f32 %v1558, %v1562
      %vm1564 = vweird.f32 %v1557
      %vm1565 = vweird.f32 %v1558
      %vm1566 = vmor %vm1564, %vm1565
      %v1567 = vsel %vm1566, %v1558, %v1563
      %v1568 = vmul.f32 %v1551, %v1567
      %v1569 = vld [vmem:[%s15] sm:$0x1]
      %v1571 = vperm.slane %v1569, 0
      %v1573 = vmul.f32 %v1568, %v1571
      %v1574 = vld [vmem:[%s16] sm:$0x1]
      %v1576 = vperm.slane %v1574, 0
      %v1578 = vadd.f32 %v1573, %v1576
      %v1579 = vpack.c.bf16 %v1578, %v1578
      %v1580 = vld [vmem:[%s17] sm:$0xf]
      %v1581 = vld [vmem:[%s17 + $0x4] sm:$0xf]
      %v1582 = vld [vmem:[%s17 + $0x8] sm:$0xf]
      %v1583 = vld [vmem:[%s17 + $0xc] sm:$0xf]
      %v1584 = vld [vmem:[%s18] sm:$0x1]
      %v1586 = vperm.slane %v1584, 0
      %v1592 = vunpack.c.l.b16 %v1580
      %v1593 = vunpack.c.l.b16 %v1581
      %v1594 = vunpack.c.l.b16 %v1582
      %v1595 = vunpack.c.l.b16 %v1583
      %v1596 = vpack.c.b16 %v1593, %v1592
      %v1597 = vpack.c.b16 %v1595, %v1594
      %v1601 = vsel %vm762, %v1579, 0
      %1603 = vmatpush.bf16.msra.mxu0 0
      %1604 = vmatpush.bf16.msra.mxu0 0
      %1605 = vmatpush.bf16.msra.mxu0 0
      %1606 = vmatpush.bf16.msra.mxu0 0
      %1607 = vmatpush.bf16.msra.mxu0 0
      %1608 = vmatpush.bf16.msra.mxu0 0
      %1609 = vmatpush.bf16.msra.mxu0 %v1597
      %1610 = vmatpush.bf16.msra.mxu0 %v1596
      %1611 = vmatmul.bf16.gmra.mxu0 %v1601
      %v1612 = vpop.f32.mrf.mxu0
      %v1613 = vadd.f32 %v1586, %v1612
      %v1614 = vpop.f32.mrf.mxu0
      %1615 = vdwg.mxu0
      %v1616 = vmax.f32 %v1613, 0.0
      %v1617 = vpack.c.bf16 %v1616, %v1616
      %v1618 = vld [vmem:[%s19] sm:$0xf]
      %v1619 = vld [vmem:[%s19 + $0x4] sm:$0xf]
      %v1620 = vld [vmem:[%s19 + $0x8] sm:$0xf]
      %v1621 = vld [vmem:[%s19 + $0xc] sm:$0xf]
      %v1622 = vld [vmem:[%s20] sm:$0x1]
      %v1624 = vperm.slane %v1622, 0
      %v1630 = vunpack.c.l.b16 %v1618
      %v1631 = vunpack.c.l.b16 %v1619
      %v1632 = vunpack.c.l.b16 %v1620
      %v1633 = vunpack.c.l.b16 %v1621
      %v1634 = vpack.c.b16 %v1631, %v1630
      %v1635 = vpack.c.b16 %v1633, %v1632
      %v1639 = vsel %vm762, %v1617, 0
      %1641 = vmatpush.bf16.msra.mxu0 0
      %1642 = vmatpush.bf16.msra.mxu0 0
      %1643 = vmatpush.bf16.msra.mxu0 0
      %1644 = vmatpush.bf16.msra.mxu0 0
      %1645 = vmatpush.bf16.msra.mxu0 0
      %1646 = vmatpush.bf16.msra.mxu0 0
      %1647 = vmatpush.bf16.msra.mxu0 %v1635
      %1648 = vmatpush.bf16.msra.mxu0 %v1634
      %1649 = vmatmul.bf16.gmra.mxu0 %v1639
      %v1650 = vpop.f32.mrf.mxu0
      %v1651 = vadd.f32 %v1624, %v1650
      %v1652 = vpop.f32.mrf.mxu0
      %1653 = vdwg.mxu0
      %v1654 = vadd.f32 %v1578, %v1651
      %v1655 = vsel %vm762, %v1654, 0.0
      %1656 = vadd.xlane.f32.xlu0 %v1655
      %v1657 = vpop.xlane.xlu0 %1656
      %v1658 = vmul.f32 %v1657, %v1113
      %v1659 = vsub.f32 %v1654, %v1658
      %v1660 = vmul.f32 %v1659, %v1659
      %v1661 = vsel %vm762, %v1660, 0.0
      %1662 = vadd.xlane.f32.xlu0 %v1661
      %v1663 = vpop.xlane.xlu0 %1662
      %v1664 = vmul.f32 %v1663, %v1113
      %v1665 = vadd.f32 %v1664, 1e-05
      %v1666 = vrsqrt.pop %v1665
      %v1667 = vmul.f32 %v1666, %v1665
      %v1668 = vmul.f32 %v1667, %v1666
      %v1669 = vmul.f32 0.5, %v1668
      %v1670 = vsub.f32 1.5, %v1669
      %v1671 = vmul.f32 %v1666, %v1670
      %vm1672 = vweird.f32 %v1665
      %vm1673 = vweird.f32 %v1666
      %vm1674 = vmor %vm1672, %vm1673
      %v1675 = vsel %vm1674, %v1666, %v1671
      %v1676 = vmul.f32 %v1659, %v1675
      %v1677 = vld [vmem:[%s21] sm:$0x1]
      %v1679 = vperm.slane %v1677, 0
      %v1681 = vmul.f32 %v1676, %v1679
      %v1682 = vld [vmem:[%s22] sm:$0x1]
      %v1684 = vperm.slane %v1682, 0
      %v1686 = vadd.f32 %v1681, %v1684
      %1687 = vst.msk [vmem:[%s736] sm:$0xff] %vm762, %v1686
      %p1688 = scmp.lt.s32.totalorder %s34, 1
      %s1689 = scalar_select %p1688, %s34, 1
      %s1690 = smul.addr %s1689, 8
      %s1691 = scalar_lea.vmem %s23, %s1690
      // Predicated region
      $region113: #{transformer_decoder_forward.3} parent=111 // pred_check
        %p1692 = pneg %p550
      $region114: #{transformer_decoder_forward.3} parent=111 // pred_check_branch
        %1694 = sbr.rel (%p1692) target = $region116
      $region115: #{transformer_decoder_forward.3} parent=111 // pred_region
        _
      $region116: #{transformer_decoder_forward.3} parent=111 // pred_fallthru
        _
    $region112: #{transformer_decoder_forward.3} parent=5 // pred_fallthru
      _
    %p1695 = scmp.le.s32.totalorder 2, %s29
    // Predicated region
    $region117: #{transformer_decoder_forward.3} parent=5 // pred_check
      %p1696 = pneg %p1695
    $region118: #{transformer_decoder_forward.3} parent=5 // pred_check_branch
      %1698 = sbr.rel (%p1696) target = $region120
    $region119: #{transformer_decoder_forward.3} parent=5 // pred_region
      %s1699 = ssub.s32 %s29, 2
      // Predicated region
      $region121: #{transformer_decoder_forward.3} parent=119 // pred_check
        %p1700 = pneg %p556
      $region122: #{transformer_decoder_forward.3} parent=119 // pred_check_branch
        %1702 = sbr.rel (%p1700) target = $region124
      $region123: #{transformer_decoder_forward.3} parent=119 // pred_region
        %p1703 = scmp.lt.s32.totalorder %s35, 1
        %s1704 = scalar_select %p1703, %s35, 1
        %s1705 = smul.addr %s1704, 8
        %s1706 = scalar_lea.vmem %s23, %s1705
      $region124: #{transformer_decoder_forward.3} parent=119 // pred_fallthru
        _
    $region120: #{transformer_decoder_forward.3} parent=5 // pred_fallthru
      _
  $region6: #{transformer_decoder_forward.3} parent=0 // loop_footer
    %s33 = sadd.s32 1, %s29
  $region7: #{transformer_decoder_forward.3} parent=0 // loop_footer_branch
    %28 = sbr.rel target = $region3
  $region8: #{transformer_decoder_forward.3} parent=0 // loop_exit
    _

// kernel: transformer_decoder_forward.4
$region0: #{transformer_decoder_forward.4}
  #allocation0 [shape = 'u32[]', space=smem, size = 0x4, offset = 0x4, fixed_abs, tag = 'smem constant byte address 0x4 - core index']
  #allocation1 [shape = 'u32[72,128]{1,0:T(1,128)}', space=vmem, size = 0x9000, scoped, tag = 'internal scratch']
  %s0 = inlined_call_operand.vmem [shape: f32[2,8,32], index: 0, kind: input, shape index: {}]
  %s1 = inlined_call_operand.vmem [shape: f32[2,8,32], index: 1, kind: input, shape index: {}]
  %s2 = inlined_call_operand.vmem [shape: f32[2,1,8], index: 2, kind: input, shape index: {}]
  %s3 = inlined_call_operand.vmem [shape: bf16[32,96], index: 3, kind: input, shape index: {}]
  %s4 = inlined_call_operand.vmem [shape: f32[1,96], index: 4, kind: input, shape index: {}]
  %s5 = inlined_call_operand.vmem [shape: bf16[4,8,32], index: 5, kind: input, shape index: {}]
  %s6 = inlined_call_operand.vmem [shape: f32[1,32], index: 6, kind: input, shape index: {}]
  %s7 = inlined_call_operand.vmem [shape: f32[1,32], index: 7, kind: input, shape index: {}]
  %s8 = inlined_call_operand.vmem [shape: f32[1,32], index: 8, kind: input, shape index: {}]
  %s9 = inlined_call_operand.vmem [shape: bf16[32,32], index: 9, kind: input, shape index: {}]
  %s10 = inlined_call_operand.vmem [shape: f32[1,32], index: 10, kind: input, shape index: {}]
  %s11 = inlined_call_operand.vmem [shape: bf16[32,64], index: 11, kind: input, shape index: {}]
  %s12 = inlined_call_operand.vmem [shape: f32[1,64], index: 12, kind: input, shape index: {}]
  %s13 = inlined_call_operand.vmem [shape: bf16[4,8,32], index: 13, kind: input, shape index: {}]
  %s14 = inlined_call_operand.vmem [shape: f32[1,32], index: 14, kind: input, shape index: {}]
  %s15 = inlined_call_operand.hbm [shape: f32[1,32], index: 15, kind: input, shape index: {}]
  %s16 = inlined_call_operand.hbm [shape: f32[1,32], index: 16, kind: input, shape index: {}]
  %s17 = inlined_call_operand.vmem [shape: bf16[32,32], index: 17, kind: input, shape index: {}]
  %s18 = inlined_call_operand.hbm [shape: f32[1,32], index: 18, kind: input, shape index: {}]
  %s19 = inlined_call_operand.vmem [shape: bf16[32,32], index: 19, kind: input, shape index: {}]
  %s20 = inlined_call_operand.hbm [shape: f32[1,32], index: 20, kind: input, shape index: {}]
  %s21 = inlined_call_operand.hbm [shape: f32[1,32], index: 21, kind: input, shape index: {}]
  %s22 = inlined_call_operand.hbm [shape: f32[1,32], index: 22, kind: input, shape index: {}]
  %s23 = inlined_call_operand.vmem [shape: f32[2,8,32], index: 23, kind: output, shape index: {}]
  %s24 = sld [smem:[#allocation0]]
  $region149: #{transformer_decoder_forward.4} parent=0
    _
  %s26 = ssub.s32 1, %s24
  %s27 = scalar_select 0, %s26, %s24
  $region1: #{transformer_decoder_forward.4} parent=0
    #allocation2 [shape = 'u8[512]{0}', space=vmem, size = 0x400, scoped, tag = 'input window, operand 15, single buffered']
    #allocation3 [shape = 's32[2]{0}', space=sflag, size = 0x8, scoped, tag = 'scoped memory for transformer_decoder_forward.4']
    #allocation4 [shape = 'u8[512]{0}', space=vmem, size = 0x400, scoped, tag = 'input window, operand 16, single buffered']
    #allocation5 [shape = 's32[1]{0}', space=sflag, size = 0x4, scoped, tag = 'scoped memory for transformer_decoder_forward.4']
    #allocation6 [shape = 'u8[512]{0}', space=vmem, size = 0x400, scoped, tag = 'input window, operand 18, single buffered']
    #allocation7 [shape = 'u8[512]{0}', space=vmem, size = 0x400, scoped, tag = 'input window, operand 20, single buffered']
    #allocation8 [shape = 's32[1]{0}', space=sflag, size = 0x4, scoped, tag = 'scoped memory for transformer_decoder_forward.4']
    #allocation9 [shape = 'u8[512]{0}', space=vmem, size = 0x400, scoped, tag = 'input window, operand 21, single buffered']
    #allocation10 [shape = 'u8[512]{0}', space=vmem, size = 0x400, scoped, tag = 'input window, operand 22, single buffered']
    #allocation11 [shape = 's32[1]{0}', space=sflag, size = 0x4, scoped, tag = 'scoped memory for transformer_decoder_forward.4']
    %28 = vsyncpa [#allocation3], 0
    %29 = vsyncpa [#allocation5], 0
    %30 = vsyncpa [#allocation8], 0
    %31 = vsyncpa [#allocation11], 0
    loop: start=0, step=1, limit=4
    $region2: #{transformer_decoder_forward.4} parent=1 // loop_pre_header
      _
    $region3: #{transformer_decoder_forward.4} parent=1 // loop_header
      %s33 = sphi 0, %s37
      %p34 = scmp.ge.s32.totalorder %s33, 4
      %s43 = sphi 0, %s45
      %s46 = sphi 0, %s43
      %s47 = sphi 0, %s46
      %s63 = sphi 0, %s47
      %s69 = sphi 0, %s71
      %s72 = sphi 0, %s69
      %s73 = sphi 0, %s72
      %s89 = sphi 0, %s73
      %s95 = sphi 0, %s97
      %s98 = sphi 0, %s95
      %s99 = sphi 0, %s98
      %s115 = sphi 0, %s99
      %s119 = sphi 0, %s119
      %s121 = sphi 0, %s119
      %s122 = sphi 0, %s121
      %s136 = sphi 0, %s122
      %s140 = sphi 0, %s140
      %s142 = sphi 0, %s140
      %s143 = sphi 0, %s142
      %s157 = sphi 0, %s143
      %s161 = sphi 0, %s161
      %s163 = sphi 0, %s161
      %s164 = sphi 0, %s163
      %s178 = sphi 0, %s164
      %s182 = sphi 0, %s182
      %s184 = sphi 0, %s182
      %s185 = sphi 0, %s184
      %s199 = sphi 0, %s185
      %s203 = sphi 0, %s203
      %s205 = sphi 0, %s203
      %s206 = sphi 0, %s205
      %s220 = sphi 0, %s206
      %s224 = sphi 0, %s224
      %s226 = sphi 0, %s224
      %s227 = sphi 0, %s226
      %s241 = sphi 0, %s227
      %s245 = sphi 0, %s245
      %s247 = sphi 0, %s245
      %s248 = sphi 0, %s247
      %s262 = sphi 0, %s248
      %s266 = sphi 0, %s266
      %s268 = sphi 0, %s266
      %s269 = sphi 0, %s268
      %s283 = sphi 0, %s269
      %s287 = sphi 0, %s287
      %s289 = sphi 0, %s287
      %s290 = sphi 0, %s289
      %s304 = sphi 0, %s290
      %s308 = sphi 0, %s308
      %s310 = sphi 0, %s308
      %s311 = sphi 0, %s310
      %s325 = sphi 0, %s311
      %s329 = sphi 0, %s329
      %s331 = sphi 0, %s329
      %s332 = sphi 0, %s331
      %s346 = sphi 0, %s332
      %s350 = sphi 0, %s350
      %s352 = sphi 0, %s350
      %s353 = sphi 0, %s352
      %s367 = sphi 0, %s353
      %s371 = sphi 0, %s371
      %s373 = sphi 0, %s371
      %s374 = sphi 0, %s373
      %s388 = sphi 0, %s374
      %s392 = sphi 0, %s392
      %s394 = sphi 0, %s392
      %s395 = sphi 0, %s394
      %s409 = sphi 0, %s395
      %s413 = sphi 0, %s413
      %s415 = sphi 0, %s413
      %s416 = sphi 0, %s415
      %s430 = sphi 0, %s416
      %s434 = sphi 0, %s434
      %s436 = sphi 0, %s434
      %s437 = sphi 0, %s436
      %s451 = sphi 0, %s437
      %s455 = sphi 0, %s455
      %s457 = sphi 0, %s455
      %s458 = sphi 0, %s457
      %s472 = sphi 0, %s458
      %s476 = sphi 0, %s476
      %s478 = sphi 0, %s476
      %s479 = sphi 0, %s478
      %s493 = sphi 0, %s479
      %s497 = sphi 0, %s497
      %s499 = sphi 0, %s497
      %s500 = sphi 0, %s499
      %s514 = sphi 0, %s500
      %s518 = sphi 0, %s518
      %s520 = sphi 0, %s518
      %s521 = sphi 0, %s520
      %s535 = sphi 0, %s521
      %s541 = sphi 0, %s543
      %s544 = sphi 0, %s541
      %s545 = sphi 0, %s544
      %s561 = sphi 0, %s545
    $region4: #{transformer_decoder_forward.4} parent=1 // loop_header_branch
      %36 = sbr.rel (%p34) target = $region8
    $region5: #{transformer_decoder_forward.4} parent=1 // loop_body
      %s38 = ssub.s32 %s33, 1
      %s39 = ssub.s32 %s33, 2
      %s40 = sadd.s32 %s33, 1
      %s41 = ssub.s32 %s33, %s40
      %p42 = scmp.eq.s32.totalorder %s41, 0
      %s44 = sadd.s32 %s43, 1
      %s45 = scalar_select %p42, %s43, %s44
      %p48 = pneg %p42
      %p49 = scmp.eq.s32.totalorder %s33, 1
      %p50 = por %p48, %p49
      %p51 = scmp.ne.s32.totalorder %s43, %s46
      %p52 = scmp.eq.s32.totalorder %s33, 0
      %p53 = por %p51, %p52
      %p54 = scmp.ne.s32.totalorder %s43, %s46
      %p55 = scmp.eq.s32.totalorder %s38, 1
      %p56 = por %p54, %p55
      %p57 = scmp.ne.s32.totalorder %s46, %s47
      %p58 = scmp.eq.s32.totalorder %s38, 0
      %p59 = por %p57, %p58
      %p60 = scmp.ne.s32.totalorder %s46, %s47
      %p61 = scmp.eq.s32.totalorder %s39, 1
      %p62 = por %p60, %p61
      %p64 = scmp.ne.s32.totalorder %s47, %s63
      %p65 = scmp.eq.s32.totalorder %s39, 0
      %p66 = por %p64, %p65
      %s67 = ssub.s32 %s33, %s40
      %p68 = scmp.eq.s32.totalorder %s67, 0
      %s70 = sadd.s32 %s69, 1
      %s71 = scalar_select %p68, %s69, %s70
      %p74 = pneg %p68
      %p75 = scmp.eq.s32.totalorder %s33, 1
      %p76 = por %p74, %p75
      %p77 = scmp.ne.s32.totalorder %s69, %s72
      %p78 = scmp.eq.s32.totalorder %s33, 0
      %p79 = por %p77, %p78
      %p80 = scmp.ne.s32.totalorder %s69, %s72
      %p81 = scmp.eq.s32.totalorder %s38, 1
      %p82 = por %p80, %p81
      %p83 = scmp.ne.s32.totalorder %s72, %s73
      %p84 = scmp.eq.s32.totalorder %s38, 0
      %p85 = por %p83, %p84
      %p86 = scmp.ne.s32.totalorder %s72, %s73
      %p87 = scmp.eq.s32.totalorder %s39, 1
      %p88 = por %p86, %p87
      %p90 = scmp.ne.s32.totalorder %s73, %s89
      %p91 = scmp.eq.s32.totalorder %s39, 0
      %p92 = por %p90, %p91
      %s93 = ssub.s32 %s33, %s40
      %p94 = scmp.eq.s32.totalorder %s93, 0
      %s96 = sadd.s32 %s95, 1
      %s97 = scalar_select %p94, %s95, %s96
      %p100 = pneg %p94
      %p101 = scmp.eq.s32.totalorder %s33, 1
      %p102 = por %p100, %p101
      %p103 = scmp.ne.s32.totalorder %s95, %s98
      %p104 = scmp.eq.s32.totalorder %s33, 0
      %p105 = por %p103, %p104
      %p106 = scmp.ne.s32.totalorder %s95, %s98
      %p107 = scmp.eq.s32.totalorder %s38, 1
      %p108 = por %p106, %p107
      %p109 = scmp.ne.s32.totalorder %s98, %s99
      %p110 = scmp.eq.s32.totalorder %s38, 0
      %p111 = por %p109, %p110
      %p112 = scmp.ne.s32.totalorder %s98, %s99
      %p113 = scmp.eq.s32.totalorder %s39, 1
      %p114 = por %p112, %p113
      %p116 = scmp.ne.s32.totalorder %s99, %s115
      %p117 = scmp.eq.s32.totalorder %s39, 0
      %p118 = por %p116, %p117
      %s120 = sadd.s32 %s119, 1
      %p123 = scmp.eq.s32.totalorder %s33, 1
      %p124 = scmp.ne.s32.totalorder %s119, %s121
      %p125 = scmp.eq.s32.totalorder %s33, 0
      %p126 = por %p124, %p125
      %p127 = scmp.ne.s32.totalorder %s119, %s121
      %p128 = scmp.eq.s32.totalorder %s38, 1
      %p129 = por %p127, %p128
      %p130 = scmp.ne.s32.totalorder %s121, %s122
      %p131 = scmp.eq.s32.totalorder %s38, 0
      %p132 = por %p130, %p131
      %p133 = scmp.ne.s32.totalorder %s121, %s122
      %p134 = scmp.eq.s32.totalorder %s39, 1
      %p135 = por %p133, %p134
      %p137 = scmp.ne.s32.totalorder %s122, %s136
      %p138 = scmp.eq.s32.totalorder %s39, 0
      %p139 = por %p137, %p138
      %s141 = sadd.s32 %s140, 1
      %p144 = scmp.eq.s32.totalorder %s33, 1
      %p145 = scmp.ne.s32.totalorder %s140, %s142
      %p146 = scmp.eq.s32.totalorder %s33, 0
      %p147 = por %p145, %p146
      %p148 = scmp.ne.s32.totalorder %s140, %s142
      %p149 = scmp.eq.s32.totalorder %s38, 1
      %p150 = por %p148, %p149
      %p151 = scmp.ne.s32.totalorder %s142, %s143
      %p152 = scmp.eq.s32.totalorder %s38, 0
      %p153 = por %p151, %p152
      %p154 = scmp.ne.s32.totalorder %s142, %s143
      %p155 = scmp.eq.s32.totalorder %s39, 1
      %p156 = por %p154, %p155
      %p158 = scmp.ne.s32.totalorder %s143, %s157
      %p159 = scmp.eq.s32.totalorder %s39, 0
      %p160 = por %p158, %p159
      %s162 = sadd.s32 %s161, 1
      %p165 = scmp.eq.s32.totalorder %s33, 1
      %p166 = scmp.ne.s32.totalorder %s161, %s163
      %p167 = scmp.eq.s32.totalorder %s33, 0
      %p168 = por %p166, %p167
      %p169 = scmp.ne.s32.totalorder %s161, %s163
      %p170 = scmp.eq.s32.totalorder %s38, 1
      %p171 = por %p169, %p170
      %p172 = scmp.ne.s32.totalorder %s163, %s164
      %p173 = scmp.eq.s32.totalorder %s38, 0
      %p174 = por %p172, %p173
      %p175 = scmp.ne.s32.totalorder %s163, %s164
      %p176 = scmp.eq.s32.totalorder %s39, 1
      %p177 = por %p175, %p176
      %p179 = scmp.ne.s32.totalorder %s164, %s178
      %p180 = scmp.eq.s32.totalorder %s39, 0
      %p181 = por %p179, %p180
      %s183 = sadd.s32 %s182, 1
      %p186 = scmp.eq.s32.totalorder %s33, 1
      %p187 = scmp.ne.s32.totalorder %s182, %s184
      %p188 = scmp.eq.s32.totalorder %s33, 0
      %p189 = por %p187, %p188
      %p190 = scmp.ne.s32.totalorder %s182, %s184
      %p191 = scmp.eq.s32.totalorder %s38, 1
      %p192 = por %p190, %p191
      %p193 = scmp.ne.s32.totalorder %s184, %s185
      %p194 = scmp.eq.s32.totalorder %s38, 0
      %p195 = por %p193, %p194
      %p196 = scmp.ne.s32.totalorder %s184, %s185
      %p197 = scmp.eq.s32.totalorder %s39, 1
      %p198 = por %p196, %p197
      %p200 = scmp.ne.s32.totalorder %s185, %s199
      %p201 = scmp.eq.s32.totalorder %s39, 0
      %p202 = por %p200, %p201
      %s204 = sadd.s32 %s203, 1
      %p207 = scmp.eq.s32.totalorder %s33, 1
      %p208 = scmp.ne.s32.totalorder %s203, %s205
      %p209 = scmp.eq.s32.totalorder %s33, 0
      %p210 = por %p208, %p209
      %p211 = scmp.ne.s32.totalorder %s203, %s205
      %p212 = scmp.eq.s32.totalorder %s38, 1
      %p213 = por %p211, %p212
      %p214 = scmp.ne.s32.totalorder %s205, %s206
      %p215 = scmp.eq.s32.totalorder %s38, 0
      %p216 = por %p214, %p215
      %p217 = scmp.ne.s32.totalorder %s205, %s206
      %p218 = scmp.eq.s32.totalorder %s39, 1
      %p219 = por %p217, %p218
      %p221 = scmp.ne.s32.totalorder %s206, %s220
      %p222 = scmp.eq.s32.totalorder %s39, 0
      %p223 = por %p221, %p222
      %s225 = sadd.s32 %s224, 1
      %p228 = scmp.eq.s32.totalorder %s33, 1
      %p229 = scmp.ne.s32.totalorder %s224, %s226
      %p230 = scmp.eq.s32.totalorder %s33, 0
      %p231 = por %p229, %p230
      %p232 = scmp.ne.s32.totalorder %s224, %s226
      %p233 = scmp.eq.s32.totalorder %s38, 1
      %p234 = por %p232, %p233
      %p235 = scmp.ne.s32.totalorder %s226, %s227
      %p236 = scmp.eq.s32.totalorder %s38, 0
      %p237 = por %p235, %p236
      %p238 = scmp.ne.s32.totalorder %s226, %s227
      %p239 = scmp.eq.s32.totalorder %s39, 1
      %p240 = por %p238, %p239
      %p242 = scmp.ne.s32.totalorder %s227, %s241
      %p243 = scmp.eq.s32.totalorder %s39, 0
      %p244 = por %p242, %p243
      %s246 = sadd.s32 %s245, 1
      %p249 = scmp.eq.s32.totalorder %s33, 1
      %p250 = scmp.ne.s32.totalorder %s245, %s247
      %p251 = scmp.eq.s32.totalorder %s33, 0
      %p252 = por %p250, %p251
      %p253 = scmp.ne.s32.totalorder %s245, %s247
      %p254 = scmp.eq.s32.totalorder %s38, 1
      %p255 = por %p253, %p254
      %p256 = scmp.ne.s32.totalorder %s247, %s248
      %p257 = scmp.eq.s32.totalorder %s38, 0
      %p258 = por %p256, %p257
      %p259 = scmp.ne.s32.totalorder %s247, %s248
      %p260 = scmp.eq.s32.totalorder %s39, 1
      %p261 = por %p259, %p260
      %p263 = scmp.ne.s32.totalorder %s248, %s262
      %p264 = scmp.eq.s32.totalorder %s39, 0
      %p265 = por %p263, %p264
      %s267 = sadd.s32 %s266, 1
      %p270 = scmp.eq.s32.totalorder %s33, 1
      %p271 = scmp.ne.s32.totalorder %s266, %s268
      %p272 = scmp.eq.s32.totalorder %s33, 0
      %p273 = por %p271, %p272
      %p274 = scmp.ne.s32.totalorder %s266, %s268
      %p275 = scmp.eq.s32.totalorder %s38, 1
      %p276 = por %p274, %p275
      %p277 = scmp.ne.s32.totalorder %s268, %s269
      %p278 = scmp.eq.s32.totalorder %s38, 0
      %p279 = por %p277, %p278
      %p280 = scmp.ne.s32.totalorder %s268, %s269
      %p281 = scmp.eq.s32.totalorder %s39, 1
      %p282 = por %p280, %p281
      %p284 = scmp.ne.s32.totalorder %s269, %s283
      %p285 = scmp.eq.s32.totalorder %s39, 0
      %p286 = por %p284, %p285
      %s288 = sadd.s32 %s287, 1
      %p291 = scmp.eq.s32.totalorder %s33, 1
      %p292 = scmp.ne.s32.totalorder %s287, %s289
      %p293 = scmp.eq.s32.totalorder %s33, 0
      %p294 = por %p292, %p293
      %p295 = scmp.ne.s32.totalorder %s287, %s289
      %p296 = scmp.eq.s32.totalorder %s38, 1
      %p297 = por %p295, %p296
      %p298 = scmp.ne.s32.totalorder %s289, %s290
      %p299 = scmp.eq.s32.totalorder %s38, 0
      %p300 = por %p298, %p299
      %p301 = scmp.ne.s32.totalorder %s289, %s290
      %p302 = scmp.eq.s32.totalorder %s39, 1
      %p303 = por %p301, %p302
      %p305 = scmp.ne.s32.totalorder %s290, %s304
      %p306 = scmp.eq.s32.totalorder %s39, 0
      %p307 = por %p305, %p306
      %s309 = sadd.s32 %s308, 1
      %p312 = scmp.eq.s32.totalorder %s33, 1
      %p313 = scmp.ne.s32.totalorder %s308, %s310
      %p314 = scmp.eq.s32.totalorder %s33, 0
      %p315 = por %p313, %p314
      %p316 = scmp.ne.s32.totalorder %s308, %s310
      %p317 = scmp.eq.s32.totalorder %s38, 1
      %p318 = por %p316, %p317
      %p319 = scmp.ne.s32.totalorder %s310, %s311
      %p320 = scmp.eq.s32.totalorder %s38, 0
      %p321 = por %p319, %p320
      %p322 = scmp.ne.s32.totalorder %s310, %s311
      %p323 = scmp.eq.s32.totalorder %s39, 1
      %p324 = por %p322, %p323
      %p326 = scmp.ne.s32.totalorder %s311, %s325
      %p327 = scmp.eq.s32.totalorder %s39, 0
      %p328 = por %p326, %p327
      %s330 = sadd.s32 %s329, 1
      %p333 = scmp.eq.s32.totalorder %s33, 1
      %p334 = scmp.ne.s32.totalorder %s329, %s331
      %p335 = scmp.eq.s32.totalorder %s33, 0
      %p336 = por %p334, %p335
      %p337 = scmp.ne.s32.totalorder %s329, %s331
      %p338 = scmp.eq.s32.totalorder %s38, 1
      %p339 = por %p337, %p338
      %p340 = scmp.ne.s32.totalorder %s331, %s332
      %p341 = scmp.eq.s32.totalorder %s38, 0
      %p342 = por %p340, %p341
      %p343 = scmp.ne.s32.totalorder %s331, %s332
      %p344 = scmp.eq.s32.totalorder %s39, 1
      %p345 = por %p343, %p344
      %p347 = scmp.ne.s32.totalorder %s332, %s346
      %p348 = scmp.eq.s32.totalorder %s39, 0
      %p349 = por %p347, %p348
      %s351 = sadd.s32 %s350, 1
      %p354 = scmp.eq.s32.totalorder %s33, 1
      %p355 = scmp.ne.s32.totalorder %s350, %s352
      %p356 = scmp.eq.s32.totalorder %s33, 0
      %p357 = por %p355, %p356
      %p358 = scmp.ne.s32.totalorder %s350, %s352
      %p359 = scmp.eq.s32.totalorder %s38, 1
      %p360 = por %p358, %p359
      %p361 = scmp.ne.s32.totalorder %s352, %s353
      %p362 = scmp.eq.s32.totalorder %s38, 0
      %p363 = por %p361, %p362
      %p364 = scmp.ne.s32.totalorder %s352, %s353
      %p365 = scmp.eq.s32.totalorder %s39, 1
      %p366 = por %p364, %p365
      %p368 = scmp.ne.s32.totalorder %s353, %s367
      %p369 = scmp.eq.s32.totalorder %s39, 0
      %p370 = por %p368, %p369
      %s372 = sadd.s32 %s371, 1
      %p375 = scmp.eq.s32.totalorder %s33, 1
      %p376 = scmp.ne.s32.totalorder %s371, %s373
      %p377 = scmp.eq.s32.totalorder %s33, 0
      %p378 = por %p376, %p377
      %p379 = scmp.ne.s32.totalorder %s371, %s373
      %p380 = scmp.eq.s32.totalorder %s38, 1
      %p381 = por %p379, %p380
      %p382 = scmp.ne.s32.totalorder %s373, %s374
      %p383 = scmp.eq.s32.totalorder %s38, 0
      %p384 = por %p382, %p383
      %p385 = scmp.ne.s32.totalorder %s373, %s374
      %p386 = scmp.eq.s32.totalorder %s39, 1
      %p387 = por %p385, %p386
      %p389 = scmp.ne.s32.totalorder %s374, %s388
      %p390 = scmp.eq.s32.totalorder %s39, 0
      %p391 = por %p389, %p390
      %s393 = sadd.s32 %s392, 1
      %p396 = scmp.eq.s32.totalorder %s33, 1
      %p397 = scmp.ne.s32.totalorder %s392, %s394
      %p398 = scmp.eq.s32.totalorder %s33, 0
      %p399 = por %p397, %p398
      %p400 = scmp.ne.s32.totalorder %s392, %s394
      %p401 = scmp.eq.s32.totalorder %s38, 1
      %p402 = por %p400, %p401
      %p403 = scmp.ne.s32.totalorder %s394, %s395
      %p404 = scmp.eq.s32.totalorder %s38, 0
      %p405 = por %p403, %p404
      %p406 = scmp.ne.s32.totalorder %s394, %s395
      %p407 = scmp.eq.s32.totalorder %s39, 1
      %p408 = por %p406, %p407
      %p410 = scmp.ne.s32.totalorder %s395, %s409
      %p411 = scmp.eq.s32.totalorder %s39, 0
      %p412 = por %p410, %p411
      %s414 = sadd.s32 %s413, 1
      %p417 = scmp.eq.s32.totalorder %s33, 1
      %p418 = scmp.ne.s32.totalorder %s413, %s415
      %p419 = scmp.eq.s32.totalorder %s33, 0
      %p420 = por %p418, %p419
      %p421 = scmp.ne.s32.totalorder %s413, %s415
      %p422 = scmp.eq.s32.totalorder %s38, 1
      %p423 = por %p421, %p422
      %p424 = scmp.ne.s32.totalorder %s415, %s416
      %p425 = scmp.eq.s32.totalorder %s38, 0
      %p426 = por %p424, %p425
      %p427 = scmp.ne.s32.totalorder %s415, %s416
      %p428 = scmp.eq.s32.totalorder %s39, 1
      %p429 = por %p427, %p428
      %p431 = scmp.ne.s32.totalorder %s416, %s430
      %p432 = scmp.eq.s32.totalorder %s39, 0
      %p433 = por %p431, %p432
      %s435 = sadd.s32 %s434, 1
      %p438 = scmp.eq.s32.totalorder %s33, 1
      %p439 = scmp.ne.s32.totalorder %s434, %s436
      %p440 = scmp.eq.s32.totalorder %s33, 0
      %p441 = por %p439, %p440
      %p442 = scmp.ne.s32.totalorder %s434, %s436
      %p443 = scmp.eq.s32.totalorder %s38, 1
      %p444 = por %p442, %p443
      %p445 = scmp.ne.s32.totalorder %s436, %s437
      %p446 = scmp.eq.s32.totalorder %s38, 0
      %p447 = por %p445, %p446
      %p448 = scmp.ne.s32.totalorder %s436, %s437
      %p449 = scmp.eq.s32.totalorder %s39, 1
      %p450 = por %p448, %p449
      %p452 = scmp.ne.s32.totalorder %s437, %s451
      %p453 = scmp.eq.s32.totalorder %s39, 0
      %p454 = por %p452, %p453
      %s456 = sadd.s32 %s455, 1
      %p459 = scmp.eq.s32.totalorder %s33, 1
      %p460 = scmp.ne.s32.totalorder %s455, %s457
      %p461 = scmp.eq.s32.totalorder %s33, 0
      %p462 = por %p460, %p461
      %p463 = scmp.ne.s32.totalorder %s455, %s457
      %p464 = scmp.eq.s32.totalorder %s38, 1
      %p465 = por %p463, %p464
      %p466 = scmp.ne.s32.totalorder %s457, %s458
      %p467 = scmp.eq.s32.totalorder %s38, 0
      %p468 = por %p466, %p467
      %p469 = scmp.ne.s32.totalorder %s457, %s458
      %p470 = scmp.eq.s32.totalorder %s39, 1
      %p471 = por %p469, %p470
      %p473 = scmp.ne.s32.totalorder %s458, %s472
      %p474 = scmp.eq.s32.totalorder %s39, 0
      %p475 = por %p473, %p474
      %s477 = sadd.s32 %s476, 1
      %p480 = scmp.eq.s32.totalorder %s33, 1
      %p481 = scmp.ne.s32.totalorder %s476, %s478
      %p482 = scmp.eq.s32.totalorder %s33, 0
      %p483 = por %p481, %p482
      %p484 = scmp.ne.s32.totalorder %s476, %s478
      %p485 = scmp.eq.s32.totalorder %s38, 1
      %p486 = por %p484, %p485
      %p487 = scmp.ne.s32.totalorder %s478, %s479
      %p488 = scmp.eq.s32.totalorder %s38, 0
      %p489 = por %p487, %p488
      %p490 = scmp.ne.s32.totalorder %s478, %s479
      %p491 = scmp.eq.s32.totalorder %s39, 1
      %p492 = por %p490, %p491
      %p494 = scmp.ne.s32.totalorder %s479, %s493
      %p495 = scmp.eq.s32.totalorder %s39, 0
      %p496 = por %p494, %p495
      %s498 = sadd.s32 %s497, 1
      %p501 = scmp.eq.s32.totalorder %s33, 1
      %p502 = scmp.ne.s32.totalorder %s497, %s499
      %p503 = scmp.eq.s32.totalorder %s33, 0
      %p504 = por %p502, %p503
      %p505 = scmp.ne.s32.totalorder %s497, %s499
      %p506 = scmp.eq.s32.totalorder %s38, 1
      %p507 = por %p505, %p506
      %p508 = scmp.ne.s32.totalorder %s499, %s500
      %p509 = scmp.eq.s32.totalorder %s38, 0
      %p510 = por %p508, %p509
      %p511 = scmp.ne.s32.totalorder %s499, %s500
      %p512 = scmp.eq.s32.totalorder %s39, 1
      %p513 = por %p511, %p512
      %p515 = scmp.ne.s32.totalorder %s500, %s514
      %p516 = scmp.eq.s32.totalorder %s39, 0
      %p517 = por %p515, %p516
      %s519 = sadd.s32 %s518, 1
      %p522 = scmp.eq.s32.totalorder %s33, 1
      %p523 = scmp.ne.s32.totalorder %s518, %s520
      %p524 = scmp.eq.s32.totalorder %s33, 0
      %p525 = por %p523, %p524
      %p526 = scmp.ne.s32.totalorder %s518, %s520
      %p527 = scmp.eq.s32.totalorder %s38, 1
      %p528 = por %p526, %p527
      %p529 = scmp.ne.s32.totalorder %s520, %s521
      %p530 = scmp.eq.s32.totalorder %s38, 0
      %p531 = por %p529, %p530
      %p532 = scmp.ne.s32.totalorder %s520, %s521
      %p533 = scmp.eq.s32.totalorder %s39, 1
      %p534 = por %p532, %p533
      %p536 = scmp.ne.s32.totalorder %s521, %s535
      %p537 = scmp.eq.s32.totalorder %s39, 0
      %p538 = por %p536, %p537
      %s539 = ssub.s32 %s33, %s40
      %p540 = scmp.eq.s32.totalorder %s539, 0
      %s542 = sadd.s32 %s541, 1
      %s543 = scalar_select %p540, %s541, %s542
      %p546 = pneg %p540
      %p547 = scmp.eq.s32.totalorder %s33, 1
      %p548 = por %p546, %p547
      %p549 = scmp.ne.s32.totalorder %s541, %s544
      %p550 = scmp.eq.s32.totalorder %s33, 0
      %p551 = por %p549, %p550
      %p552 = scmp.ne.s32.totalorder %s541, %s544
      %p553 = scmp.eq.s32.totalorder %s38, 1
      %p554 = por %p552, %p553
      %p555 = scmp.ne.s32.totalorder %s544, %s545
      %p556 = scmp.eq.s32.totalorder %s38, 0
      %p557 = por %p555, %p556
      %p558 = scmp.ne.s32.totalorder %s544, %s545
      %p559 = scmp.eq.s32.totalorder %s39, 1
      %p560 = por %p558, %p559
      %p562 = scmp.ne.s32.totalorder %s545, %s561
      %p563 = scmp.eq.s32.totalorder %s39, 0
      %p564 = por %p562, %p563
      %p565 = scmp.le.s32.totalorder 1, %s33
      %p566 = scmp.lt.s32.totalorder %s33, 3
      %p567 = pnand %p565, %p566
      %p568 = pneg %p567
      // Predicated region
      $region9: #{transformer_decoder_forward.4} parent=5 // pred_check
        _
      $region10: #{transformer_decoder_forward.4} parent=5 // pred_check_branch
        %570 = sbr.rel (%p567) target = $region12
      $region11: #{transformer_decoder_forward.4} parent=5 // pred_region
        %s571 = ssub.s32 %s33, 1
        // Predicated region
        $region13: #{transformer_decoder_forward.4} parent=11 // pred_check
          %p572 = pneg %p132
        $region14: #{transformer_decoder_forward.4} parent=11 // pred_check_branch
          %574 = sbr.rel (%p572) target = $region16
        $region15: #{transformer_decoder_forward.4} parent=11 // pred_region
          _
        $region16: #{transformer_decoder_forward.4} parent=11 // pred_fallthru
          _
        // Predicated region
        $region17: #{transformer_decoder_forward.4} parent=11 // pred_check
          %p575 = pneg %p153
        $region18: #{transformer_decoder_forward.4} parent=11 // pred_check_branch
          %577 = sbr.rel (%p575) target = $region20
        $region19: #{transformer_decoder_forward.4} parent=11 // pred_region
          _
        $region20: #{transformer_decoder_forward.4} parent=11 // pred_fallthru
          _
        // Predicated region
        $region21: #{transformer_decoder_forward.4} parent=11 // pred_check
          %p578 = pneg %p174
        $region22: #{transformer_decoder_forward.4} parent=11 // pred_check_branch
          %580 = sbr.rel (%p578) target = $region24
        $region23: #{transformer_decoder_forward.4} parent=11 // pred_region
          _
        $region24: #{transformer_decoder_forward.4} parent=11 // pred_fallthru
          _
        // Predicated region
        $region25: #{transformer_decoder_forward.4} parent=11 // pred_check
          %p581 = pneg %p195
        $region26: #{transformer_decoder_forward.4} parent=11 // pred_check_branch
          %583 = sbr.rel (%p581) target = $region28
        $region27: #{transformer_decoder_forward.4} parent=11 // pred_region
          _
        $region28: #{transformer_decoder_forward.4} parent=11 // pred_fallthru
          _
        // Predicated region
        $region29: #{transformer_decoder_forward.4} parent=11 // pred_check
          %p584 = pneg %p216
        $region30: #{transformer_decoder_forward.4} parent=11 // pred_check_branch
          %586 = sbr.rel (%p584) target = $region32
        $region31: #{transformer_decoder_forward.4} parent=11 // pred_region
          _
        $region32: #{transformer_decoder_forward.4} parent=11 // pred_fallthru
          _
        // Predicated region
        $region33: #{transformer_decoder_forward.4} parent=11 // pred_check
          %p587 = pneg %p237
        $region34: #{transformer_decoder_forward.4} parent=11 // pred_check_branch
          %589 = sbr.rel (%p587) target = $region36
        $region35: #{transformer_decoder_forward.4} parent=11 // pred_region
          _
        $region36: #{transformer_decoder_forward.4} parent=11 // pred_fallthru
          _
        // Predicated region
        $region37: #{transformer_decoder_forward.4} parent=11 // pred_check
          %p590 = pneg %p258
        $region38: #{transformer_decoder_forward.4} parent=11 // pred_check_branch
          %592 = sbr.rel (%p590) target = $region40
        $region39: #{transformer_decoder_forward.4} parent=11 // pred_region
          _
        $region40: #{transformer_decoder_forward.4} parent=11 // pred_fallthru
          _
        // Predicated region
        $region41: #{transformer_decoder_forward.4} parent=11 // pred_check
          %p593 = pneg %p279
        $region42: #{transformer_decoder_forward.4} parent=11 // pred_check_branch
          %595 = sbr.rel (%p593) target = $region44
        $region43: #{transformer_decoder_forward.4} parent=11 // pred_region
          _
        $region44: #{transformer_decoder_forward.4} parent=11 // pred_fallthru
          _
        // Predicated region
        $region45: #{transformer_decoder_forward.4} parent=11 // pred_check
          %p596 = pneg %p300
        $region46: #{transformer_decoder_forward.4} parent=11 // pred_check_branch
          %598 = sbr.rel (%p596) target = $region48
        $region47: #{transformer_decoder_forward.4} parent=11 // pred_region
          _
        $region48: #{transformer_decoder_forward.4} parent=11 // pred_fallthru
          _
        // Predicated region
        $region49: #{transformer_decoder_forward.4} parent=11 // pred_check
          %p599 = pneg %p321
        $region50: #{transformer_decoder_forward.4} parent=11 // pred_check_branch
          %601 = sbr.rel (%p599) target = $region52
        $region51: #{transformer_decoder_forward.4} parent=11 // pred_region
          _
        $region52: #{transformer_decoder_forward.4} parent=11 // pred_fallthru
          _
        // Predicated region
        $region53: #{transformer_decoder_forward.4} parent=11 // pred_check
          %p602 = pneg %p342
        $region54: #{transformer_decoder_forward.4} parent=11 // pred_check_branch
          %604 = sbr.rel (%p602) target = $region56
        $region55: #{transformer_decoder_forward.4} parent=11 // pred_region
          _
        $region56: #{transformer_decoder_forward.4} parent=11 // pred_fallthru
          _
        // Predicated region
        $region57: #{transformer_decoder_forward.4} parent=11 // pred_check
          %p605 = pneg %p363
        $region58: #{transformer_decoder_forward.4} parent=11 // pred_check_branch
          %607 = sbr.rel (%p605) target = $region60
        $region59: #{transformer_decoder_forward.4} parent=11 // pred_region
          _
        $region60: #{transformer_decoder_forward.4} parent=11 // pred_fallthru
          _
        // Predicated region
        $region61: #{transformer_decoder_forward.4} parent=11 // pred_check
          %p608 = pneg %p384
        $region62: #{transformer_decoder_forward.4} parent=11 // pred_check_branch
          %610 = sbr.rel (%p608) target = $region64
        $region63: #{transformer_decoder_forward.4} parent=11 // pred_region
          %612 = vsyncadd [#allocation3], 0
          %s614 = sshll.u32 %s15, 4
          %s615 = int_to_ptr.hbm [resolvable:$true] %s614
          %s616 = sshll.u32 [#allocation2], 4
          %s617 = int_to_ptr.vmem [resolvable:$true] %s616
          %619 = dma.hbm_to_vmem [thread:$0]  %s615, 16, %s617, [#allocation3]
        $region64: #{transformer_decoder_forward.4} parent=11 // pred_fallthru
          _
        // Predicated region
        $region65: #{transformer_decoder_forward.4} parent=11 // pred_check
          %p620 = pneg %p405
        $region66: #{transformer_decoder_forward.4} parent=11 // pred_check_branch
          %622 = sbr.rel (%p620) target = $region68
        $region67: #{transformer_decoder_forward.4} parent=11 // pred_region
          %624 = vsyncadd [#allocation5], 0
          %s626 = sshll.u32 %s16, 4
          %s627 = int_to_ptr.hbm [resolvable:$true] %s626
          %s628 = sshll.u32 [#allocation4], 4
          %s629 = int_to_ptr.vmem [resolvable:$true] %s628
          %631 = dma.hbm_to_vmem [thread:$0]  %s627, 16, %s629, [#allocation5]
        $region68: #{transformer_decoder_forward.4} parent=11 // pred_fallthru
          _
        // Predicated region
        $region69: #{transformer_decoder_forward.4} parent=11 // pred_check
          %p632 = pneg %p426
        $region70: #{transformer_decoder_forward.4} parent=11 // pred_check_branch
          %634 = sbr.rel (%p632) target = $region72
        $region71: #{transformer_decoder_forward.4} parent=11 // pred_region
          _
        $region72: #{transformer_decoder_forward.4} parent=11 // pred_fallthru
          _
        // Predicated region
        $region73: #{transformer_decoder_forward.4} parent=11 // pred_check
          %p635 = pneg %p447
        $region74: #{transformer_decoder_forward.4} parent=11 // pred_check_branch
          %637 = sbr.rel (%p635) target = $region76
        $region75: #{transformer_decoder_forward.4} parent=11 // pred_region
          %639 = vsyncadd [#allocation5], 0
          %s641 = sshll.u32 %s18, 4
          %s642 = int_to_ptr.hbm [resolvable:$true] %s641
          %s643 = sshll.u32 [#allocation6], 4
          %s644 = int_to_ptr.vmem [resolvable:$true] %s643
          %646 = dma.hbm_to_vmem [thread:$0]  %s642, 16, %s644, [#allocation5]
        $region76: #{transformer_decoder_forward.4} parent=11 // pred_fallthru
          _
        // Predicated region
        $region77: #{transformer_decoder_forward.4} parent=11 // pred_check
          %p647 = pneg %p468
        $region78: #{transformer_decoder_forward.4} parent=11 // pred_check_branch
          %649 = sbr.rel (%p647) target = $region80
        $region79: #{transformer_decoder_forward.4} parent=11 // pred_region
          _
        $region80: #{transformer_decoder_forward.4} parent=11 // pred_fallthru
          _
        // Predicated region
        $region81: #{transformer_decoder_forward.4} parent=11 // pred_check
          %p650 = pneg %p489
        $region82: #{transformer_decoder_forward.4} parent=11 // pred_check_branch
          %652 = sbr.rel (%p650) target = $region84
        $region83: #{transformer_decoder_forward.4} parent=11 // pred_region
          %654 = vsyncadd [#allocation8], 0
          %s656 = sshll.u32 %s20, 4
          %s657 = int_to_ptr.hbm [resolvable:$true] %s656
          %s658 = sshll.u32 [#allocation7], 4
          %s659 = int_to_ptr.vmem [resolvable:$true] %s658
          %661 = dma.hbm_to_vmem [thread:$0]  %s657, 16, %s659, [#allocation8]
        $region84: #{transformer_decoder_forward.4} parent=11 // pred_fallthru
          _
        // Predicated region
        $region85: #{transformer_decoder_forward.4} parent=11 // pred_check
          %p662 = pneg %p510
        $region86: #{transformer_decoder_forward.4} parent=11 // pred_check_branch
          %664 = sbr.rel (%p662) target = $region88
        $region87: #{transformer_decoder_forward.4} parent=11 // pred_region
          %666 = vsyncadd [#allocation8], 0
          %s668 = sshll.u32 %s21, 4
          %s669 = int_to_ptr.hbm [resolvable:$true] %s668
          %s670 = sshll.u32 [#allocation9], 4
          %s671 = int_to_ptr.vmem [resolvable:$true] %s670
          %673 = dma.hbm_to_vmem [thread:$0]  %s669, 16, %s671, [#allocation8]
        $region88: #{transformer_decoder_forward.4} parent=11 // pred_fallthru
          _
        // Predicated region
        $region89: #{transformer_decoder_forward.4} parent=11 // pred_check
          %p674 = pneg %p531
        $region90: #{transformer_decoder_forward.4} parent=11 // pred_check_branch
          %676 = sbr.rel (%p674) target = $region92
        $region91: #{transformer_decoder_forward.4} parent=11 // pred_region
          %678 = vsyncadd [#allocation11], 0
          %s680 = sshll.u32 %s22, 4
          %s681 = int_to_ptr.hbm [resolvable:$true] %s680
          %s682 = sshll.u32 [#allocation10], 4
          %s683 = int_to_ptr.vmem [resolvable:$true] %s682
          %685 = dma.hbm_to_vmem [thread:$0]  %s681, 16, %s683, [#allocation11]
        $region92: #{transformer_decoder_forward.4} parent=11 // pred_fallthru
          _
      $region12: #{transformer_decoder_forward.4} parent=5 // pred_fallthru
        _
      %p686 = scmp.lt.s32.totalorder %s33, 2
      // Predicated region
      $region93: #{transformer_decoder_forward.4} parent=5 // pred_check
        %p687 = pneg %p686
      $region94: #{transformer_decoder_forward.4} parent=5 // pred_check_branch
        %689 = sbr.rel (%p687) target = $region96
      $region95: #{transformer_decoder_forward.4} parent=5 // pred_region
        // Predicated region
        $region97: #{transformer_decoder_forward.4} parent=95 // pred_check
          %p690 = pneg %p53
        $region98: #{transformer_decoder_forward.4} parent=95 // pred_check_branch
          %692 = sbr.rel (%p690) target = $region100
        $region99: #{transformer_decoder_forward.4} parent=95 // pred_region
          %p693 = scmp.lt.s32.totalorder %s33, 1
          %s694 = scalar_select %p693, %s33, 1
          %s695 = smul.addr %s694, 8
          %s696 = scalar_lea.vmem %s0, %s695
        $region100: #{transformer_decoder_forward.4} parent=95 // pred_fallthru
          _
        // Predicated region
        $region101: #{transformer_decoder_forward.4} parent=95 // pred_check
          %p697 = pneg %p79
        $region102: #{transformer_decoder_forward.4} parent=95 // pred_check_branch
          %699 = sbr.rel (%p697) target = $region104
        $region103: #{transformer_decoder_forward.4} parent=95 // pred_region
          %p700 = scmp.lt.s32.totalorder %s33, 1
          %s701 = scalar_select %p700, %s33, 1
          %s702 = smul.addr %s701, 8
          %s703 = scalar_lea.vmem %s1, %s702
        $region104: #{transformer_decoder_forward.4} parent=95 // pred_fallthru
          _
        // Predicated region
        $region105: #{transformer_decoder_forward.4} parent=95 // pred_check
          %p704 = pneg %p105
        $region106: #{transformer_decoder_forward.4} parent=95 // pred_check_branch
          %706 = sbr.rel (%p704) target = $region108
        $region107: #{transformer_decoder_forward.4} parent=95 // pred_region
          %p707 = scmp.lt.s32.totalorder %s33, 1
          %s708 = scalar_select %p707, %s33, 1
          %s709 = scalar_lea.vmem %s2, %s708
        $region108: #{transformer_decoder_forward.4} parent=95 // pred_fallthru
          _
      $region96: #{transformer_decoder_forward.4} parent=5 // pred_fallthru
        _
      %p710 = scmp.le.s32.totalorder 1, %s33
      %p711 = scmp.lt.s32.totalorder %s33, 3
      %p712 = pnand %p710, %p711
      %p713 = pneg %p712
      // Predicated region
      $region109: #{transformer_decoder_forward.4} parent=5 // pred_check
        _
      $region110: #{transformer_decoder_forward.4} parent=5 // pred_check_branch
        %715 = sbr.rel (%p712) target = $region112
      $region111: #{transformer_decoder_forward.4} parent=5 // pred_region
        %s716 = ssub.s32 %s33, 1
        // Predicated region
        $region113: #{transformer_decoder_forward.4} parent=111 // pred_check
          %p717 = pneg %p384
        $region114: #{transformer_decoder_forward.4} parent=111 // pred_check_branch
          %719 = sbr.rel (%p717) target = $region116
        $region115: #{transformer_decoder_forward.4} parent=111 // pred_region
          %721 = dma.done [#allocation3], 16
        $region116: #{transformer_decoder_forward.4} parent=111 // pred_fallthru
          _
        // Predicated region
        $region117: #{transformer_decoder_forward.4} parent=111 // pred_check
          %p722 = pneg %p405
        $region118: #{transformer_decoder_forward.4} parent=111 // pred_check_branch
          %724 = sbr.rel (%p722) target = $region120
        $region119: #{transformer_decoder_forward.4} parent=111 // pred_region
          %726 = dma.done [#allocation5], 16
        $region120: #{transformer_decoder_forward.4} parent=111 // pred_fallthru
          _
        // Predicated region
        $region121: #{transformer_decoder_forward.4} parent=111 // pred_check
          %p727 = pneg %p447
        $region122: #{transformer_decoder_forward.4} parent=111 // pred_check_branch
          %729 = sbr.rel (%p727) target = $region124
        $region123: #{transformer_decoder_forward.4} parent=111 // pred_region
          %731 = dma.done [#allocation5], 16
        $region124: #{transformer_decoder_forward.4} parent=111 // pred_fallthru
          _
        // Predicated region
        $region125: #{transformer_decoder_forward.4} parent=111 // pred_check
          %p732 = pneg %p489
        $region126: #{transformer_decoder_forward.4} parent=111 // pred_check_branch
          %734 = sbr.rel (%p732) target = $region128
        $region127: #{transformer_decoder_forward.4} parent=111 // pred_region
          %736 = dma.done [#allocation8], 16
        $region128: #{transformer_decoder_forward.4} parent=111 // pred_fallthru
          _
        // Predicated region
        $region129: #{transformer_decoder_forward.4} parent=111 // pred_check
          %p737 = pneg %p510
        $region130: #{transformer_decoder_forward.4} parent=111 // pred_check_branch
          %739 = sbr.rel (%p737) target = $region132
        $region131: #{transformer_decoder_forward.4} parent=111 // pred_region
          %741 = dma.done [#allocation8], 16
        $region132: #{transformer_decoder_forward.4} parent=111 // pred_fallthru
          _
        // Predicated region
        $region133: #{transformer_decoder_forward.4} parent=111 // pred_check
          %p742 = pneg %p531
        $region134: #{transformer_decoder_forward.4} parent=111 // pred_check_branch
          %744 = sbr.rel (%p742) target = $region136
        $region135: #{transformer_decoder_forward.4} parent=111 // pred_region
          %746 = dma.done [#allocation11], 16
        $region136: #{transformer_decoder_forward.4} parent=111 // pred_fallthru
          _
        %p747 = scmp.lt.s32.totalorder %s38, 1
        %s748 = scalar_select %p747, %s38, 1
        %s749 = smul.addr %s748, 8
        %s750 = scalar_lea.vmem %s0, %s749
        %p751 = pneg %p59
        %p752 = pneg %p56
        %p753 = scmp.lt.s32.totalorder %s38, 1
        %s754 = scalar_select %p753, %s38, 1
        %s755 = smul.addr %s754, 8
        %s756 = scalar_lea.vmem %s1, %s755
        %p757 = pneg %p85
        %p758 = pneg %p82
        %p759 = scmp.lt.s32.totalorder %s38, 1
        %s760 = scalar_select %p759, %s38, 1
        %s761 = scalar_lea.vmem %s2, %s760
        %p762 = pneg %p111
        %p763 = pneg %p108
        %p764 = pneg %p132
        %p765 = pneg %p129
        %p766 = pneg %p153
        %p767 = pneg %p150
        %p768 = pneg %p174
        %p769 = pneg %p171
        %p770 = pneg %p195
        %p771 = pneg %p192
        %p772 = pneg %p216
        %p773 = pneg %p213
        %p774 = pneg %p237
        %p775 = pneg %p234
        %p776 = pneg %p258
        %p777 = pneg %p255
        %p778 = pneg %p279
        %p779 = pneg %p276
        %p780 = pneg %p300
        %p781 = pneg %p297
        %p782 = pneg %p321
        %p783 = pneg %p318
        %p784 = pneg %p342
        %p785 = pneg %p339
        %p786 = pneg %p363
        %p787 = pneg %p360
        %p788 = pneg %p384
        %p789 = pneg %p381
        %p790 = pneg %p405
        %p791 = pneg %p402
        %p792 = pneg %p426
        %p793 = pneg %p423
        %p794 = pneg %p447
        %p795 = pneg %p444
        %p796 = pneg %p468
        %p797 = pneg %p465
        %p798 = pneg %p489
        %p799 = pneg %p486
        %p800 = pneg %p510
        %p801 = pneg %p507
        %p802 = pneg %p531
        %p803 = pneg %p528
        %p804 = pneg %p557
        %p805 = pneg %p554
        %p806 = scmp.lt.s32.totalorder %s38, 1
        %s807 = scalar_select %p806, %s38, 1
        %s808 = smul.addr %s807, 8
        %s809 = scalar_lea.vmem %s23, %s808
        %p810 = scmp.lt.s32.totalorder %s38, 1
        %s811 = scalar_select %p810, %s38, 1
        %s812 = smul.addr %s811, 8
        %s813 = scalar_lea.vmem %s0, %s812
        %p814 = scmp.lt.s32.totalorder %s38, 1
        %s815 = scalar_select %p814, %s38, 1
        %s816 = smul.addr %s815, 8
        %s817 = scalar_lea.vmem %s1, %s816
        %p818 = scmp.lt.s32.totalorder %s38, 1
        %s819 = scalar_select %p818, %s38, 1
        %s820 = scalar_lea.vmem %s2, %s819
        %p821 = scmp.lt.s32.totalorder %s38, 1
        %s822 = scalar_select %p821, %s38, 1
        %s823 = smul.addr %s822, 8
        %s824 = scalar_lea.vmem %s23, %s823
        %v826 = vld [vmem:[%s813] sm:$0xff]
        %v827 = vld [vmem:[%s817] sm:$0xff]
        %v828 = vld [vmem:[%s820] sm:$0x1]
        %v829 = vpack.c.bf16 %v826, %v826
        %v830 = vld [vmem:[%s3] sm:$0xf]
        %v831 = vld [vmem:[%s3 + $0x4] sm:$0xf]
        %v832 = vld [vmem:[%s3 + $0x8] sm:$0xf]
        %v833 = vld [vmem:[%s3 + $0xc] sm:$0xf]
        %v834 = vld [vmem:[%s4] sm:$0x1]
        %v836 = vperm.slane %v834, 0
        %v842 = vunpack.c.l.b16 %v830
        %v843 = vunpack.c.l.b16 %v831
        %v844 = vunpack.c.l.b16 %v832
        %v845 = vunpack.c.l.b16 %v833
        %v846 = vpack.c.b16 %v843, %v842
        %v847 = vpack.c.b16 %v845, %v844
        %vm850 = vcmask 261120
        %v852 = vsel %vm850, %v829, 0
        %854 = vmatpush.bf16.msra.mxu0 0
        %855 = vmatpush.bf16.msra.mxu0 0
        %856 = vmatpush.bf16.msra.mxu0 0
        %857 = vmatpush.bf16.msra.mxu0 0
        %858 = vmatpush.bf16.msra.mxu0 0
        %859 = vmatpush.bf16.msra.mxu0 0
        %860 = vmatpush.bf16.msra.mxu0 %v847
        %861 = vmatpush.bf16.msra.mxu0 %v846
        %862 = vmatmul.bf16.gmra.mxu0 %v852
        %v863 = vpop.f32.mrf.mxu0
        %v864 = vadd.f32 %v836, %v863
        %v865 = vpop.f32.mrf.mxu0
        %866 = vdwg.mxu0
        %v867 = vpack.c.bf16 %v864, %v864
        %869 = vrot.lane.b32.xlu0 %v867, 96
        %v870 = vpop.permute.xlu0 %869
        %vm871 = vcmask 64512
        %v873 = vsel %vm871, %v867, 0
        %v876 = vsel %vm871, %v870, 0
        %878 = vmatpush.bf16.xpose.msra.mxu0 0
        %879 = vmatpush.bf16.xpose.msra.mxu0 0
        %880 = vmatpush.bf16.xpose.msra.mxu0 0
        %881 = vmatpush.bf16.xpose.msra.mxu0 0
        %882 = vmatpush.bf16.xpose.msra.mxu0 0
        %883 = vmatpush.bf16.xpose.msra.mxu0 0
        %884 = vmatpush.bf16.xpose.msra.mxu0 0
        %885 = vmatpush.bf16.xpose.msra.mxu0 %v876
        %886 = vmatmul.bf16.gmra.mxu0 %v873
        %v887 = vpop.f32.mrf.mxu0
        %v888 = vadd.f32 0.0, %v887
        %v889 = vpop.f32.mrf.mxu0
        %890 = vdwg.mxu0
        %v891 = vmul.f32 %v888, 0.35355338
        %v892 = vsel %vm871, %v891, -inf
        %893 = vmax.xlane.f32.xlu0 %v892
        %v894 = vpop.xlane.xlu0 %893
        %v895 = vsub.f32 %v891, %v894
        %v896 = vmul.f32 %v895, 1.442695
        %v897 = vpow.pop %v896
        %v898 = vsel %vm871, %v897, 0.0
        %899 = vadd.xlane.f32.xlu0 %v898
        %v900 = vpop.xlane.xlu0 %899
        %v901 = vrcp.pop %v900
        %v902 = vmul.f32 %v897, %v901
        %v903 = vpack.c.bf16 %v902, %v902
        %904 = vrot.lane.b32.xlu0 %v867, 64
        %v905 = vpop.permute.xlu0 %904
        %v907 = vsel %vm871, %v903, 0
        %vm909 = vcmask 1043456
        %v911 = vsel %vm909, %v905, 0
        %913 = vmatpush.bf16.msra.mxu0 0
        %914 = vmatpush.bf16.msra.mxu0 0
        %915 = vmatpush.bf16.msra.mxu0 0
        %916 = vmatpush.bf16.msra.mxu0 0
        %917 = vmatpush.bf16.msra.mxu0 0
        %918 = vmatpush.bf16.msra.mxu0 0
        %919 = vmatpush.bf16.msra.mxu0 0
        %920 = vmatpush.bf16.msra.mxu0 %v911
        %921 = vmatmul.bf16.gmra.mxu0 %v907
        %v922 = vpop.f32.mrf.mxu0
        %v923 = vadd.f32 0.0, %v922
        %v924 = vpop.f32.mrf.mxu0
        %925 = vdwg.mxu0
        %v926 = vpack.c.bf16 %v923, %v923
        %v927 = vld [vmem:[%s5] sm:$0xf]
        %928 = vrot.lane.b32.xlu0 %v867, 120
        %v929 = vpop.permute.xlu0 %928
        %930 = vrot.lane.b32.xlu0 %v867, 88
        %v931 = vpop.permute.xlu0 %930
        %v933 = vsel %vm871, %v929, 0
        %v936 = vsel %vm871, %v931, 0
        %938 = vmatpush.bf16.xpose.msra.mxu0 0
        %939 = vmatpush.bf16.xpose.msra.mxu0 0
        %940 = vmatpush.bf16.xpose.msra.mxu0 0
        %941 = vmatpush.bf16.xpose.msra.mxu0 0
        %942 = vmatpush.bf16.xpose.msra.mxu0 0
        %943 = vmatpush.bf16.xpose.msra.mxu0 0
        %944 = vmatpush.bf16.xpose.msra.mxu0 0
        %945 = vmatpush.bf16.xpose.msra.mxu0 %v936
        %946 = vmatmul.bf16.gmra.mxu0 %v933
        %v947 = vpop.f32.mrf.mxu0
        %v948 = vadd.f32 0.0, %v947
        %v949 = vpop.f32.mrf.mxu0
        %950 = vdwg.mxu0
        %v951 = vmul.f32 %v948, 0.35355338
        %v952 = vsel %vm871, %v951, -inf
        %953 = vmax.xlane.f32.xlu0 %v952
        %v954 = vpop.xlane.xlu0 %953
        %v955 = vsub.f32 %v951, %v954
        %v956 = vmul.f32 %v955, 1.442695
        %v957 = vpow.pop %v956
        %v958 = vsel %vm871, %v957, 0.0
        %959 = vadd.xlane.f32.xlu0 %v958
        %v960 = vpop.xlane.xlu0 %959
        %v961 = vrcp.pop %v960
        %v962 = vmul.f32 %v957, %v961
        %v963 = vpack.c.bf16 %v962, %v962
        %964 = vrot.lane.b32.xlu0 %v867, 56
        %v965 = vpop.permute.xlu0 %964
        %v967 = vsel %vm871, %v963, 0
        %v970 = vsel %vm909, %v965, 0
        %972 = vmatpush.bf16.msra.mxu0 0
        %973 = vmatpush.bf16.msra.mxu0 0
        %974 = vmatpush.bf16.msra.mxu0 0
        %975 = vmatpush.bf16.msra.mxu0 0
        %976 = vmatpush.bf16.msra.mxu0 0
        %977 = vmatpush.bf16.msra.mxu0 0
        %978 = vmatpush.bf16.msra.mxu0 0
        %979 = vmatpush.bf16.msra.mxu0 %v970
        %980 = vmatmul.bf16.gmra.mxu0 %v967
        %v981 = vpop.f32.mrf.mxu0
        %v982 = vadd.f32 0.0, %v981
        %v983 = vpop.f32.mrf.mxu0
        %984 = vdwg.mxu0
        %v985 = vpack.c.bf16 %v982, %v982
        %s986 = scalar_lea.vmem %s5, 4
        %v987 = vld [vmem:[%s986] sm:$0xf]
        %v989 = vsel %vm871, %v985, 0
        %v992 = vsel %vm909, %v987, 0
        %994 = vmatpush.bf16.msra.mxu0 0
        %995 = vmatpush.bf16.msra.mxu0 0
        %996 = vmatpush.bf16.msra.mxu0 0
        %997 = vmatpush.bf16.msra.mxu0 0
        %998 = vmatpush.bf16.msra.mxu0 0
        %999 = vmatpush.bf16.msra.mxu0 0
        %1000 = vmatpush.bf16.msra.mxu0 0
        %1001 = vmatpush.bf16.msra.mxu0 %v992
        %1002 = vmatmul.bf16.gmra.mxu0 %v989
        %v1003 = vpop.f32.mrf.mxu0
        %v1004 = vadd.f32 0.0, %v1003
        %v1005 = vpop.f32.mrf.mxu0
        %1006 = vdwg.mxu0
        %v1008 = vsel %vm871, %v926, 0
        %v1011 = vsel %vm909, %v927, 0
        %1013 = vmatpush.bf16.msra.mxu0 0
        %1014 = vmatpush.bf16.msra.mxu0 0
        %1015 = vmatpush.bf16.msra.mxu0 0
        %1016 = vmatpush.bf16.msra.mxu0 0
        %1017 = vmatpush.bf16.msra.mxu0 0
        %1018 = vmatpush.bf16.msra.mxu0 0
        %1019 = vmatpush.bf16.msra.mxu0 0
        %1020 = vmatpush.bf16.msra.mxu0 %v1011
        %1021 = vmatmul.bf16.gmra.mxu0 %v1008
        %v1022 = vpop.f32.mrf.mxu0
        %v1023 = vadd.f32 %v1004, %v1022
        %v1024 = vpop.f32.mrf.mxu0
        %1025 = vdwg.mxu0
        %1026 = vrot.lane.b32.xlu0 %v867, 112
        %v1027 = vpop.permute.xlu0 %1026
        %1028 = vrot.lane.b32.xlu0 %v867, 80
        %v1029 = vpop.permute.xlu0 %1028
        %v1031 = vsel %vm871, %v1027, 0
        %v1034 = vsel %vm871, %v1029, 0
        %1036 = vmatpush.bf16.xpose.msra.mxu0 0
        %1037 = vmatpush.bf16.xpose.msra.mxu0 0
        %1038 = vmatpush.bf16.xpose.msra.mxu0 0
        %1039 = vmatpush.bf16.xpose.msra.mxu0 0
        %1040 = vmatpush.bf16.xpose.msra.mxu0 0
        %1041 = vmatpush.bf16.xpose.msra.mxu0 0
        %1042 = vmatpush.bf16.xpose.msra.mxu0 0
        %1043 = vmatpush.bf16.xpose.msra.mxu0 %v1034
        %1044 = vmatmul.bf16.gmra.mxu0 %v1031
        %v1045 = vpop.f32.mrf.mxu0
        %v1046 = vadd.f32 0.0, %v1045
        %v1047 = vpop.f32.mrf.mxu0
        %1048 = vdwg.mxu0
        %v1049 = vmul.f32 %v1046, 0.35355338
        %v1050 = vsel %vm871, %v1049, -inf
        %1051 = vmax.xlane.f32.xlu0 %v1050
        %v1052 = vpop.xlane.xlu0 %1051
        %v1053 = vsub.f32 %v1049, %v1052
        %v1054 = vmul.f32 %v1053, 1.442695
        %v1055 = vpow.pop %v1054
        %v1056 = vsel %vm871, %v1055, 0.0
        %1057 = vadd.xlane.f32.xlu0 %v1056
        %v1058 = vpop.xlane.xlu0 %1057
        %v1059 = vrcp.pop %v1058
        %v1060 = vmul.f32 %v1055, %v1059
        %v1061 = vpack.c.bf16 %v1060, %v1060
        %1062 = vrot.lane.b32.xlu0 %v867, 48
        %v1063 = vpop.permute.xlu0 %1062
        %v1065 = vsel %vm871, %v1061, 0
        %v1068 = vsel %vm909, %v1063, 0
        %1070 = vmatpush.bf16.msra.mxu0 0
        %1071 = vmatpush.bf16.msra.mxu0 0
        %1072 = vmatpush.bf16.msra.mxu0 0
        %1073 = vmatpush.bf16.msra.mxu0 0
        %1074 = vmatpush.bf16.msra.mxu0 0
        %1075 = vmatpush.bf16.msra.mxu0 0
        %1076 = vmatpush.bf16.msra.mxu0 0
        %1077 = vmatpush.bf16.msra.mxu0 %v1068
        %1078 = vmatmul.bf16.gmra.mxu0 %v1065
        %v1079 = vpop.f32.mrf.mxu0
        %v1080 = vadd.f32 0.0, %v1079
        %v1081 = vpop.f32.mrf.mxu0
        %1082 = vdwg.mxu0
        %v1083 = vpack.c.bf16 %v1080, %v1080
        %s1084 = scalar_lea.vmem %s5, 8
        %v1085 = vld [vmem:[%s1084] sm:$0xf]
        %v1087 = vsel %vm871, %v1083, 0
        %v1090 = vsel %vm909, %v1085, 0
        %1092 = vmatpush.bf16.msra.mxu0 0
        %1093 = vmatpush.bf16.msra.mxu0 0
        %1094 = vmatpush.bf16.msra.mxu0 0
        %1095 = vmatpush.bf16.msra.mxu0 0
        %1096 = vmatpush.bf16.msra.mxu0 0
        %1097 = vmatpush.bf16.msra.mxu0 0
        %1098 = vmatpush.bf16.msra.mxu0 0
        %1099 = vmatpush.bf16.msra.mxu0 %v1090
        %1100 = vmatmul.bf16.gmra.mxu0 %v1087
        %v1101 = vpop.f32.mrf.mxu0
        %v1102 = vadd.f32 0.0, %v1101
        %v1103 = vpop.f32.mrf.mxu0
        %1104 = vdwg.mxu0
        %v1105 = vadd.f32 %v1023, %v1102
        %1106 = vrot.lane.b32.xlu0 %v867, 104
        %v1107 = vpop.permute.xlu0 %1106
        %1108 = vrot.lane.b32.xlu0 %v867, 72
        %v1109 = vpop.permute.xlu0 %1108
        %v1111 = vsel %vm871, %v1107, 0
        %v1114 = vsel %vm871, %v1109, 0
        %1116 = vmatpush.bf16.xpose.msra.mxu0 0
        %1117 = vmatpush.bf16.xpose.msra.mxu0 0
        %1118 = vmatpush.bf16.xpose.msra.mxu0 0
        %1119 = vmatpush.bf16.xpose.msra.mxu0 0
        %1120 = vmatpush.bf16.xpose.msra.mxu0 0
        %1121 = vmatpush.bf16.xpose.msra.mxu0 0
        %1122 = vmatpush.bf16.xpose.msra.mxu0 0
        %1123 = vmatpush.bf16.xpose.msra.mxu0 %v1114
        %1124 = vmatmul.bf16.gmra.mxu0 %v1111
        %v1125 = vpop.f32.mrf.mxu0
        %v1126 = vadd.f32 0.0, %v1125
        %v1127 = vpop.f32.mrf.mxu0
        %1128 = vdwg.mxu0
        %v1129 = vmul.f32 %v1126, 0.35355338
        %v1130 = vsel %vm871, %v1129, -inf
        %1131 = vmax.xlane.f32.xlu0 %v1130
        %v1132 = vpop.xlane.xlu0 %1131
        %v1133 = vsub.f32 %v1129, %v1132
        %v1134 = vmul.f32 %v1133, 1.442695
        %v1135 = vpow.pop %v1134
        %v1136 = vsel %vm871, %v1135, 0.0
        %1137 = vadd.xlane.f32.xlu0 %v1136
        %v1138 = vpop.xlane.xlu0 %1137
        %v1139 = vrcp.pop %v1138
        %v1140 = vmul.f32 %v1135, %v1139
        %v1141 = vpack.c.bf16 %v1140, %v1140
        %1142 = vrot.lane.b32.xlu0 %v867, 40
        %v1143 = vpop.permute.xlu0 %1142
        %v1145 = vsel %vm871, %v1141, 0
        %v1148 = vsel %vm909, %v1143, 0
        %1150 = vmatpush.bf16.msra.mxu0 0
        %1151 = vmatpush.bf16.msra.mxu0 0
        %1152 = vmatpush.bf16.msra.mxu0 0
        %1153 = vmatpush.bf16.msra.mxu0 0
        %1154 = vmatpush.bf16.msra.mxu0 0
        %1155 = vmatpush.bf16.msra.mxu0 0
        %1156 = vmatpush.bf16.msra.mxu0 0
        %1157 = vmatpush.bf16.msra.mxu0 %v1148
        %1158 = vmatmul.bf16.gmra.mxu0 %v1145
        %v1159 = vpop.f32.mrf.mxu0
        %v1160 = vadd.f32 0.0, %v1159
        %v1161 = vpop.f32.mrf.mxu0
        %1162 = vdwg.mxu0
        %v1163 = vpack.c.bf16 %v1160, %v1160
        %s1164 = scalar_lea.vmem %s5, 12
        %v1165 = vld [vmem:[%s1164] sm:$0xf]
        %v1167 = vsel %vm871, %v1163, 0
        %v1170 = vsel %vm909, %v1165, 0
        %1172 = vmatpush.bf16.msra.mxu0 0
        %1173 = vmatpush.bf16.msra.mxu0 0
        %1174 = vmatpush.bf16.msra.mxu0 0
        %1175 = vmatpush.bf16.msra.mxu0 0
        %1176 = vmatpush.bf16.msra.mxu0 0
        %1177 = vmatpush.bf16.msra.mxu0 0
        %1178 = vmatpush.bf16.msra.mxu0 0
        %1179 = vmatpush.bf16.msra.mxu0 %v1170
        %1180 = vmatmul.bf16.gmra.mxu0 %v1167
        %v1181 = vpop.f32.mrf.mxu0
        %v1182 = vadd.f32 0.0, %v1181
        %v1183 = vpop.f32.mrf.mxu0
        %1184 = vdwg.mxu0
        %v1185 = vadd.f32 %v1105, %v1182
        %v1186 = vld [vmem:[%s6] sm:$0x1]
        %v1188 = vperm.slane %v1186, 0
        %v1190 = vadd.f32 %v1185, %v1188
        %v1191 = vadd.f32 %v826, %v1190
        %v1192 = vsel %vm850, %v1191, 0.0
        %1193 = vadd.xlane.f32.xlu0 %v1192
        %v1194 = vpop.xlane.xlu0 %1193
        %v1195 = vrcp.pop 32.0
        %v1196 = vmul.f32 32.0, %v1195
        %v1197 = vsub.f32 1.0, %v1196
        %v1198 = vmul.f32 %v1195, %v1197
        %v1199 = vadd.f32 %v1195, %v1198
        %vm1200 = vweird.f32 %v1195
        %v1201 = vsel %vm1200, %v1195, %v1199
        %v1202 = vmul.f32 %v1194, %v1201
        %v1203 = vsub.f32 %v1191, %v1202
        %v1204 = vmul.f32 %v1203, %v1203
        %v1205 = vsel %vm850, %v1204, 0.0
        %1206 = vadd.xlane.f32.xlu0 %v1205
        %v1207 = vpop.xlane.xlu0 %1206
        %v1208 = vmul.f32 %v1207, %v1201
        %v1209 = vadd.f32 %v1208, 1e-05
        %v1210 = vrsqrt.pop %v1209
        %v1211 = vmul.f32 %v1210, %v1209
        %v1212 = vmul.f32 %v1211, %v1210
        %v1213 = vmul.f32 0.5, %v1212
        %v1214 = vsub.f32 1.5, %v1213
        %v1215 = vmul.f32 %v1210, %v1214
        %vm1216 = vweird.f32 %v1209
        %vm1217 = vweird.f32 %v1210
        %vm1218 = vmor %vm1216, %vm1217
        %v1219 = vsel %vm1218, %v1210, %v1215
        %v1220 = vmul.f32 %v1203, %v1219
        %v1221 = vld [vmem:[%s7] sm:$0x1]
        %v1223 = vperm.slane %v1221, 0
        %v1225 = vmul.f32 %v1220, %v1223
        %v1226 = vld [vmem:[%s8] sm:$0x1]
        %v1228 = vperm.slane %v1226, 0
        %v1230 = vadd.f32 %v1225, %v1228
        %v1231 = vpack.c.bf16 %v1230, %v1230
        %v1232 = vld [vmem:[%s9] sm:$0xf]
        %v1233 = vld [vmem:[%s9 + $0x4] sm:$0xf]
        %v1234 = vld [vmem:[%s9 + $0x8] sm:$0xf]
        %v1235 = vld [vmem:[%s9 + $0xc] sm:$0xf]
        %v1236 = vld [vmem:[%s10] sm:$0x1]
        %v1238 = vperm.slane %v1236, 0
        %v1244 = vunpack.c.l.b16 %v1232
        %v1245 = vunpack.c.l.b16 %v1233
        %v1246 = vunpack.c.l.b16 %v1234
        %v1247 = vunpack.c.l.b16 %v1235
        %v1248 = vpack.c.b16 %v1245, %v1244
        %v1249 = vpack.c.b16 %v1247, %v1246
        %v1253 = vsel %vm850, %v1231, 0
        %1255 = vmatpush.bf16.msra.mxu0 0
        %1256 = vmatpush.bf16.msra.mxu0 0
        %1257 = vmatpush.bf16.msra.mxu0 0
        %1258 = vmatpush.bf16.msra.mxu0 0
        %1259 = vmatpush.bf16.msra.mxu0 0
        %1260 = vmatpush.bf16.msra.mxu0 0
        %1261 = vmatpush.bf16.msra.mxu0 %v1249
        %1262 = vmatpush.bf16.msra.mxu0 %v1248
        %1263 = vmatmul.bf16.gmra.mxu0 %v1253
        %v1264 = vpop.f32.mrf.mxu0
        %v1265 = vadd.f32 %v1238, %v1264
        %v1266 = vpop.f32.mrf.mxu0
        %1267 = vdwg.mxu0
        %v1268 = vpack.c.bf16 %v827, %v827
        %v1269 = vld [vmem:[%s11] sm:$0xf]
        %v1270 = vld [vmem:[%s11 + $0x4] sm:$0xf]
        %v1271 = vld [vmem:[%s11 + $0x8] sm:$0xf]
        %v1272 = vld [vmem:[%s11 + $0xc] sm:$0xf]
        %v1273 = vld [vmem:[%s12] sm:$0x1]
        %v1275 = vperm.slane %v1273, 0
        %v1281 = vunpack.c.l.b16 %v1269
        %v1282 = vunpack.c.l.b16 %v1270
        %v1283 = vunpack.c.l.b16 %v1271
        %v1284 = vunpack.c.l.b16 %v1272
        %v1285 = vpack.c.b16 %v1282, %v1281
        %v1286 = vpack.c.b16 %v1284, %v1283
        %v1290 = vsel %vm850, %v1268, 0
        %1292 = vmatpush.bf16.msra.mxu0 0
        %1293 = vmatpush.bf16.msra.mxu0 0
        %1294 = vmatpush.bf16.msra.mxu0 0
        %1295 = vmatpush.bf16.msra.mxu0 0
        %1296 = vmatpush.bf16.msra.mxu0 0
        %1297 = vmatpush.bf16.msra.mxu0 0
        %1298 = vmatpush.bf16.msra.mxu0 %v1286
        %1299 = vmatpush.bf16.msra.mxu0 %v1285
        %1300 = vmatmul.bf16.gmra.mxu0 %v1290
        %v1301 = vpop.f32.mrf.mxu0
        %v1302 = vadd.f32 %v1275, %v1301
        %v1303 = vpop.f32.mrf.mxu0
        %1304 = vdwg.mxu0
        %v1305 = vpack.c.bf16 %v1265, %v1265
        %v1306 = vpack.c.bf16 %v1302, %v1302
        %v1308 = vsel %vm871, %v1305, 0
        %v1311 = vsel %vm871, %v1306, 0
        %1313 = vmatpush.bf16.xpose.msra.mxu0 0
        %1314 = vmatpush.bf16.xpose.msra.mxu0 0
        %1315 = vmatpush.bf16.xpose.msra.mxu0 0
        %1316 = vmatpush.bf16.xpose.msra.mxu0 0
        %1317 = vmatpush.bf16.xpose.msra.mxu0 0
        %1318 = vmatpush.bf16.xpose.msra.mxu0 0
        %1319 = vmatpush.bf16.xpose.msra.mxu0 0
        %1320 = vmatpush.bf16.xpose.msra.mxu0 %v1311
        %1321 = vmatmul.bf16.gmra.mxu0 %v1308
        %v1322 = vpop.f32.mrf.mxu0
        %v1323 = vadd.f32 0.0, %v1322
        %v1324 = vpop.f32.mrf.mxu0
        %1325 = vdwg.mxu0
        %v1326 = vmul.f32 %v1323, 0.35355338
        %v1328 = vperm.slane %v828, 0
        %v1330 = vadd.f32 %v1326, %v1328
        %v1331 = vsel %vm871, %v1330, -inf
        %1332 = vmax.xlane.f32.xlu0 %v1331
        %v1333 = vpop.xlane.xlu0 %1332
        %v1334 = vsub.f32 %v1330, %v1333
        %v1335 = vmul.f32 %v1334, 1.442695
        %v1336 = vpow.pop %v1335
        %v1337 = vsel %vm871, %v1336, 0.0
        %1338 = vadd.xlane.f32.xlu0 %v1337
        %v1339 = vpop.xlane.xlu0 %1338
        %v1340 = vrcp.pop %v1339
        %v1341 = vmul.f32 %v1336, %v1340
        %v1342 = vpack.c.bf16 %v1341, %v1341
        %1344 = vrot.lane.b32.xlu0 %v1306, 96
        %v1345 = vpop.permute.xlu0 %1344
        %v1347 = vsel %vm871, %v1342, 0
        %v1350 = vsel %vm909, %v1345, 0
        %1352 = vmatpush.bf16.msra.mxu0 0
        %1353 = vmatpush.bf16.msra.mxu0 0
        %1354 = vmatpush.bf16.msra.mxu0 0
        %1355 = vmatpush.bf16.msra.mxu0 0
        %1356 = vmatpush.bf16.msra.mxu0 0
        %1357 = vmatpush.bf16.msra.mxu0 0
        %1358 = vmatpush.bf16.msra.mxu0 0
        %1359 = vmatpush.bf16.msra.mxu0 %v1350
        %1360 = vmatmul.bf16.gmra.mxu0 %v1347
        %v1361 = vpop.f32.mrf.mxu0
        %v1362 = vadd.f32 0.0, %v1361
        %v1363 = vpop.f32.mrf.mxu0
        %1364 = vdwg.mxu0
        %v1365 = vpack.c.bf16 %v1362, %v1362
        %v1366 = vld [vmem:[%s13] sm:$0xf]
        %1368 = vrot.lane.b32.xlu0 %v1305, 120
        %v1369 = vpop.permute.xlu0 %1368
        %1370 = vrot.lane.b32.xlu0 %v1306, 120
        %v1371 = vpop.permute.xlu0 %1370
        %v1373 = vsel %vm871, %v1369, 0
        %v1376 = vsel %vm871, %v1371, 0
        %1378 = vmatpush.bf16.xpose.msra.mxu0 0
        %1379 = vmatpush.bf16.xpose.msra.mxu0 0
        %1380 = vmatpush.bf16.xpose.msra.mxu0 0
        %1381 = vmatpush.bf16.xpose.msra.mxu0 0
        %1382 = vmatpush.bf16.xpose.msra.mxu0 0
        %1383 = vmatpush.bf16.xpose.msra.mxu0 0
        %1384 = vmatpush.bf16.xpose.msra.mxu0 0
        %1385 = vmatpush.bf16.xpose.msra.mxu0 %v1376
        %1386 = vmatmul.bf16.gmra.mxu0 %v1373
        %v1387 = vpop.f32.mrf.mxu0
        %v1388 = vadd.f32 0.0, %v1387
        %v1389 = vpop.f32.mrf.mxu0
        %1390 = vdwg.mxu0
        %v1391 = vmul.f32 %v1388, 0.35355338
        %v1392 = vadd.f32 %v1391, %v1328
        %v1393 = vsel %vm871, %v1392, -inf
        %1394 = vmax.xlane.f32.xlu0 %v1393
        %v1395 = vpop.xlane.xlu0 %1394
        %v1396 = vsub.f32 %v1392, %v1395
        %v1397 = vmul.f32 %v1396, 1.442695
        %v1398 = vpow.pop %v1397
        %v1399 = vsel %vm871, %v1398, 0.0
        %1400 = vadd.xlane.f32.xlu0 %v1399
        %v1401 = vpop.xlane.xlu0 %1400
        %v1402 = vrcp.pop %v1401
        %v1403 = vmul.f32 %v1398, %v1402
        %v1404 = vpack.c.bf16 %v1403, %v1403
        %1405 = vrot.lane.b32.xlu0 %v1306, 88
        %v1406 = vpop.permute.xlu0 %1405
        %v1408 = vsel %vm871, %v1404, 0
        %v1411 = vsel %vm909, %v1406, 0
        %1413 = vmatpush.bf16.msra.mxu0 0
        %1414 = vmatpush.bf16.msra.mxu0 0
        %1415 = vmatpush.bf16.msra.mxu0 0
        %1416 = vmatpush.bf16.msra.mxu0 0
        %1417 = vmatpush.bf16.msra.mxu0 0
        %1418 = vmatpush.bf16.msra.mxu0 0
        %1419 = vmatpush.bf16.msra.mxu0 0
        %1420 = vmatpush.bf16.msra.mxu0 %v1411
        %1421 = vmatmul.bf16.gmra.mxu0 %v1408
        %v1422 = vpop.f32.mrf.mxu0
        %v1423 = vadd.f32 0.0, %v1422
        %v1424 = vpop.f32.mrf.mxu0
        %1425 = vdwg.mxu0
        %v1426 = vpack.c.bf16 %v1423, %v1423
        %s1427 = scalar_lea.vmem %s13, 4
        %v1428 = vld [vmem:[%s1427] sm:$0xf]
        %v1430 = vsel %vm871, %v1426, 0
        %v1433 = vsel %vm909, %v1428, 0
        %1435 = vmatpush.bf16.msra.mxu0 0
        %1436 = vmatpush.bf16.msra.mxu0 0
        %1437 = vmatpush.bf16.msra.mxu0 0
        %1438 = vmatpush.bf16.msra.mxu0 0
        %1439 = vmatpush.bf16.msra.mxu0 0
        %1440 = vmatpush.bf16.msra.mxu0 0
        %1441 = vmatpush.bf16.msra.mxu0 0
        %1442 = vmatpush.bf16.msra.mxu0 %v1433
        %1443 = vmatmul.bf16.gmra.mxu0 %v1430
        %v1444 = vpop.f32.mrf.mxu0
        %v1445 = vadd.f32 0.0, %v1444
        %v1446 = vpop.f32.mrf.mxu0
        %1447 = vdwg.mxu0
        %v1449 = vsel %vm871, %v1365, 0
        %v1452 = vsel %vm909, %v1366, 0
        %1454 = vmatpush.bf16.msra.mxu0 0
        %1455 = vmatpush.bf16.msra.mxu0 0
        %1456 = vmatpush.bf16.msra.mxu0 0
        %1457 = vmatpush.bf16.msra.mxu0 0
        %1458 = vmatpush.bf16.msra.mxu0 0
        %1459 = vmatpush.bf16.msra.mxu0 0
        %1460 = vmatpush.bf16.msra.mxu0 0
        %1461 = vmatpush.bf16.msra.mxu0 %v1452
        %1462 = vmatmul.bf16.gmra.mxu0 %v1449
        %v1463 = vpop.f32.mrf.mxu0
        %v1464 = vadd.f32 %v1445, %v1463
        %v1465 = vpop.f32.mrf.mxu0
        %1466 = vdwg.mxu0
        %1467 = vrot.lane.b32.xlu0 %v1305, 112
        %v1468 = vpop.permute.xlu0 %1467
        %1469 = vrot.lane.b32.xlu0 %v1306, 112
        %v1470 = vpop.permute.xlu0 %1469
        %v1472 = vsel %vm871, %v1468, 0
        %v1475 = vsel %vm871, %v1470, 0
        %1477 = vmatpush.bf16.xpose.msra.mxu0 0
        %1478 = vmatpush.bf16.xpose.msra.mxu0 0
        %1479 = vmatpush.bf16.xpose.msra.mxu0 0
        %1480 = vmatpush.bf16.xpose.msra.mxu0 0
        %1481 = vmatpush.bf16.xpose.msra.mxu0 0
        %1482 = vmatpush.bf16.xpose.msra.mxu0 0
        %1483 = vmatpush.bf16.xpose.msra.mxu0 0
        %1484 = vmatpush.bf16.xpose.msra.mxu0 %v1475
        %1485 = vmatmul.bf16.gmra.mxu0 %v1472
        %v1486 = vpop.f32.mrf.mxu0
        %v1487 = vadd.f32 0.0, %v1486
        %v1488 = vpop.f32.mrf.mxu0
        %1489 = vdwg.mxu0
        %v1490 = vmul.f32 %v1487, 0.35355338
        %v1491 = vadd.f32 %v1490, %v1328
        %v1492 = vsel %vm871, %v1491, -inf
        %1493 = vmax.xlane.f32.xlu0 %v1492
        %v1494 = vpop.xlane.xlu0 %1493
        %v1495 = vsub.f32 %v1491, %v1494
        %v1496 = vmul.f32 %v1495, 1.442695
        %v1497 = vpow.pop %v1496
        %v1498 = vsel %vm871, %v1497, 0.0
        %1499 = vadd.xlane.f32.xlu0 %v1498
        %v1500 = vpop.xlane.xlu0 %1499
        %v1501 = vrcp.pop %v1500
        %v1502 = vmul.f32 %v1497, %v1501
        %v1503 = vpack.c.bf16 %v1502, %v1502
        %1504 = vrot.lane.b32.xlu0 %v1306, 80
        %v1505 = vpop.permute.xlu0 %1504
        %v1507 = vsel %vm871, %v1503, 0
        %v1510 = vsel %vm909, %v1505, 0
        %1512 = vmatpush.bf16.msra.mxu0 0
        %1513 = vmatpush.bf16.msra.mxu0 0
        %1514 = vmatpush.bf16.msra.mxu0 0
        %1515 = vmatpush.bf16.msra.mxu0 0
        %1516 = vmatpush.bf16.msra.mxu0 0
        %1517 = vmatpush.bf16.msra.mxu0 0
        %1518 = vmatpush.bf16.msra.mxu0 0
        %1519 = vmatpush.bf16.msra.mxu0 %v1510
        %1520 = vmatmul.bf16.gmra.mxu0 %v1507
        %v1521 = vpop.f32.mrf.mxu0
        %v1522 = vadd.f32 0.0, %v1521
        %v1523 = vpop.f32.mrf.mxu0
        %1524 = vdwg.mxu0
        %v1525 = vpack.c.bf16 %v1522, %v1522
        %s1526 = scalar_lea.vmem %s13, 8
        %v1527 = vld [vmem:[%s1526] sm:$0xf]
        %v1529 = vsel %vm871, %v1525, 0
        %v1532 = vsel %vm909, %v1527, 0
        %1534 = vmatpush.bf16.msra.mxu0 0
        %1535 = vmatpush.bf16.msra.mxu0 0
        %1536 = vmatpush.bf16.msra.mxu0 0
        %1537 = vmatpush.bf16.msra.mxu0 0
        %1538 = vmatpush.bf16.msra.mxu0 0
        %1539 = vmatpush.bf16.msra.mxu0 0
        %1540 = vmatpush.bf16.msra.mxu0 0
        %1541 = vmatpush.bf16.msra.mxu0 %v1532
        %1542 = vmatmul.bf16.gmra.mxu0 %v1529
        %v1543 = vpop.f32.mrf.mxu0
        %v1544 = vadd.f32 0.0, %v1543
        %v1545 = vpop.f32.mrf.mxu0
        %1546 = vdwg.mxu0
        %v1547 = vadd.f32 %v1464, %v1544
        %1548 = vrot.lane.b32.xlu0 %v1305, 104
        %v1549 = vpop.permute.xlu0 %1548
        %1550 = vrot.lane.b32.xlu0 %v1306, 104
        %v1551 = vpop.permute.xlu0 %1550
        %v1553 = vsel %vm871, %v1549, 0
        %v1556 = vsel %vm871, %v1551, 0
        %1558 = vmatpush.bf16.xpose.msra.mxu0 0
        %1559 = vmatpush.bf16.xpose.msra.mxu0 0
        %1560 = vmatpush.bf16.xpose.msra.mxu0 0
        %1561 = vmatpush.bf16.xpose.msra.mxu0 0
        %1562 = vmatpush.bf16.xpose.msra.mxu0 0
        %1563 = vmatpush.bf16.xpose.msra.mxu0 0
        %1564 = vmatpush.bf16.xpose.msra.mxu0 0
        %1565 = vmatpush.bf16.xpose.msra.mxu0 %v1556
        %1566 = vmatmul.bf16.gmra.mxu0 %v1553
        %v1567 = vpop.f32.mrf.mxu0
        %v1568 = vadd.f32 0.0, %v1567
        %v1569 = vpop.f32.mrf.mxu0
        %1570 = vdwg.mxu0
        %v1571 = vmul.f32 %v1568, 0.35355338
        %v1572 = vadd.f32 %v1571, %v1328
        %v1573 = vsel %vm871, %v1572, -inf
        %1574 = vmax.xlane.f32.xlu0 %v1573
        %v1575 = vpop.xlane.xlu0 %1574
        %v1576 = vsub.f32 %v1572, %v1575
        %v1577 = vmul.f32 %v1576, 1.442695
        %v1578 = vpow.pop %v1577
        %v1579 = vsel %vm871, %v1578, 0.0
        %1580 = vadd.xlane.f32.xlu0 %v1579
        %v1581 = vpop.xlane.xlu0 %1580
        %v1582 = vrcp.pop %v1581
        %v1583 = vmul.f32 %v1578, %v1582
        %v1584 = vpack.c.bf16 %v1583, %v1583
        %1585 = vrot.lane.b32.xlu0 %v1306, 72
        %v1586 = vpop.permute.xlu0 %1585
        %v1588 = vsel %vm871, %v1584, 0
        %v1591 = vsel %vm909, %v1586, 0
        %1593 = vmatpush.bf16.msra.mxu0 0
        %1594 = vmatpush.bf16.msra.mxu0 0
        %1595 = vmatpush.bf16.msra.mxu0 0
        %1596 = vmatpush.bf16.msra.mxu0 0
        %1597 = vmatpush.bf16.msra.mxu0 0
        %1598 = vmatpush.bf16.msra.mxu0 0
        %1599 = vmatpush.bf16.msra.mxu0 0
        %1600 = vmatpush.bf16.msra.mxu0 %v1591
        %1601 = vmatmul.bf16.gmra.mxu0 %v1588
        %v1602 = vpop.f32.mrf.mxu0
        %v1603 = vadd.f32 0.0, %v1602
        %v1604 = vpop.f32.mrf.mxu0
        %1605 = vdwg.mxu0
        %v1606 = vpack.c.bf16 %v1603, %v1603
        %s1607 = scalar_lea.vmem %s13, 12
        %v1608 = vld [vmem:[%s1607] sm:$0xf]
        %v1610 = vsel %vm871, %v1606, 0
        %v1613 = vsel %vm909, %v1608, 0
        %1615 = vmatpush.bf16.msra.mxu0 0
        %1616 = vmatpush.bf16.msra.mxu0 0
        %1617 = vmatpush.bf16.msra.mxu0 0
        %1618 = vmatpush.bf16.msra.mxu0 0
        %1619 = vmatpush.bf16.msra.mxu0 0
        %1620 = vmatpush.bf16.msra.mxu0 0
        %1621 = vmatpush.bf16.msra.mxu0 0
        %1622 = vmatpush.bf16.msra.mxu0 %v1613
        %1623 = vmatmul.bf16.gmra.mxu0 %v1610
        %v1624 = vpop.f32.mrf.mxu0
        %v1625 = vadd.f32 0.0, %v1624
        %v1626 = vpop.f32.mrf.mxu0
        %1627 = vdwg.mxu0
        %v1628 = vadd.f32 %v1547, %v1625
        %v1629 = vld [vmem:[%s14] sm:$0x1]
        %v1631 = vperm.slane %v1629, 0
        %v1633 = vadd.f32 %v1628, %v1631
        %v1634 = vadd.f32 %v1230, %v1633
        %v1635 = vsel %vm850, %v1634, 0.0
        %1636 = vadd.xlane.f32.xlu0 %v1635
        %v1637 = vpop.xlane.xlu0 %1636
        %v1638 = vmul.f32 %v1637, %v1201
        %v1639 = vsub.f32 %v1634, %v1638
        %v1640 = vmul.f32 %v1639, %v1639
        %v1641 = vsel %vm850, %v1640, 0.0
        %1642 = vadd.xlane.f32.xlu0 %v1641
        %v1643 = vpop.xlane.xlu0 %1642
        %v1644 = vmul.f32 %v1643, %v1201
        %v1645 = vadd.f32 %v1644, 1e-05
        %v1646 = vrsqrt.pop %v1645
        %v1647 = vmul.f32 %v1646, %v1645
        %v1648 = vmul.f32 %v1647, %v1646
        %v1649 = vmul.f32 0.5, %v1648
        %v1650 = vsub.f32 1.5, %v1649
        %v1651 = vmul.f32 %v1646, %v1650
        %vm1652 = vweird.f32 %v1645
        %vm1653 = vweird.f32 %v1646
        %vm1654 = vmor %vm1652, %vm1653
        %v1655 = vsel %vm1654, %v1646, %v1651
        %v1656 = vmul.f32 %v1639, %v1655
        %v1657 = vld [vmem:[#allocation2] sm:$0x1]
        %v1659 = vperm.slane %v1657, 0
        %v1661 = vmul.f32 %v1656, %v1659
        %v1662 = vld [vmem:[#allocation4] sm:$0x1]
        %v1664 = vperm.slane %v1662, 0
        %v1666 = vadd.f32 %v1661, %v1664
        %v1667 = vpack.c.bf16 %v1666, %v1666
        %v1668 = vld [vmem:[%s17] sm:$0xf]
        %v1669 = vld [vmem:[%s17 + $0x4] sm:$0xf]
        %v1670 = vld [vmem:[%s17 + $0x8] sm:$0xf]
        %v1671 = vld [vmem:[%s17 + $0xc] sm:$0xf]
        %v1672 = vld [vmem:[#allocation6] sm:$0x1]
        %v1674 = vperm.slane %v1672, 0
        %v1680 = vunpack.c.l.b16 %v1668
        %v1681 = vunpack.c.l.b16 %v1669
        %v1682 = vunpack.c.l.b16 %v1670
        %v1683 = vunpack.c.l.b16 %v1671
        %v1684 = vpack.c.b16 %v1681, %v1680
        %v1685 = vpack.c.b16 %v1683, %v1682
        %v1689 = vsel %vm850, %v1667, 0
        %1691 = vmatpush.bf16.msra.mxu0 0
        %1692 = vmatpush.bf16.msra.mxu0 0
        %1693 = vmatpush.bf16.msra.mxu0 0
        %1694 = vmatpush.bf16.msra.mxu0 0
        %1695 = vmatpush.bf16.msra.mxu0 0
        %1696 = vmatpush.bf16.msra.mxu0 0
        %1697 = vmatpush.bf16.msra.mxu0 %v1685
        %1698 = vmatpush.bf16.msra.mxu0 %v1684
        %1699 = vmatmul.bf16.gmra.mxu0 %v1689
        %v1700 = vpop.f32.mrf.mxu0
        %v1701 = vadd.f32 %v1674, %v1700
        %v1702 = vpop.f32.mrf.mxu0
        %1703 = vdwg.mxu0
        %v1704 = vmax.f32 %v1701, 0.0
        %v1705 = vpack.c.bf16 %v1704, %v1704
        %v1706 = vld [vmem:[%s19] sm:$0xf]
        %v1707 = vld [vmem:[%s19 + $0x4] sm:$0xf]
        %v1708 = vld [vmem:[%s19 + $0x8] sm:$0xf]
        %v1709 = vld [vmem:[%s19 + $0xc] sm:$0xf]
        %v1710 = vld [vmem:[#allocation7] sm:$0x1]
        %v1712 = vperm.slane %v1710, 0
        %v1718 = vunpack.c.l.b16 %v1706
        %v1719 = vunpack.c.l.b16 %v1707
        %v1720 = vunpack.c.l.b16 %v1708
        %v1721 = vunpack.c.l.b16 %v1709
        %v1722 = vpack.c.b16 %v1719, %v1718
        %v1723 = vpack.c.b16 %v1721, %v1720
        %v1727 = vsel %vm850, %v1705, 0
        %1729 = vmatpush.bf16.msra.mxu0 0
        %1730 = vmatpush.bf16.msra.mxu0 0
        %1731 = vmatpush.bf16.msra.mxu0 0
        %1732 = vmatpush.bf16.msra.mxu0 0
        %1733 = vmatpush.bf16.msra.mxu0 0
        %1734 = vmatpush.bf16.msra.mxu0 0
        %1735 = vmatpush.bf16.msra.mxu0 %v1723
        %1736 = vmatpush.bf16.msra.mxu0 %v1722
        %1737 = vmatmul.bf16.gmra.mxu0 %v1727
        %v1738 = vpop.f32.mrf.mxu0
        %v1739 = vadd.f32 %v1712, %v1738
        %v1740 = vpop.f32.mrf.mxu0
        %1741 = vdwg.mxu0
        %v1742 = vadd.f32 %v1666, %v1739
        %v1743 = vsel %vm850, %v1742, 0.0
        %1744 = vadd.xlane.f32.xlu0 %v1743
        %v1745 = vpop.xlane.xlu0 %1744
        %v1746 = vmul.f32 %v1745, %v1201
        %v1747 = vsub.f32 %v1742, %v1746
        %v1748 = vmul.f32 %v1747, %v1747
        %v1749 = vsel %vm850, %v1748, 0.0
        %1750 = vadd.xlane.f32.xlu0 %v1749
        %v1751 = vpop.xlane.xlu0 %1750
        %v1752 = vmul.f32 %v1751, %v1201
        %v1753 = vadd.f32 %v1752, 1e-05
        %v1754 = vrsqrt.pop %v1753
        %v1755 = vmul.f32 %v1754, %v1753
        %v1756 = vmul.f32 %v1755, %v1754
        %v1757 = vmul.f32 0.5, %v1756
        %v1758 = vsub.f32 1.5, %v1757
        %v1759 = vmul.f32 %v1754, %v1758
        %vm1760 = vweird.f32 %v1753
        %vm1761 = vweird.f32 %v1754
        %vm1762 = vmor %vm1760, %vm1761
        %v1763 = vsel %vm1762, %v1754, %v1759
        %v1764 = vmul.f32 %v1747, %v1763
        %v1765 = vld [vmem:[#allocation9] sm:$0x1]
        %v1767 = vperm.slane %v1765, 0
        %v1769 = vmul.f32 %v1764, %v1767
        %v1770 = vld [vmem:[#allocation10] sm:$0x1]
        %v1772 = vperm.slane %v1770, 0
        %v1774 = vadd.f32 %v1769, %v1772
        %1775 = vst.msk [vmem:[%s824] sm:$0xff] %vm850, %v1774
        %p1776 = scmp.lt.s32.totalorder %s38, 1
        %s1777 = scalar_select %p1776, %s38, 1
        %s1778 = smul.addr %s1777, 8
        %s1779 = scalar_lea.vmem %s23, %s1778
        // Predicated region
        $region137: #{transformer_decoder_forward.4} parent=111 // pred_check
          %p1780 = pneg %p554
        $region138: #{transformer_decoder_forward.4} parent=111 // pred_check_branch
          %1782 = sbr.rel (%p1780) target = $region140
        $region139: #{transformer_decoder_forward.4} parent=111 // pred_region
          _
        $region140: #{transformer_decoder_forward.4} parent=111 // pred_fallthru
          _
      $region112: #{transformer_decoder_forward.4} parent=5 // pred_fallthru
        _
      %p1783 = scmp.le.s32.totalorder 2, %s33
      // Predicated region
      $region141: #{transformer_decoder_forward.4} parent=5 // pred_check
        %p1784 = pneg %p1783
      $region142: #{transformer_decoder_forward.4} parent=5 // pred_check_branch
        %1786 = sbr.rel (%p1784) target = $region144
      $region143: #{transformer_decoder_forward.4} parent=5 // pred_region
        %s1787 = ssub.s32 %s33, 2
        // Predicated region
        $region145: #{transformer_decoder_forward.4} parent=143 // pred_check
          %p1788 = pneg %p560
        $region146: #{transformer_decoder_forward.4} parent=143 // pred_check_branch
          %1790 = sbr.rel (%p1788) target = $region148
        $region147: #{transformer_decoder_forward.4} parent=143 // pred_region
          %p1791 = scmp.lt.s32.totalorder %s39, 1
          %s1792 = scalar_select %p1791, %s39, 1
          %s1793 = smul.addr %s1792, 8
          %s1794 = scalar_lea.vmem %s23, %s1793
        $region148: #{transformer_decoder_forward.4} parent=143 // pred_fallthru
          _
      $region144: #{transformer_decoder_forward.4} parent=5 // pred_fallthru
        _
    $region6: #{transformer_decoder_forward.4} parent=1 // loop_footer
      %s37 = sadd.s32 1, %s33
    $region7: #{transformer_decoder_forward.4} parent=1 // loop_footer_branch
      %32 = sbr.rel target = $region3
    $region8: #{transformer_decoder_forward.4} parent=1 // loop_exit
      _
    %1795 = vsyncpa [#allocation3], 1
    %s1796 = scalar_lea.sflag [#allocation3], 1
    %1797 = vsyncpa %s1796, 1
    %1798 = vsyncpa [#allocation5], 1
    %1799 = vsyncpa [#allocation8], 1
    %1800 = vsyncpa [#allocation11], 1

</llo_original>
